<compile_context>
chip_gen: v7x
topology: tpu7x:2x2x1
jax: 0.10.0
libtpu: 0.0.40
codegen_flags: <defaults>
</compile_context>

<pallas_src>
import jax
import jax.numpy as jnp
from jax.experimental import pallas as pl
from jax.experimental.pallas import tpu as pltpu


def encoder_gru_kernel(tok_ref,                              # SMEM (S,) int32  [scalar prefetch]
                       emb_ref,                              # HBM  (V, H) f32  [pl.ANY]
                       wih_r_ref, wih_z_ref, wih_n_ref,      # VMEM (H, H) f32
                       whh_r_ref, whh_z_ref, whh_n_ref,      # VMEM (H, H) f32
                       b_r_ref, b_z_ref, b_in_ref, b_hn_ref,  # VMEM (1, H) f32
                       h0_ref,                               # VMEM (1, H) f32
                       out_ref,                              # VMEM (S, H) f32
                       hn_ref,                               # VMEM (1, H) f32
                       x_buf,                                # VMEM scratch (S, H)
                       copy_sems):                           # DMA sems (S,)
    S, H = out_ref.shape

    # ---- embedding gather: S row DMAs HBM -> VMEM, driven by SMEM token ids ----
    copies = []
    for t in range(S):
        tok = tok_ref[t]
        cp = pltpu.make_async_copy(emb_ref.at[pl.ds(tok, 1), :],
                                   x_buf.at[pl.ds(t, 1), :],
                                   copy_sems.at[t])
        cp.start()
        copies.append(cp)
    for cp in copies:
        cp.wait()

    x = x_buf[...]                                           # (S, H)

    # ---- input-side gate pre-activations for the whole sequence (MXU) ----
    gx_r = jnp.dot(x, wih_r_ref[...], preferred_element_type=jnp.float32) + b_r_ref[...]
    gx_z = jnp.dot(x, wih_z_ref[...], preferred_element_type=jnp.float32) + b_z_ref[...]
    gx_n = jnp.dot(x, wih_n_ref[...], preferred_element_type=jnp.float32) + b_in_ref[...]

    # Hoist recurrent weights / bias out of the unrolled loop (no re-loads).
    w_r = whh_r_ref[...]
    w_z = whh_z_ref[...]
    w_n = whh_n_ref[...]
    b_hn = b_hn_ref[...]

    # ---- fully-unrolled sequential GRU recurrence ----
    h = h0_ref[...]                                          # (1, H)
    rows = []
    for t in range(S):
        gh_r = jnp.dot(h, w_r, preferred_element_type=jnp.float32)
        gh_z = jnp.dot(h, w_z, preferred_element_type=jnp.float32)
        gh_n = jnp.dot(h, w_n, preferred_element_type=jnp.float32) + b_hn
        r = jax.nn.sigmoid(gx_r[t:t + 1, :] + gh_r)
        z = jax.nn.sigmoid(gx_z[t:t + 1, :] + gh_z)
        n = jnp.tanh(gx_n[t:t + 1, :] + r * gh_n)
        h = (1.0 - z) * n + z * h
        rows.append(h)

    # Single dense store of all S hidden rows + final hidden.
    out_ref[...] = jnp.concatenate(rows, axis=0)
    hn_ref[...] = h


def encoder_rnn_forward(word_inputs, hidden, params):
    """word_inputs: (S,) int32; hidden: (1, 1, H) float32.
    Returns (output (S, 1, H), hidden (1, 1, H)) matching the PyTorch module."""
    emb, wih_t, whh_t, b_ih, b_hh = params
    S = word_inputs.shape[0]
    V, H = emb.shape

    # Explicit OOB handling for the gather: clamp token ids into range.
    tokens = jnp.clip(word_inputs.astype(jnp.int32), 0, V - 1)
    h0 = hidden.reshape(1, H).astype(jnp.float32)

    # Gate-major split (PyTorch gate order [r | z | n] along the 3H axis of W^T).
    wih_r, wih_z, wih_n = wih_t[:, 0:H], wih_t[:, H:2 * H], wih_t[:, 2 * H:3 * H]
    whh_r, whh_z, whh_n = whh_t[:, 0:H], whh_t[:, H:2 * H], whh_t[:, 2 * H:3 * H]
    # r/z biases can be pre-combined; the n-gate hidden bias stays separate
    # because it is multiplied by r inside the cell.
    b_r = (b_ih[0:H] + b_hh[0:H]).reshape(1, H).astype(jnp.float32)
    b_z = (b_ih[H:2 * H] + b_hh[H:2 * H]).reshape(1, H).astype(jnp.float32)
    b_in = b_ih[2 * H:3 * H].reshape(1, H).astype(jnp.float32)
    b_hn = b_hh[2 * H:3 * H].reshape(1, H).astype(jnp.float32)

    def vspec(shape):
        nd = len(shape)
        return pl.BlockSpec(shape, lambda i, tok, _nd=nd: (0,) * _nd)

    grid_spec = pltpu.PrefetchScalarGridSpec(
        num_scalar_prefetch=1,
        grid=(1,),
        in_specs=[
            pl.BlockSpec(memory_space=pl.ANY),               # embedding table stays in HBM
            vspec((H, H)), vspec((H, H)), vspec((H, H)),     # W_ih r/z/n
            vspec((H, H)), vspec((H, H)), vspec((H, H)),     # W_hh r/z/n
            vspec((1, H)), vspec((1, H)), vspec((1, H)), vspec((1, H)),  # biases
            vspec((1, H)),                                   # h0
        ],
        out_specs=[vspec((S, H)), vspec((1, H))],
        scratch_shapes=[
            pltpu.VMEM((S, H), jnp.float32),                 # gathered embedding rows
            pltpu.SemaphoreType.DMA((S,)),                   # one sem per gather DMA
        ],
    )

    out, h_n = pl.pallas_call(
        encoder_gru_kernel,
        grid_spec=grid_spec,
        out_shape=(
            jax.ShapeDtypeStruct((S, H), jnp.float32),
            jax.ShapeDtypeStruct((1, H), jnp.float32),
        ),
        compiler_params=pltpu.CompilerParams(
            dimension_semantics=("arbitrary",),
            vmem_limit_bytes=16 * 1024 * 1024,
        ),
    )(tokens, emb.astype(jnp.float32),
      wih_r, wih_z, wih_n, whh_r, whh_z, whh_n,
      b_r, b_z, b_in, b_hn, h0)

    return out.reshape(S, 1, H), h_n.reshape(1, 1, H)


def reference_forward(word_inputs, hidden, params):
    """Pure-JAX reference replicating torch.nn.GRU semantics (gate order r|z|n)."""
    emb, wih_t, whh_t, b_ih, b_hh = params
    V, H = emb.shape
    x = emb[word_inputs]                               # (S, H)
    gx = x @ wih_t + b_ih                              # (S, 3H)
    h = hidden.reshape(1, H)

    outs = []
    for t in range(word_inputs.shape[0]):
        gh = h @ whh_t + b_hh
        gx_t = gx[t:t + 1]
        r = jax.nn.sigmoid(gx_t[:, 0:H] + gh[:, 0:H])
        z = jax.nn.sigmoid(gx_t[:, H:2 * H] + gh[:, H:2 * H])
        n = jnp.tanh(gx_t[:, 2 * H:3 * H] + r * gh[:, 2 * H:3 * H])
        h = (1.0 - z) * n + z * h
        outs.append(h)
    out = jnp.concatenate(outs, axis=0)                # (S, H)
    return out.reshape(-1, 1, H), h.reshape(1, 1, H)


if __name__ == "__main__":
    # Small shapes consistent with the module: vocab=20, hidden=32, seq=8, batch=1.
    V, H, S = 20, 32, 8
    key = jax.random.PRNGKey(0)
    k_emb, k_wih, k_whh, k_bih, k_bhh, k_tok = jax.random.split(key, 6)

    scale = 1.0 / jnp.sqrt(H)
    emb = jax.random.normal(k_emb, (V, H), dtype=jnp.float32)
    # PyTorch stores weight_ih_l0 as (3H, H) rows ordered [r; z; n]; we keep the
    # transposed form (H, 3H) so the kernel does x @ W.
    wih_t = jax.random.uniform(k_wih, (H, 3 * H), jnp.float32, -scale, scale)
    whh_t = jax.random.uniform(k_whh, (H, 3 * H), jnp.float32, -scale, scale)
    b_ih = jax.random.uniform(k_bih, (3 * H,), jnp.float32, -scale, scale)
    b_hh = jax.random.uniform(k_bhh, (3 * H,), jnp.float32, -scale, scale)
    params = (emb, wih_t, whh_t, b_ih, b_hh)

    word_inputs = jax.random.randint(k_tok, (S,), 0, V, dtype=jnp.int32)
    hidden0 = jnp.zeros((1, 1, H), dtype=jnp.float32)   # EncoderRNN.init_hidden()

    out, h_n = encoder_rnn_forward(word_inputs, hidden0, params)
    out = jax.block_until_ready(out)
    h_n = jax.block_until_ready(h_n)

    ref_out, ref_h = reference_forward(word_inputs, hidden0, params)
    assert out.shape == (S, 1, H) and h_n.shape == (1, 1, H)
    assert jnp.allclose(out, ref_out, atol=1e-5, rtol=1e-5)
    assert jnp.allclose(h_n, ref_h, atol=1e-5, rtol=1e-5)

    print("KERNEL_OK")
</pallas_src>

<mosaic_0001>
module attributes {stable_mosaic.version = 11 : i64} {
  func.func @encoder_gru_kernel(%arg0: i32, %arg1: memref<8xi32, #tpu.memory_space<smem>>, %arg2: memref<20x32xf32, #tpu.memory_space<any>>, %arg3: memref<32x32xf32, #tpu.memory_space<vmem>>, %arg4: memref<32x32xf32, #tpu.memory_space<vmem>>, %arg5: memref<32x32xf32, #tpu.memory_space<vmem>>, %arg6: memref<32x32xf32, #tpu.memory_space<vmem>>, %arg7: memref<32x32xf32, #tpu.memory_space<vmem>>, %arg8: memref<32x32xf32, #tpu.memory_space<vmem>>, %arg9: memref<1x32xf32, #tpu.memory_space<vmem>>, %arg10: memref<1x32xf32, #tpu.memory_space<vmem>>, %arg11: memref<1x32xf32, #tpu.memory_space<vmem>>, %arg12: memref<1x32xf32, #tpu.memory_space<vmem>>, %arg13: memref<1x32xf32, #tpu.memory_space<vmem>>, %arg14: memref<8x32xf32, #tpu.memory_space<vmem>>, %arg15: memref<1x32xf32, #tpu.memory_space<vmem>>, %arg16: memref<8x32xf32, #tpu.memory_space<vmem>>, %arg17: memref<8x!tpu.dma_semaphore, #tpu.memory_space<semaphore_mem>>) attributes {dimension_semantics = [#tpu.dimension_semantics<arbitrary>], iteration_bounds = array<i64: 1>, scalar_prefetch = 1 : i64, scratch_operands = 2 : i64, tpu.core_type = #tpu.core_type<tc>, window_params = [{}, {pipeline_mode = #tpu.pipeline_mode<synchronous>, transform_indices = @transform_1, window_bounds = array<i64: 32, 32>}, {pipeline_mode = #tpu.pipeline_mode<synchronous>, transform_indices = @transform_2, window_bounds = array<i64: 32, 32>}, {pipeline_mode = #tpu.pipeline_mode<synchronous>, transform_indices = @transform_3, window_bounds = array<i64: 32, 32>}, {pipeline_mode = #tpu.pipeline_mode<synchronous>, transform_indices = @transform_4, window_bounds = array<i64: 32, 32>}, {pipeline_mode = #tpu.pipeline_mode<synchronous>, transform_indices = @transform_5, window_bounds = array<i64: 32, 32>}, {pipeline_mode = #tpu.pipeline_mode<synchronous>, transform_indices = @transform_6, window_bounds = array<i64: 32, 32>}, {pipeline_mode = #tpu.pipeline_mode<synchronous>, transform_indices = @transform_7, window_bounds = array<i64: 1, 32>}, {pipeline_mode = #tpu.pipeline_mode<synchronous>, transform_indices = @transform_8, window_bounds = array<i64: 1, 32>}, {pipeline_mode = #tpu.pipeline_mode<synchronous>, transform_indices = @transform_9, window_bounds = array<i64: 1, 32>}, {pipeline_mode = #tpu.pipeline_mode<synchronous>, transform_indices = @transform_10, window_bounds = array<i64: 1, 32>}, {pipeline_mode = #tpu.pipeline_mode<synchronous>, transform_indices = @transform_11, window_bounds = array<i64: 1, 32>}, {pipeline_mode = #tpu.pipeline_mode<synchronous>, transform_indices = @transform_12, window_bounds = array<i64: 8, 32>}, {pipeline_mode = #tpu.pipeline_mode<synchronous>, transform_indices = @transform_13, window_bounds = array<i64: 1, 32>}]} {
    %c0 = arith.constant 0 : index
    %0 = memref.load %arg1[%c0] : memref<8xi32, #tpu.memory_space<smem>>
    %c0_i32 = arith.constant 0 : i32
    %c0_i32_0 = arith.constant 0 : i32
    %1 = tpu.memref_slice %arg2[%0, %c0_i32_0] : memref<20x32xf32, #tpu.memory_space<any>> -> memref<1x32xf32, #tpu.memory_space<any>>
    %c0_i32_1 = arith.constant 0 : i32
    %c0_i32_2 = arith.constant 0 : i32
    %2 = tpu.memref_slice %arg16[%c0_i32_1, %c0_i32_2] : memref<8x32xf32, #tpu.memory_space<vmem>> -> memref<1x32xf32, #tpu.memory_space<vmem>>
    %3 = tpu.memref_slice %arg17[%c0_i32] : memref<8x!tpu.dma_semaphore, #tpu.memory_space<semaphore_mem>> -> memref<1x!tpu.dma_semaphore, #tpu.memory_space<semaphore_mem>>
    %4 = tpu.memref_squeeze %3 : memref<1x!tpu.dma_semaphore, #tpu.memory_space<semaphore_mem>> -> memref<!tpu.dma_semaphore, #tpu.memory_space<semaphore_mem>>
    tpu.enqueue_dma source(%1 : memref<1x32xf32, #tpu.memory_space<any>>) target(%2 : memref<1x32xf32, #tpu.memory_space<vmem>>) target_semaphore(%4 : memref<!tpu.dma_semaphore, #tpu.memory_space<semaphore_mem>>)
    %c1 = arith.constant 1 : index
    %5 = memref.load %arg1[%c1] : memref<8xi32, #tpu.memory_space<smem>>
    %c1_i32 = arith.constant 1 : i32
    %c0_i32_3 = arith.constant 0 : i32
    %6 = tpu.memref_slice %arg2[%5, %c0_i32_3] : memref<20x32xf32, #tpu.memory_space<any>> -> memref<1x32xf32, #tpu.memory_space<any>>
    %c1_i32_4 = arith.constant 1 : i32
    %c0_i32_5 = arith.constant 0 : i32
    %7 = tpu.memref_slice %arg16[%c1_i32_4, %c0_i32_5] : memref<8x32xf32, #tpu.memory_space<vmem>> -> memref<1x32xf32, #tpu.memory_space<vmem>>
    %8 = tpu.memref_slice %arg17[%c1_i32] : memref<8x!tpu.dma_semaphore, #tpu.memory_space<semaphore_mem>> -> memref<1x!tpu.dma_semaphore, #tpu.memory_space<semaphore_mem>>
    %9 = tpu.memref_squeeze %8 : memref<1x!tpu.dma_semaphore, #tpu.memory_space<semaphore_mem>> -> memref<!tpu.dma_semaphore, #tpu.memory_space<semaphore_mem>>
    tpu.enqueue_dma source(%6 : memref<1x32xf32, #tpu.memory_space<any>>) target(%7 : memref<1x32xf32, #tpu.memory_space<vmem>>) target_semaphore(%9 : memref<!tpu.dma_semaphore, #tpu.memory_space<semaphore_mem>>)
    %c2 = arith.constant 2 : index
    %10 = memref.load %arg1[%c2] : memref<8xi32, #tpu.memory_space<smem>>
    %c2_i32 = arith.constant 2 : i32
    %c0_i32_6 = arith.constant 0 : i32
    %11 = tpu.memref_slice %arg2[%10, %c0_i32_6] : memref<20x32xf32, #tpu.memory_space<any>> -> memref<1x32xf32, #tpu.memory_space<any>>
    %c2_i32_7 = arith.constant 2 : i32
    %c0_i32_8 = arith.constant 0 : i32
    %12 = tpu.memref_slice %arg16[%c2_i32_7, %c0_i32_8] : memref<8x32xf32, #tpu.memory_space<vmem>> -> memref<1x32xf32, #tpu.memory_space<vmem>>
    %13 = tpu.memref_slice %arg17[%c2_i32] : memref<8x!tpu.dma_semaphore, #tpu.memory_space<semaphore_mem>> -> memref<1x!tpu.dma_semaphore, #tpu.memory_space<semaphore_mem>>
    %14 = tpu.memref_squeeze %13 : memref<1x!tpu.dma_semaphore, #tpu.memory_space<semaphore_mem>> -> memref<!tpu.dma_semaphore, #tpu.memory_space<semaphore_mem>>
    tpu.enqueue_dma source(%11 : memref<1x32xf32, #tpu.memory_space<any>>) target(%12 : memref<1x32xf32, #tpu.memory_space<vmem>>) target_semaphore(%14 : memref<!tpu.dma_semaphore, #tpu.memory_space<semaphore_mem>>)
    %c3 = arith.constant 3 : index
    %15 = memref.load %arg1[%c3] : memref<8xi32, #tpu.memory_space<smem>>
    %c3_i32 = arith.constant 3 : i32
    %c0_i32_9 = arith.constant 0 : i32
    %16 = tpu.memref_slice %arg2[%15, %c0_i32_9] : memref<20x32xf32, #tpu.memory_space<any>> -> memref<1x32xf32, #tpu.memory_space<any>>
    %c3_i32_10 = arith.constant 3 : i32
    %c0_i32_11 = arith.constant 0 : i32
    %17 = tpu.memref_slice %arg16[%c3_i32_10, %c0_i32_11] : memref<8x32xf32, #tpu.memory_space<vmem>> -> memref<1x32xf32, #tpu.memory_space<vmem>>
    %18 = tpu.memref_slice %arg17[%c3_i32] : memref<8x!tpu.dma_semaphore, #tpu.memory_space<semaphore_mem>> -> memref<1x!tpu.dma_semaphore, #tpu.memory_space<semaphore_mem>>
    %19 = tpu.memref_squeeze %18 : memref<1x!tpu.dma_semaphore, #tpu.memory_space<semaphore_mem>> -> memref<!tpu.dma_semaphore, #tpu.memory_space<semaphore_mem>>
    tpu.enqueue_dma source(%16 : memref<1x32xf32, #tpu.memory_space<any>>) target(%17 : memref<1x32xf32, #tpu.memory_space<vmem>>) target_semaphore(%19 : memref<!tpu.dma_semaphore, #tpu.memory_space<semaphore_mem>>)
    %c4 = arith.constant 4 : index
    %20 = memref.load %arg1[%c4] : memref<8xi32, #tpu.memory_space<smem>>
    %c4_i32 = arith.constant 4 : i32
    %c0_i32_12 = arith.constant 0 : i32
    %21 = tpu.memref_slice %arg2[%20, %c0_i32_12] : memref<20x32xf32, #tpu.memory_space<any>> -> memref<1x32xf32, #tpu.memory_space<any>>
    %c4_i32_13 = arith.constant 4 : i32
    %c0_i32_14 = arith.constant 0 : i32
    %22 = tpu.memref_slice %arg16[%c4_i32_13, %c0_i32_14] : memref<8x32xf32, #tpu.memory_space<vmem>> -> memref<1x32xf32, #tpu.memory_space<vmem>>
    %23 = tpu.memref_slice %arg17[%c4_i32] : memref<8x!tpu.dma_semaphore, #tpu.memory_space<semaphore_mem>> -> memref<1x!tpu.dma_semaphore, #tpu.memory_space<semaphore_mem>>
    %24 = tpu.memref_squeeze %23 : memref<1x!tpu.dma_semaphore, #tpu.memory_space<semaphore_mem>> -> memref<!tpu.dma_semaphore, #tpu.memory_space<semaphore_mem>>
    tpu.enqueue_dma source(%21 : memref<1x32xf32, #tpu.memory_space<any>>) target(%22 : memref<1x32xf32, #tpu.memory_space<vmem>>) target_semaphore(%24 : memref<!tpu.dma_semaphore, #tpu.memory_space<semaphore_mem>>)
    %c5 = arith.constant 5 : index
    %25 = memref.load %arg1[%c5] : memref<8xi32, #tpu.memory_space<smem>>
    %c5_i32 = arith.constant 5 : i32
    %c0_i32_15 = arith.constant 0 : i32
    %26 = tpu.memref_slice %arg2[%25, %c0_i32_15] : memref<20x32xf32, #tpu.memory_space<any>> -> memref<1x32xf32, #tpu.memory_space<any>>
    %c5_i32_16 = arith.constant 5 : i32
    %c0_i32_17 = arith.constant 0 : i32
    %27 = tpu.memref_slice %arg16[%c5_i32_16, %c0_i32_17] : memref<8x32xf32, #tpu.memory_space<vmem>> -> memref<1x32xf32, #tpu.memory_space<vmem>>
    %28 = tpu.memref_slice %arg17[%c5_i32] : memref<8x!tpu.dma_semaphore, #tpu.memory_space<semaphore_mem>> -> memref<1x!tpu.dma_semaphore, #tpu.memory_space<semaphore_mem>>
    %29 = tpu.memref_squeeze %28 : memref<1x!tpu.dma_semaphore, #tpu.memory_space<semaphore_mem>> -> memref<!tpu.dma_semaphore, #tpu.memory_space<semaphore_mem>>
    tpu.enqueue_dma source(%26 : memref<1x32xf32, #tpu.memory_space<any>>) target(%27 : memref<1x32xf32, #tpu.memory_space<vmem>>) target_semaphore(%29 : memref<!tpu.dma_semaphore, #tpu.memory_space<semaphore_mem>>)
    %c6 = arith.constant 6 : index
    %30 = memref.load %arg1[%c6] : memref<8xi32, #tpu.memory_space<smem>>
    %c6_i32 = arith.constant 6 : i32
    %c0_i32_18 = arith.constant 0 : i32
    %31 = tpu.memref_slice %arg2[%30, %c0_i32_18] : memref<20x32xf32, #tpu.memory_space<any>> -> memref<1x32xf32, #tpu.memory_space<any>>
    %c6_i32_19 = arith.constant 6 : i32
    %c0_i32_20 = arith.constant 0 : i32
    %32 = tpu.memref_slice %arg16[%c6_i32_19, %c0_i32_20] : memref<8x32xf32, #tpu.memory_space<vmem>> -> memref<1x32xf32, #tpu.memory_space<vmem>>
    %33 = tpu.memref_slice %arg17[%c6_i32] : memref<8x!tpu.dma_semaphore, #tpu.memory_space<semaphore_mem>> -> memref<1x!tpu.dma_semaphore, #tpu.memory_space<semaphore_mem>>
    %34 = tpu.memref_squeeze %33 : memref<1x!tpu.dma_semaphore, #tpu.memory_space<semaphore_mem>> -> memref<!tpu.dma_semaphore, #tpu.memory_space<semaphore_mem>>
    tpu.enqueue_dma source(%31 : memref<1x32xf32, #tpu.memory_space<any>>) target(%32 : memref<1x32xf32, #tpu.memory_space<vmem>>) target_semaphore(%34 : memref<!tpu.dma_semaphore, #tpu.memory_space<semaphore_mem>>)
    %c7 = arith.constant 7 : index
    %35 = memref.load %arg1[%c7] : memref<8xi32, #tpu.memory_space<smem>>
    %c7_i32 = arith.constant 7 : i32
    %c0_i32_21 = arith.constant 0 : i32
    %36 = tpu.memref_slice %arg2[%35, %c0_i32_21] : memref<20x32xf32, #tpu.memory_space<any>> -> memref<1x32xf32, #tpu.memory_space<any>>
    %c7_i32_22 = arith.constant 7 : i32
    %c0_i32_23 = arith.constant 0 : i32
    %37 = tpu.memref_slice %arg16[%c7_i32_22, %c0_i32_23] : memref<8x32xf32, #tpu.memory_space<vmem>> -> memref<1x32xf32, #tpu.memory_space<vmem>>
    %38 = tpu.memref_slice %arg17[%c7_i32] : memref<8x!tpu.dma_semaphore, #tpu.memory_space<semaphore_mem>> -> memref<1x!tpu.dma_semaphore, #tpu.memory_space<semaphore_mem>>
    %39 = tpu.memref_squeeze %38 : memref<1x!tpu.dma_semaphore, #tpu.memory_space<semaphore_mem>> -> memref<!tpu.dma_semaphore, #tpu.memory_space<semaphore_mem>>
    tpu.enqueue_dma source(%36 : memref<1x32xf32, #tpu.memory_space<any>>) target(%37 : memref<1x32xf32, #tpu.memory_space<vmem>>) target_semaphore(%39 : memref<!tpu.dma_semaphore, #tpu.memory_space<semaphore_mem>>)
    %c0_i32_24 = arith.constant 0 : i32
    %c0_i32_25 = arith.constant 0 : i32
    %40 = tpu.memref_slice %arg2[%0, %c0_i32_25] : memref<20x32xf32, #tpu.memory_space<any>> -> memref<1x32xf32, #tpu.memory_space<any>>
    %c0_i32_26 = arith.constant 0 : i32
    %c0_i32_27 = arith.constant 0 : i32
    %41 = tpu.memref_slice %arg16[%c0_i32_26, %c0_i32_27] : memref<8x32xf32, #tpu.memory_space<vmem>> -> memref<1x32xf32, #tpu.memory_space<vmem>>
    %42 = tpu.memref_slice %arg17[%c0_i32_24] : memref<8x!tpu.dma_semaphore, #tpu.memory_space<semaphore_mem>> -> memref<1x!tpu.dma_semaphore, #tpu.memory_space<semaphore_mem>>
    %43 = tpu.memref_squeeze %42 : memref<1x!tpu.dma_semaphore, #tpu.memory_space<semaphore_mem>> -> memref<!tpu.dma_semaphore, #tpu.memory_space<semaphore_mem>>
    tpu.wait_dma2 semaphore(%43 : memref<!tpu.dma_semaphore, #tpu.memory_space<semaphore_mem>>) src(%40 : memref<1x32xf32, #tpu.memory_space<any>>) dst(%41 : memref<1x32xf32, #tpu.memory_space<vmem>>)
    %c1_i32_28 = arith.constant 1 : i32
    %c0_i32_29 = arith.constant 0 : i32
    %44 = tpu.memref_slice %arg2[%5, %c0_i32_29] : memref<20x32xf32, #tpu.memory_space<any>> -> memref<1x32xf32, #tpu.memory_space<any>>
    %c1_i32_30 = arith.constant 1 : i32
    %c0_i32_31 = arith.constant 0 : i32
    %45 = tpu.memref_slice %arg16[%c1_i32_30, %c0_i32_31] : memref<8x32xf32, #tpu.memory_space<vmem>> -> memref<1x32xf32, #tpu.memory_space<vmem>>
    %46 = tpu.memref_slice %arg17[%c1_i32_28] : memref<8x!tpu.dma_semaphore, #tpu.memory_space<semaphore_mem>> -> memref<1x!tpu.dma_semaphore, #tpu.memory_space<semaphore_mem>>
    %47 = tpu.memref_squeeze %46 : memref<1x!tpu.dma_semaphore, #tpu.memory_space<semaphore_mem>> -> memref<!tpu.dma_semaphore, #tpu.memory_space<semaphore_mem>>
    tpu.wait_dma2 semaphore(%47 : memref<!tpu.dma_semaphore, #tpu.memory_space<semaphore_mem>>) src(%44 : memref<1x32xf32, #tpu.memory_space<any>>) dst(%45 : memref<1x32xf32, #tpu.memory_space<vmem>>)
    %c2_i32_32 = arith.constant 2 : i32
    %c0_i32_33 = arith.constant 0 : i32
    %48 = tpu.memref_slice %arg2[%10, %c0_i32_33] : memref<20x32xf32, #tpu.memory_space<any>> -> memref<1x32xf32, #tpu.memory_space<any>>
    %c2_i32_34 = arith.constant 2 : i32
    %c0_i32_35 = arith.constant 0 : i32
    %49 = tpu.memref_slice %arg16[%c2_i32_34, %c0_i32_35] : memref<8x32xf32, #tpu.memory_space<vmem>> -> memref<1x32xf32, #tpu.memory_space<vmem>>
    %50 = tpu.memref_slice %arg17[%c2_i32_32] : memref<8x!tpu.dma_semaphore, #tpu.memory_space<semaphore_mem>> -> memref<1x!tpu.dma_semaphore, #tpu.memory_space<semaphore_mem>>
    %51 = tpu.memref_squeeze %50 : memref<1x!tpu.dma_semaphore, #tpu.memory_space<semaphore_mem>> -> memref<!tpu.dma_semaphore, #tpu.memory_space<semaphore_mem>>
    tpu.wait_dma2 semaphore(%51 : memref<!tpu.dma_semaphore, #tpu.memory_space<semaphore_mem>>) src(%48 : memref<1x32xf32, #tpu.memory_space<any>>) dst(%49 : memref<1x32xf32, #tpu.memory_space<vmem>>)
    %c3_i32_36 = arith.constant 3 : i32
    %c0_i32_37 = arith.constant 0 : i32
    %52 = tpu.memref_slice %arg2[%15, %c0_i32_37] : memref<20x32xf32, #tpu.memory_space<any>> -> memref<1x32xf32, #tpu.memory_space<any>>
    %c3_i32_38 = arith.constant 3 : i32
    %c0_i32_39 = arith.constant 0 : i32
    %53 = tpu.memref_slice %arg16[%c3_i32_38, %c0_i32_39] : memref<8x32xf32, #tpu.memory_space<vmem>> -> memref<1x32xf32, #tpu.memory_space<vmem>>
    %54 = tpu.memref_slice %arg17[%c3_i32_36] : memref<8x!tpu.dma_semaphore, #tpu.memory_space<semaphore_mem>> -> memref<1x!tpu.dma_semaphore, #tpu.memory_space<semaphore_mem>>
    %55 = tpu.memref_squeeze %54 : memref<1x!tpu.dma_semaphore, #tpu.memory_space<semaphore_mem>> -> memref<!tpu.dma_semaphore, #tpu.memory_space<semaphore_mem>>
    tpu.wait_dma2 semaphore(%55 : memref<!tpu.dma_semaphore, #tpu.memory_space<semaphore_mem>>) src(%52 : memref<1x32xf32, #tpu.memory_space<any>>) dst(%53 : memref<1x32xf32, #tpu.memory_space<vmem>>)
    %c4_i32_40 = arith.constant 4 : i32
    %c0_i32_41 = arith.constant 0 : i32
    %56 = tpu.memref_slice %arg2[%20, %c0_i32_41] : memref<20x32xf32, #tpu.memory_space<any>> -> memref<1x32xf32, #tpu.memory_space<any>>
    %c4_i32_42 = arith.constant 4 : i32
    %c0_i32_43 = arith.constant 0 : i32
    %57 = tpu.memref_slice %arg16[%c4_i32_42, %c0_i32_43] : memref<8x32xf32, #tpu.memory_space<vmem>> -> memref<1x32xf32, #tpu.memory_space<vmem>>
    %58 = tpu.memref_slice %arg17[%c4_i32_40] : memref<8x!tpu.dma_semaphore, #tpu.memory_space<semaphore_mem>> -> memref<1x!tpu.dma_semaphore, #tpu.memory_space<semaphore_mem>>
    %59 = tpu.memref_squeeze %58 : memref<1x!tpu.dma_semaphore, #tpu.memory_space<semaphore_mem>> -> memref<!tpu.dma_semaphore, #tpu.memory_space<semaphore_mem>>
    tpu.wait_dma2 semaphore(%59 : memref<!tpu.dma_semaphore, #tpu.memory_space<semaphore_mem>>) src(%56 : memref<1x32xf32, #tpu.memory_space<any>>) dst(%57 : memref<1x32xf32, #tpu.memory_space<vmem>>)
    %c5_i32_44 = arith.constant 5 : i32
    %c0_i32_45 = arith.constant 0 : i32
    %60 = tpu.memref_slice %arg2[%25, %c0_i32_45] : memref<20x32xf32, #tpu.memory_space<any>> -> memref<1x32xf32, #tpu.memory_space<any>>
    %c5_i32_46 = arith.constant 5 : i32
    %c0_i32_47 = arith.constant 0 : i32
    %61 = tpu.memref_slice %arg16[%c5_i32_46, %c0_i32_47] : memref<8x32xf32, #tpu.memory_space<vmem>> -> memref<1x32xf32, #tpu.memory_space<vmem>>
    %62 = tpu.memref_slice %arg17[%c5_i32_44] : memref<8x!tpu.dma_semaphore, #tpu.memory_space<semaphore_mem>> -> memref<1x!tpu.dma_semaphore, #tpu.memory_space<semaphore_mem>>
    %63 = tpu.memref_squeeze %62 : memref<1x!tpu.dma_semaphore, #tpu.memory_space<semaphore_mem>> -> memref<!tpu.dma_semaphore, #tpu.memory_space<semaphore_mem>>
    tpu.wait_dma2 semaphore(%63 : memref<!tpu.dma_semaphore, #tpu.memory_space<semaphore_mem>>) src(%60 : memref<1x32xf32, #tpu.memory_space<any>>) dst(%61 : memref<1x32xf32, #tpu.memory_space<vmem>>)
    %c6_i32_48 = arith.constant 6 : i32
    %c0_i32_49 = arith.constant 0 : i32
    %64 = tpu.memref_slice %arg2[%30, %c0_i32_49] : memref<20x32xf32, #tpu.memory_space<any>> -> memref<1x32xf32, #tpu.memory_space<any>>
    %c6_i32_50 = arith.constant 6 : i32
    %c0_i32_51 = arith.constant 0 : i32
    %65 = tpu.memref_slice %arg16[%c6_i32_50, %c0_i32_51] : memref<8x32xf32, #tpu.memory_space<vmem>> -> memref<1x32xf32, #tpu.memory_space<vmem>>
    %66 = tpu.memref_slice %arg17[%c6_i32_48] : memref<8x!tpu.dma_semaphore, #tpu.memory_space<semaphore_mem>> -> memref<1x!tpu.dma_semaphore, #tpu.memory_space<semaphore_mem>>
    %67 = tpu.memref_squeeze %66 : memref<1x!tpu.dma_semaphore, #tpu.memory_space<semaphore_mem>> -> memref<!tpu.dma_semaphore, #tpu.memory_space<semaphore_mem>>
    tpu.wait_dma2 semaphore(%67 : memref<!tpu.dma_semaphore, #tpu.memory_space<semaphore_mem>>) src(%64 : memref<1x32xf32, #tpu.memory_space<any>>) dst(%65 : memref<1x32xf32, #tpu.memory_space<vmem>>)
    %c7_i32_52 = arith.constant 7 : i32
    %c0_i32_53 = arith.constant 0 : i32
    %68 = tpu.memref_slice %arg2[%35, %c0_i32_53] : memref<20x32xf32, #tpu.memory_space<any>> -> memref<1x32xf32, #tpu.memory_space<any>>
    %c7_i32_54 = arith.constant 7 : i32
    %c0_i32_55 = arith.constant 0 : i32
    %69 = tpu.memref_slice %arg16[%c7_i32_54, %c0_i32_55] : memref<8x32xf32, #tpu.memory_space<vmem>> -> memref<1x32xf32, #tpu.memory_space<vmem>>
    %70 = tpu.memref_slice %arg17[%c7_i32_52] : memref<8x!tpu.dma_semaphore, #tpu.memory_space<semaphore_mem>> -> memref<1x!tpu.dma_semaphore, #tpu.memory_space<semaphore_mem>>
    %71 = tpu.memref_squeeze %70 : memref<1x!tpu.dma_semaphore, #tpu.memory_space<semaphore_mem>> -> memref<!tpu.dma_semaphore, #tpu.memory_space<semaphore_mem>>
    tpu.wait_dma2 semaphore(%71 : memref<!tpu.dma_semaphore, #tpu.memory_space<semaphore_mem>>) src(%68 : memref<1x32xf32, #tpu.memory_space<any>>) dst(%69 : memref<1x32xf32, #tpu.memory_space<vmem>>)
    %c0_56 = arith.constant 0 : index
    %c0_57 = arith.constant 0 : index
    %72 = vector.load %arg16[%c0_56, %c0_57] : memref<8x32xf32, #tpu.memory_space<vmem>>, vector<8x32xf32>
    %c0_58 = arith.constant 0 : index
    %c0_59 = arith.constant 0 : index
    %73 = vector.load %arg3[%c0_58, %c0_59] : memref<32x32xf32, #tpu.memory_space<vmem>>, vector<32x32xf32>
    %cst = arith.constant dense<0.000000e+00> : vector<8x32xf32>
    %74 = tpu.matmul %72, %73, %cst {dimension_numbers = #tpu.dot_dimension_numbers<[1], [0], [0], [1], [0, 0, 1, 1], [], []>} : vector<8x32xf32>, vector<32x32xf32>, vector<8x32xf32> -> vector<8x32xf32>
    %c0_60 = arith.constant 0 : index
    %c0_61 = arith.constant 0 : index
    %75 = vector.load %arg9[%c0_60, %c0_61] : memref<1x32xf32, #tpu.memory_space<vmem>>, vector<1x32xf32>
    %76 = vector.broadcast %75 : vector<1x32xf32> to vector<8x32xf32>
    %77 = arith.addf %74, %76 : vector<8x32xf32>
    %c0_62 = arith.constant 0 : index
    %c0_63 = arith.constant 0 : index
    %78 = vector.load %arg4[%c0_62, %c0_63] : memref<32x32xf32, #tpu.memory_space<vmem>>, vector<32x32xf32>
    %cst_64 = arith.constant dense<0.000000e+00> : vector<8x32xf32>
    %79 = tpu.matmul %72, %78, %cst_64 {dimension_numbers = #tpu.dot_dimension_numbers<[1], [0], [0], [1], [0, 0, 1, 1], [], []>} : vector<8x32xf32>, vector<32x32xf32>, vector<8x32xf32> -> vector<8x32xf32>
    %c0_65 = arith.constant 0 : index
    %c0_66 = arith.constant 0 : index
    %80 = vector.load %arg10[%c0_65, %c0_66] : memref<1x32xf32, #tpu.memory_space<vmem>>, vector<1x32xf32>
    %81 = vector.broadcast %80 : vector<1x32xf32> to vector<8x32xf32>
    %82 = arith.addf %79, %81 : vector<8x32xf32>
    %c0_67 = arith.constant 0 : index
    %c0_68 = arith.constant 0 : index
    %83 = vector.load %arg5[%c0_67, %c0_68] : memref<32x32xf32, #tpu.memory_space<vmem>>, vector<32x32xf32>
    %cst_69 = arith.constant dense<0.000000e+00> : vector<8x32xf32>
    %84 = tpu.matmul %72, %83, %cst_69 {dimension_numbers = #tpu.dot_dimension_numbers<[1], [0], [0], [1], [0, 0, 1, 1], [], []>} : vector<8x32xf32>, vector<32x32xf32>, vector<8x32xf32> -> vector<8x32xf32>
    %c0_70 = arith.constant 0 : index
    %c0_71 = arith.constant 0 : index
    %85 = vector.load %arg11[%c0_70, %c0_71] : memref<1x32xf32, #tpu.memory_space<vmem>>, vector<1x32xf32>
    %86 = vector.broadcast %85 : vector<1x32xf32> to vector<8x32xf32>
    %87 = arith.addf %84, %86 : vector<8x32xf32>
    %c0_72 = arith.constant 0 : index
    %c0_73 = arith.constant 0 : index
    %88 = vector.load %arg6[%c0_72, %c0_73] : memref<32x32xf32, #tpu.memory_space<vmem>>, vector<32x32xf32>
    %c0_74 = arith.constant 0 : index
    %c0_75 = arith.constant 0 : index
    %89 = vector.load %arg7[%c0_74, %c0_75] : memref<32x32xf32, #tpu.memory_space<vmem>>, vector<32x32xf32>
    %c0_76 = arith.constant 0 : index
    %c0_77 = arith.constant 0 : index
    %90 = vector.load %arg8[%c0_76, %c0_77] : memref<32x32xf32, #tpu.memory_space<vmem>>, vector<32x32xf32>
    %c0_78 = arith.constant 0 : index
    %c0_79 = arith.constant 0 : index
    %91 = vector.load %arg12[%c0_78, %c0_79] : memref<1x32xf32, #tpu.memory_space<vmem>>, vector<1x32xf32>
    %c0_80 = arith.constant 0 : index
    %c0_81 = arith.constant 0 : index
    %92 = vector.load %arg13[%c0_80, %c0_81] : memref<1x32xf32, #tpu.memory_space<vmem>>, vector<1x32xf32>
    %cst_82 = arith.constant dense<0.000000e+00> : vector<1x32xf32>
    %93 = tpu.matmul %92, %88, %cst_82 {dimension_numbers = #tpu.dot_dimension_numbers<[1], [0], [0], [1], [0, 0, 1, 1], [], []>} : vector<1x32xf32>, vector<32x32xf32>, vector<1x32xf32> -> vector<1x32xf32>
    %cst_83 = arith.constant dense<0.000000e+00> : vector<1x32xf32>
    %94 = tpu.matmul %92, %89, %cst_83 {dimension_numbers = #tpu.dot_dimension_numbers<[1], [0], [0], [1], [0, 0, 1, 1], [], []>} : vector<1x32xf32>, vector<32x32xf32>, vector<1x32xf32> -> vector<1x32xf32>
    %cst_84 = arith.constant dense<0.000000e+00> : vector<1x32xf32>
    %95 = tpu.matmul %92, %90, %cst_84 {dimension_numbers = #tpu.dot_dimension_numbers<[1], [0], [0], [1], [0, 0, 1, 1], [], []>} : vector<1x32xf32>, vector<32x32xf32>, vector<1x32xf32> -> vector<1x32xf32>
    %96 = arith.addf %95, %91 : vector<1x32xf32>
    %97 = vector.extract_strided_slice %77 {offsets = [0, 0], sizes = [1, 32], strides = [1, 1]} : vector<8x32xf32> to vector<1x32xf32>
    %98 = arith.addf %97, %93 : vector<1x32xf32>
    %99 = arith.negf %98 : vector<1x32xf32>
    %100 = math.exp %99 : vector<1x32xf32>
    %cst_85 = arith.constant 1.000000e+00 : f32
    %101 = vector.broadcast %cst_85 : f32 to vector<1x32xf32>
    %102 = arith.addf %101, %100 : vector<1x32xf32>
    %103 = arith.divf %101, %102 : vector<1x32xf32>
    %104 = vector.extract_strided_slice %82 {offsets = [0, 0], sizes = [1, 32], strides = [1, 1]} : vector<8x32xf32> to vector<1x32xf32>
    %105 = arith.addf %104, %94 : vector<1x32xf32>
    %106 = arith.negf %105 : vector<1x32xf32>
    %107 = math.exp %106 : vector<1x32xf32>
    %cst_86 = arith.constant 1.000000e+00 : f32
    %108 = vector.broadcast %cst_86 : f32 to vector<1x32xf32>
    %109 = arith.addf %108, %107 : vector<1x32xf32>
    %110 = arith.divf %108, %109 : vector<1x32xf32>
    %111 = vector.extract_strided_slice %87 {offsets = [0, 0], sizes = [1, 32], strides = [1, 1]} : vector<8x32xf32> to vector<1x32xf32>
    %112 = arith.mulf %103, %96 : vector<1x32xf32>
    %113 = arith.addf %111, %112 : vector<1x32xf32>
    %114 = math.tanh %113 : vector<1x32xf32>
    %cst_87 = arith.constant 1.000000e+00 : f32
    %115 = vector.broadcast %cst_87 : f32 to vector<1x32xf32>
    %116 = arith.subf %115, %110 : vector<1x32xf32>
    %117 = arith.mulf %116, %114 : vector<1x32xf32>
    %118 = arith.mulf %110, %92 : vector<1x32xf32>
    %119 = arith.addf %117, %118 : vector<1x32xf32>
    %cst_88 = arith.constant dense<0.000000e+00> : vector<1x32xf32>
    %120 = tpu.matmul %119, %88, %cst_88 {dimension_numbers = #tpu.dot_dimension_numbers<[1], [0], [0], [1], [0, 0, 1, 1], [], []>} : vector<1x32xf32>, vector<32x32xf32>, vector<1x32xf32> -> vector<1x32xf32>
    %cst_89 = arith.constant dense<0.000000e+00> : vector<1x32xf32>
    %121 = tpu.matmul %119, %89, %cst_89 {dimension_numbers = #tpu.dot_dimension_numbers<[1], [0], [0], [1], [0, 0, 1, 1], [], []>} : vector<1x32xf32>, vector<32x32xf32>, vector<1x32xf32> -> vector<1x32xf32>
    %cst_90 = arith.constant dense<0.000000e+00> : vector<1x32xf32>
    %122 = tpu.matmul %119, %90, %cst_90 {dimension_numbers = #tpu.dot_dimension_numbers<[1], [0], [0], [1], [0, 0, 1, 1], [], []>} : vector<1x32xf32>, vector<32x32xf32>, vector<1x32xf32> -> vector<1x32xf32>
    %123 = arith.addf %122, %91 : vector<1x32xf32>
    %124 = vector.extract_strided_slice %77 {offsets = [1, 0], sizes = [1, 32], strides = [1, 1]} : vector<8x32xf32> to vector<1x32xf32>
    %125 = arith.addf %124, %120 : vector<1x32xf32>
    %126 = arith.negf %125 : vector<1x32xf32>
    %127 = math.exp %126 : vector<1x32xf32>
    %cst_91 = arith.constant 1.000000e+00 : f32
    %128 = vector.broadcast %cst_91 : f32 to vector<1x32xf32>
    %129 = arith.addf %128, %127 : vector<1x32xf32>
    %130 = arith.divf %128, %129 : vector<1x32xf32>
    %131 = vector.extract_strided_slice %82 {offsets = [1, 0], sizes = [1, 32], strides = [1, 1]} : vector<8x32xf32> to vector<1x32xf32>
    %132 = arith.addf %131, %121 : vector<1x32xf32>
    %133 = arith.negf %132 : vector<1x32xf32>
    %134 = math.exp %133 : vector<1x32xf32>
    %cst_92 = arith.constant 1.000000e+00 : f32
    %135 = vector.broadcast %cst_92 : f32 to vector<1x32xf32>
    %136 = arith.addf %135, %134 : vector<1x32xf32>
    %137 = arith.divf %135, %136 : vector<1x32xf32>
    %138 = vector.extract_strided_slice %87 {offsets = [1, 0], sizes = [1, 32], strides = [1, 1]} : vector<8x32xf32> to vector<1x32xf32>
    %139 = arith.mulf %130, %123 : vector<1x32xf32>
    %140 = arith.addf %138, %139 : vector<1x32xf32>
    %141 = math.tanh %140 : vector<1x32xf32>
    %cst_93 = arith.constant 1.000000e+00 : f32
    %142 = vector.broadcast %cst_93 : f32 to vector<1x32xf32>
    %143 = arith.subf %142, %137 : vector<1x32xf32>
    %144 = arith.mulf %143, %141 : vector<1x32xf32>
    %145 = arith.mulf %137, %119 : vector<1x32xf32>
    %146 = arith.addf %144, %145 : vector<1x32xf32>
    %cst_94 = arith.constant dense<0.000000e+00> : vector<1x32xf32>
    %147 = tpu.matmul %146, %88, %cst_94 {dimension_numbers = #tpu.dot_dimension_numbers<[1], [0], [0], [1], [0, 0, 1, 1], [], []>} : vector<1x32xf32>, vector<32x32xf32>, vector<1x32xf32> -> vector<1x32xf32>
    %cst_95 = arith.constant dense<0.000000e+00> : vector<1x32xf32>
    %148 = tpu.matmul %146, %89, %cst_95 {dimension_numbers = #tpu.dot_dimension_numbers<[1], [0], [0], [1], [0, 0, 1, 1], [], []>} : vector<1x32xf32>, vector<32x32xf32>, vector<1x32xf32> -> vector<1x32xf32>
    %cst_96 = arith.constant dense<0.000000e+00> : vector<1x32xf32>
    %149 = tpu.matmul %146, %90, %cst_96 {dimension_numbers = #tpu.dot_dimension_numbers<[1], [0], [0], [1], [0, 0, 1, 1], [], []>} : vector<1x32xf32>, vector<32x32xf32>, vector<1x32xf32> -> vector<1x32xf32>
    %150 = arith.addf %149, %91 : vector<1x32xf32>
    %151 = vector.extract_strided_slice %77 {offsets = [2, 0], sizes = [1, 32], strides = [1, 1]} : vector<8x32xf32> to vector<1x32xf32>
    %152 = arith.addf %151, %147 : vector<1x32xf32>
    %153 = arith.negf %152 : vector<1x32xf32>
    %154 = math.exp %153 : vector<1x32xf32>
    %cst_97 = arith.constant 1.000000e+00 : f32
    %155 = vector.broadcast %cst_97 : f32 to vector<1x32xf32>
    %156 = arith.addf %155, %154 : vector<1x32xf32>
    %157 = arith.divf %155, %156 : vector<1x32xf32>
    %158 = vector.extract_strided_slice %82 {offsets = [2, 0], sizes = [1, 32], strides = [1, 1]} : vector<8x32xf32> to vector<1x32xf32>
    %159 = arith.addf %158, %148 : vector<1x32xf32>
    %160 = arith.negf %159 : vector<1x32xf32>
    %161 = math.exp %160 : vector<1x32xf32>
    %cst_98 = arith.constant 1.000000e+00 : f32
    %162 = vector.broadcast %cst_98 : f32 to vector<1x32xf32>
    %163 = arith.addf %162, %161 : vector<1x32xf32>
    %164 = arith.divf %162, %163 : vector<1x32xf32>
    %165 = vector.extract_strided_slice %87 {offsets = [2, 0], sizes = [1, 32], strides = [1, 1]} : vector<8x32xf32> to vector<1x32xf32>
    %166 = arith.mulf %157, %150 : vector<1x32xf32>
    %167 = arith.addf %165, %166 : vector<1x32xf32>
    %168 = math.tanh %167 : vector<1x32xf32>
    %cst_99 = arith.constant 1.000000e+00 : f32
    %169 = vector.broadcast %cst_99 : f32 to vector<1x32xf32>
    %170 = arith.subf %169, %164 : vector<1x32xf32>
    %171 = arith.mulf %170, %168 : vector<1x32xf32>
    %172 = arith.mulf %164, %146 : vector<1x32xf32>
    %173 = arith.addf %171, %172 : vector<1x32xf32>
    %cst_100 = arith.constant dense<0.000000e+00> : vector<1x32xf32>
    %174 = tpu.matmul %173, %88, %cst_100 {dimension_numbers = #tpu.dot_dimension_numbers<[1], [0], [0], [1], [0, 0, 1, 1], [], []>} : vector<1x32xf32>, vector<32x32xf32>, vector<1x32xf32> -> vector<1x32xf32>
    %cst_101 = arith.constant dense<0.000000e+00> : vector<1x32xf32>
    %175 = tpu.matmul %173, %89, %cst_101 {dimension_numbers = #tpu.dot_dimension_numbers<[1], [0], [0], [1], [0, 0, 1, 1], [], []>} : vector<1x32xf32>, vector<32x32xf32>, vector<1x32xf32> -> vector<1x32xf32>
    %cst_102 = arith.constant dense<0.000000e+00> : vector<1x32xf32>
    %176 = tpu.matmul %173, %90, %cst_102 {dimension_numbers = #tpu.dot_dimension_numbers<[1], [0], [0], [1], [0, 0, 1, 1], [], []>} : vector<1x32xf32>, vector<32x32xf32>, vector<1x32xf32> -> vector<1x32xf32>
    %177 = arith.addf %176, %91 : vector<1x32xf32>
    %178 = vector.extract_strided_slice %77 {offsets = [3, 0], sizes = [1, 32], strides = [1, 1]} : vector<8x32xf32> to vector<1x32xf32>
    %179 = arith.addf %178, %174 : vector<1x32xf32>
    %180 = arith.negf %179 : vector<1x32xf32>
    %181 = math.exp %180 : vector<1x32xf32>
    %cst_103 = arith.constant 1.000000e+00 : f32
    %182 = vector.broadcast %cst_103 : f32 to vector<1x32xf32>
    %183 = arith.addf %182, %181 : vector<1x32xf32>
    %184 = arith.divf %182, %183 : vector<1x32xf32>
    %185 = vector.extract_strided_slice %82 {offsets = [3, 0], sizes = [1, 32], strides = [1, 1]} : vector<8x32xf32> to vector<1x32xf32>
    %186 = arith.addf %185, %175 : vector<1x32xf32>
    %187 = arith.negf %186 : vector<1x32xf32>
    %188 = math.exp %187 : vector<1x32xf32>
    %cst_104 = arith.constant 1.000000e+00 : f32
    %189 = vector.broadcast %cst_104 : f32 to vector<1x32xf32>
    %190 = arith.addf %189, %188 : vector<1x32xf32>
    %191 = arith.divf %189, %190 : vector<1x32xf32>
    %192 = vector.extract_strided_slice %87 {offsets = [3, 0], sizes = [1, 32], strides = [1, 1]} : vector<8x32xf32> to vector<1x32xf32>
    %193 = arith.mulf %184, %177 : vector<1x32xf32>
    %194 = arith.addf %192, %193 : vector<1x32xf32>
    %195 = math.tanh %194 : vector<1x32xf32>
    %cst_105 = arith.constant 1.000000e+00 : f32
    %196 = vector.broadcast %cst_105 : f32 to vector<1x32xf32>
    %197 = arith.subf %196, %191 : vector<1x32xf32>
    %198 = arith.mulf %197, %195 : vector<1x32xf32>
    %199 = arith.mulf %191, %173 : vector<1x32xf32>
    %200 = arith.addf %198, %199 : vector<1x32xf32>
    %cst_106 = arith.constant dense<0.000000e+00> : vector<1x32xf32>
    %201 = tpu.matmul %200, %88, %cst_106 {dimension_numbers = #tpu.dot_dimension_numbers<[1], [0], [0], [1], [0, 0, 1, 1], [], []>} : vector<1x32xf32>, vector<32x32xf32>, vector<1x32xf32> -> vector<1x32xf32>
    %cst_107 = arith.constant dense<0.000000e+00> : vector<1x32xf32>
    %202 = tpu.matmul %200, %89, %cst_107 {dimension_numbers = #tpu.dot_dimension_numbers<[1], [0], [0], [1], [0, 0, 1, 1], [], []>} : vector<1x32xf32>, vector<32x32xf32>, vector<1x32xf32> -> vector<1x32xf32>
    %cst_108 = arith.constant dense<0.000000e+00> : vector<1x32xf32>
    %203 = tpu.matmul %200, %90, %cst_108 {dimension_numbers = #tpu.dot_dimension_numbers<[1], [0], [0], [1], [0, 0, 1, 1], [], []>} : vector<1x32xf32>, vector<32x32xf32>, vector<1x32xf32> -> vector<1x32xf32>
    %204 = arith.addf %203, %91 : vector<1x32xf32>
    %205 = vector.extract_strided_slice %77 {offsets = [4, 0], sizes = [1, 32], strides = [1, 1]} : vector<8x32xf32> to vector<1x32xf32>
    %206 = arith.addf %205, %201 : vector<1x32xf32>
    %207 = arith.negf %206 : vector<1x32xf32>
    %208 = math.exp %207 : vector<1x32xf32>
    %cst_109 = arith.constant 1.000000e+00 : f32
    %209 = vector.broadcast %cst_109 : f32 to vector<1x32xf32>
    %210 = arith.addf %209, %208 : vector<1x32xf32>
    %211 = arith.divf %209, %210 : vector<1x32xf32>
    %212 = vector.extract_strided_slice %82 {offsets = [4, 0], sizes = [1, 32], strides = [1, 1]} : vector<8x32xf32> to vector<1x32xf32>
    %213 = arith.addf %212, %202 : vector<1x32xf32>
    %214 = arith.negf %213 : vector<1x32xf32>
    %215 = math.exp %214 : vector<1x32xf32>
    %cst_110 = arith.constant 1.000000e+00 : f32
    %216 = vector.broadcast %cst_110 : f32 to vector<1x32xf32>
    %217 = arith.addf %216, %215 : vector<1x32xf32>
    %218 = arith.divf %216, %217 : vector<1x32xf32>
    %219 = vector.extract_strided_slice %87 {offsets = [4, 0], sizes = [1, 32], strides = [1, 1]} : vector<8x32xf32> to vector<1x32xf32>
    %220 = arith.mulf %211, %204 : vector<1x32xf32>
    %221 = arith.addf %219, %220 : vector<1x32xf32>
    %222 = math.tanh %221 : vector<1x32xf32>
    %cst_111 = arith.constant 1.000000e+00 : f32
    %223 = vector.broadcast %cst_111 : f32 to vector<1x32xf32>
    %224 = arith.subf %223, %218 : vector<1x32xf32>
    %225 = arith.mulf %224, %222 : vector<1x32xf32>
    %226 = arith.mulf %218, %200 : vector<1x32xf32>
    %227 = arith.addf %225, %226 : vector<1x32xf32>
    %cst_112 = arith.constant dense<0.000000e+00> : vector<1x32xf32>
    %228 = tpu.matmul %227, %88, %cst_112 {dimension_numbers = #tpu.dot_dimension_numbers<[1], [0], [0], [1], [0, 0, 1, 1], [], []>} : vector<1x32xf32>, vector<32x32xf32>, vector<1x32xf32> -> vector<1x32xf32>
    %cst_113 = arith.constant dense<0.000000e+00> : vector<1x32xf32>
    %229 = tpu.matmul %227, %89, %cst_113 {dimension_numbers = #tpu.dot_dimension_numbers<[1], [0], [0], [1], [0, 0, 1, 1], [], []>} : vector<1x32xf32>, vector<32x32xf32>, vector<1x32xf32> -> vector<1x32xf32>
    %cst_114 = arith.constant dense<0.000000e+00> : vector<1x32xf32>
    %230 = tpu.matmul %227, %90, %cst_114 {dimension_numbers = #tpu.dot_dimension_numbers<[1], [0], [0], [1], [0, 0, 1, 1], [], []>} : vector<1x32xf32>, vector<32x32xf32>, vector<1x32xf32> -> vector<1x32xf32>
    %231 = arith.addf %230, %91 : vector<1x32xf32>
    %232 = vector.extract_strided_slice %77 {offsets = [5, 0], sizes = [1, 32], strides = [1, 1]} : vector<8x32xf32> to vector<1x32xf32>
    %233 = arith.addf %232, %228 : vector<1x32xf32>
    %234 = arith.negf %233 : vector<1x32xf32>
    %235 = math.exp %234 : vector<1x32xf32>
    %cst_115 = arith.constant 1.000000e+00 : f32
    %236 = vector.broadcast %cst_115 : f32 to vector<1x32xf32>
    %237 = arith.addf %236, %235 : vector<1x32xf32>
    %238 = arith.divf %236, %237 : vector<1x32xf32>
    %239 = vector.extract_strided_slice %82 {offsets = [5, 0], sizes = [1, 32], strides = [1, 1]} : vector<8x32xf32> to vector<1x32xf32>
    %240 = arith.addf %239, %229 : vector<1x32xf32>
    %241 = arith.negf %240 : vector<1x32xf32>
    %242 = math.exp %241 : vector<1x32xf32>
    %cst_116 = arith.constant 1.000000e+00 : f32
    %243 = vector.broadcast %cst_116 : f32 to vector<1x32xf32>
    %244 = arith.addf %243, %242 : vector<1x32xf32>
    %245 = arith.divf %243, %244 : vector<1x32xf32>
    %246 = vector.extract_strided_slice %87 {offsets = [5, 0], sizes = [1, 32], strides = [1, 1]} : vector<8x32xf32> to vector<1x32xf32>
    %247 = arith.mulf %238, %231 : vector<1x32xf32>
    %248 = arith.addf %246, %247 : vector<1x32xf32>
    %249 = math.tanh %248 : vector<1x32xf32>
    %cst_117 = arith.constant 1.000000e+00 : f32
    %250 = vector.broadcast %cst_117 : f32 to vector<1x32xf32>
    %251 = arith.subf %250, %245 : vector<1x32xf32>
    %252 = arith.mulf %251, %249 : vector<1x32xf32>
    %253 = arith.mulf %245, %227 : vector<1x32xf32>
    %254 = arith.addf %252, %253 : vector<1x32xf32>
    %cst_118 = arith.constant dense<0.000000e+00> : vector<1x32xf32>
    %255 = tpu.matmul %254, %88, %cst_118 {dimension_numbers = #tpu.dot_dimension_numbers<[1], [0], [0], [1], [0, 0, 1, 1], [], []>} : vector<1x32xf32>, vector<32x32xf32>, vector<1x32xf32> -> vector<1x32xf32>
    %cst_119 = arith.constant dense<0.000000e+00> : vector<1x32xf32>
    %256 = tpu.matmul %254, %89, %cst_119 {dimension_numbers = #tpu.dot_dimension_numbers<[1], [0], [0], [1], [0, 0, 1, 1], [], []>} : vector<1x32xf32>, vector<32x32xf32>, vector<1x32xf32> -> vector<1x32xf32>
    %cst_120 = arith.constant dense<0.000000e+00> : vector<1x32xf32>
    %257 = tpu.matmul %254, %90, %cst_120 {dimension_numbers = #tpu.dot_dimension_numbers<[1], [0], [0], [1], [0, 0, 1, 1], [], []>} : vector<1x32xf32>, vector<32x32xf32>, vector<1x32xf32> -> vector<1x32xf32>
    %258 = arith.addf %257, %91 : vector<1x32xf32>
    %259 = vector.extract_strided_slice %77 {offsets = [6, 0], sizes = [1, 32], strides = [1, 1]} : vector<8x32xf32> to vector<1x32xf32>
    %260 = arith.addf %259, %255 : vector<1x32xf32>
    %261 = arith.negf %260 : vector<1x32xf32>
    %262 = math.exp %261 : vector<1x32xf32>
    %cst_121 = arith.constant 1.000000e+00 : f32
    %263 = vector.broadcast %cst_121 : f32 to vector<1x32xf32>
    %264 = arith.addf %263, %262 : vector<1x32xf32>
    %265 = arith.divf %263, %264 : vector<1x32xf32>
    %266 = vector.extract_strided_slice %82 {offsets = [6, 0], sizes = [1, 32], strides = [1, 1]} : vector<8x32xf32> to vector<1x32xf32>
    %267 = arith.addf %266, %256 : vector<1x32xf32>
    %268 = arith.negf %267 : vector<1x32xf32>
    %269 = math.exp %268 : vector<1x32xf32>
    %cst_122 = arith.constant 1.000000e+00 : f32
    %270 = vector.broadcast %cst_122 : f32 to vector<1x32xf32>
    %271 = arith.addf %270, %269 : vector<1x32xf32>
    %272 = arith.divf %270, %271 : vector<1x32xf32>
    %273 = vector.extract_strided_slice %87 {offsets = [6, 0], sizes = [1, 32], strides = [1, 1]} : vector<8x32xf32> to vector<1x32xf32>
    %274 = arith.mulf %265, %258 : vector<1x32xf32>
    %275 = arith.addf %273, %274 : vector<1x32xf32>
    %276 = math.tanh %275 : vector<1x32xf32>
    %cst_123 = arith.constant 1.000000e+00 : f32
    %277 = vector.broadcast %cst_123 : f32 to vector<1x32xf32>
    %278 = arith.subf %277, %272 : vector<1x32xf32>
    %279 = arith.mulf %278, %276 : vector<1x32xf32>
    %280 = arith.mulf %272, %254 : vector<1x32xf32>
    %281 = arith.addf %279, %280 : vector<1x32xf32>
    %cst_124 = arith.constant dense<0.000000e+00> : vector<1x32xf32>
    %282 = tpu.matmul %281, %88, %cst_124 {dimension_numbers = #tpu.dot_dimension_numbers<[1], [0], [0], [1], [0, 0, 1, 1], [], []>} : vector<1x32xf32>, vector<32x32xf32>, vector<1x32xf32> -> vector<1x32xf32>
    %cst_125 = arith.constant dense<0.000000e+00> : vector<1x32xf32>
    %283 = tpu.matmul %281, %89, %cst_125 {dimension_numbers = #tpu.dot_dimension_numbers<[1], [0], [0], [1], [0, 0, 1, 1], [], []>} : vector<1x32xf32>, vector<32x32xf32>, vector<1x32xf32> -> vector<1x32xf32>
    %cst_126 = arith.constant dense<0.000000e+00> : vector<1x32xf32>
    %284 = tpu.matmul %281, %90, %cst_126 {dimension_numbers = #tpu.dot_dimension_numbers<[1], [0], [0], [1], [0, 0, 1, 1], [], []>} : vector<1x32xf32>, vector<32x32xf32>, vector<1x32xf32> -> vector<1x32xf32>
    %285 = arith.addf %284, %91 : vector<1x32xf32>
    %286 = vector.extract_strided_slice %77 {offsets = [7, 0], sizes = [1, 32], strides = [1, 1]} : vector<8x32xf32> to vector<1x32xf32>
    %287 = arith.addf %286, %282 : vector<1x32xf32>
    %288 = arith.negf %287 : vector<1x32xf32>
    %289 = math.exp %288 : vector<1x32xf32>
    %cst_127 = arith.constant 1.000000e+00 : f32
    %290 = vector.broadcast %cst_127 : f32 to vector<1x32xf32>
    %291 = arith.addf %290, %289 : vector<1x32xf32>
    %292 = arith.divf %290, %291 : vector<1x32xf32>
    %293 = vector.extract_strided_slice %82 {offsets = [7, 0], sizes = [1, 32], strides = [1, 1]} : vector<8x32xf32> to vector<1x32xf32>
    %294 = arith.addf %293, %283 : vector<1x32xf32>
    %295 = arith.negf %294 : vector<1x32xf32>
    %296 = math.exp %295 : vector<1x32xf32>
    %cst_128 = arith.constant 1.000000e+00 : f32
    %297 = vector.broadcast %cst_128 : f32 to vector<1x32xf32>
    %298 = arith.addf %297, %296 : vector<1x32xf32>
    %299 = arith.divf %297, %298 : vector<1x32xf32>
    %300 = vector.extract_strided_slice %87 {offsets = [7, 0], sizes = [1, 32], strides = [1, 1]} : vector<8x32xf32> to vector<1x32xf32>
    %301 = arith.mulf %292, %285 : vector<1x32xf32>
    %302 = arith.addf %300, %301 : vector<1x32xf32>
    %303 = math.tanh %302 : vector<1x32xf32>
    %cst_129 = arith.constant 1.000000e+00 : f32
    %304 = vector.broadcast %cst_129 : f32 to vector<1x32xf32>
    %305 = arith.subf %304, %299 : vector<1x32xf32>
    %306 = arith.mulf %305, %303 : vector<1x32xf32>
    %307 = arith.mulf %299, %281 : vector<1x32xf32>
    %308 = arith.addf %306, %307 : vector<1x32xf32>
    %309 = tpu.concatenate %119, %146, %173, %200, %227, %254, %281, %308 in 0 : vector<1x32xf32>, vector<1x32xf32>, vector<1x32xf32>, vector<1x32xf32>, vector<1x32xf32>, vector<1x32xf32>, vector<1x32xf32>, vector<1x32xf32> -> vector<8x32xf32>
    %c0_130 = arith.constant 0 : index
    %c0_131 = arith.constant 0 : index
    %310 = vector.load %arg14[%c0_130, %c0_131] : memref<8x32xf32, #tpu.memory_space<vmem>>, vector<8x32xf32>
    tpu.vector_store %arg14[%c0_130, %c0_131], %309 {strides = array<i32>} : memref<8x32xf32, #tpu.memory_space<vmem>>, vector<8x32xf32>,
    %c0_132 = arith.constant 0 : index
    %c0_133 = arith.constant 0 : index
    %311 = vector.load %arg15[%c0_132, %c0_133] : memref<1x32xf32, #tpu.memory_space<vmem>>, vector<1x32xf32>
    tpu.vector_store %arg15[%c0_132, %c0_133], %308 {strides = array<i32>} : memref<1x32xf32, #tpu.memory_space<vmem>>, vector<1x32xf32>,
    return
  }
  func.func @transform_1(%arg0: i32, %arg1: memref<8xi32, #tpu.memory_space<smem>>) -> (i32, i32) {
    %c0_i32 = arith.constant 0 : i32
    %c0_i32_0 = arith.constant 0 : i32
    %c0_i32_1 = arith.constant 0 : i32
    return %c0_i32, %c0_i32_0 : i32, i32
  }
  func.func @transform_2(%arg0: i32, %arg1: memref<8xi32, #tpu.memory_space<smem>>) -> (i32, i32) {
    %c0_i32 = arith.constant 0 : i32
    %c0_i32_0 = arith.constant 0 : i32
    %c0_i32_1 = arith.constant 0 : i32
    return %c0_i32, %c0_i32_0 : i32, i32
  }
  func.func @transform_3(%arg0: i32, %arg1: memref<8xi32, #tpu.memory_space<smem>>) -> (i32, i32) {
    %c0_i32 = arith.constant 0 : i32
    %c0_i32_0 = arith.constant 0 : i32
    %c0_i32_1 = arith.constant 0 : i32
    return %c0_i32, %c0_i32_0 : i32, i32
  }
  func.func @transform_4(%arg0: i32, %arg1: memref<8xi32, #tpu.memory_space<smem>>) -> (i32, i32) {
    %c0_i32 = arith.constant 0 : i32
    %c0_i32_0 = arith.constant 0 : i32
    %c0_i32_1 = arith.constant 0 : i32
    return %c0_i32, %c0_i32_0 : i32, i32
  }
  func.func @transform_5(%arg0: i32, %arg1: memref<8xi32, #tpu.memory_space<smem>>) -> (i32, i32) {
    %c0_i32 = arith.constant 0 : i32
    %c0_i32_0 = arith.constant 0 : i32
    %c0_i32_1 = arith.constant 0 : i32
    return %c0_i32, %c0_i32_0 : i32, i32
  }
  func.func @transform_6(%arg0: i32, %arg1: memref<8xi32, #tpu.memory_space<smem>>) -> (i32, i32) {
    %c0_i32 = arith.constant 0 : i32
    %c0_i32_0 = arith.constant 0 : i32
    %c0_i32_1 = arith.constant 0 : i32
    return %c0_i32, %c0_i32_0 : i32, i32
  }
  func.func @transform_7(%arg0: i32, %arg1: memref<8xi32, #tpu.memory_space<smem>>) -> (i32, i32) {
    %c0_i32 = arith.constant 0 : i32
    %c0_i32_0 = arith.constant 0 : i32
    %c0_i32_1 = arith.constant 0 : i32
    return %c0_i32, %c0_i32_0 : i32, i32
  }
  func.func @transform_8(%arg0: i32, %arg1: memref<8xi32, #tpu.memory_space<smem>>) -> (i32, i32) {
    %c0_i32 = arith.constant 0 : i32
    %c0_i32_0 = arith.constant 0 : i32
    %c0_i32_1 = arith.constant 0 : i32
    return %c0_i32, %c0_i32_0 : i32, i32
  }
  func.func @transform_9(%arg0: i32, %arg1: memref<8xi32, #tpu.memory_space<smem>>) -> (i32, i32) {
    %c0_i32 = arith.constant 0 : i32
    %c0_i32_0 = arith.constant 0 : i32
    %c0_i32_1 = arith.constant 0 : i32
    return %c0_i32, %c0_i32_0 : i32, i32
  }
  func.func @transform_10(%arg0: i32, %arg1: memref<8xi32, #tpu.memory_space<smem>>) -> (i32, i32) {
    %c0_i32 = arith.constant 0 : i32
    %c0_i32_0 = arith.constant 0 : i32
    %c0_i32_1 = arith.constant 0 : i32
    return %c0_i32, %c0_i32_0 : i32, i32
  }
  func.func @transform_11(%arg0: i32, %arg1: memref<8xi32, #tpu.memory_space<smem>>) -> (i32, i32) {
    %c0_i32 = arith.constant 0 : i32
    %c0_i32_0 = arith.constant 0 : i32
    %c0_i32_1 = arith.constant 0 : i32
    return %c0_i32, %c0_i32_0 : i32, i32
  }
  func.func @transform_12(%arg0: i32, %arg1: memref<8xi32, #tpu.memory_space<smem>>) -> (i32, i32) {
    %c0_i32 = arith.constant 0 : i32
    %c0_i32_0 = arith.constant 0 : i32
    %c0_i32_1 = arith.constant 0 : i32
    return %c0_i32, %c0_i32_0 : i32, i32
  }
  func.func @transform_13(%arg0: i32, %arg1: memref<8xi32, #tpu.memory_space<smem>>) -> (i32, i32) {
    %c0_i32 = arith.constant 0 : i32
    %c0_i32_0 = arith.constant 0 : i32
    %c0_i32_1 = arith.constant 0 : i32
    return %c0_i32, %c0_i32_0 : i32, i32
  }
}

</mosaic_0001>

<llo_original>
// kernel: tpu_custom_call.1
$region0: #{tpu_custom_call.1}
  #allocation0 [shape = 'u32[]', space=smem, size = 0x4, offset = 0x4, fixed_abs, tag = 'smem constant byte address 0x4 - core index']
  #allocation1 [shape = 'u32[144,128]{1,0:T(1,128)}', space=vmem, size = 0x12000, scoped, tag = 'internal scratch']
  #allocation2 [shape = 'f32[8,32]{1,0:T(8,128)}', space=vmem, size = 0x1000, scoped, tag = 'scratch operand']
  #allocation3 [shape = 's32[8]{0}', space=sflag, size = 0x20, scoped, tag = 'scratch operand']
  #allocation4 [shape = 's32[1]{0}', space=sflag, size = 0x4, scoped, tag = 'scoped memory for tpu_custom_call.1']
  #allocation5 [shape = 'u8[512]{0}', space=smem, size = 0x200, scoped, tag = 'prefetched SMEM operand 0']
  #allocation20 [shape = 's32[]', space=sflag, size = 0x4, offset = 0, fixed_abs, tag = 'sflag constant byte address 0x0 - dummy sync flag']
  #allocation21 [shape = 's32[]', space=sflag, size = 0x4, offset = 0, fixed_abs, tag = 'sflag constant byte address 0x0 - dummy sync flag']
  #allocation22 [shape = 'u32[]', space=smem, size = 0x4, offset = 0x44, fixed_abs, tag = 'smem constant byte address 0x44 - assertion arg 0']
  #allocation23 [shape = 'u32[]', space=smem, size = 0x4, offset = 0x48, fixed_abs, tag = 'smem constant byte address 0x48 - assertion arg 1']
  #allocation24 [shape = 's32[]', space=sflag, size = 0x4, offset = 0, fixed_abs, tag = 'sflag constant byte address 0x0 - dummy sync flag']
  #allocation25 [shape = 's32[]', space=sflag, size = 0x4, offset = 0, fixed_abs, tag = 'sflag constant byte address 0x0 - dummy sync flag']
  #allocation26 [shape = 's32[]', space=sflag, size = 0x4, offset = 0, fixed_abs, tag = 'sflag constant byte address 0x0 - dummy sync flag']
  #allocation27 [shape = 's32[]', space=sflag, size = 0x4, offset = 0, fixed_abs, tag = 'sflag constant byte address 0x0 - dummy sync flag']
  #allocation28 [shape = 's32[]', space=sflag, size = 0x4, offset = 0, fixed_abs, tag = 'sflag constant byte address 0x0 - dummy sync flag']
  #allocation29 [shape = 's32[]', space=sflag, size = 0x4, offset = 0, fixed_abs, tag = 'sflag constant byte address 0x0 - dummy sync flag']
  #allocation30 [shape = 's32[]', space=sflag, size = 0x4, offset = 0, fixed_abs, tag = 'sflag constant byte address 0x0 - dummy sync flag']
  #allocation31 [shape = 's32[]', space=sflag, size = 0x4, offset = 0, fixed_abs, tag = 'sflag constant byte address 0x0 - dummy sync flag']
  #allocation32 [shape = 's32[]', space=sflag, size = 0x4, offset = 0, fixed_abs, tag = 'sflag constant byte address 0x0 - dummy sync flag']
  #allocation33 [shape = 's32[]', space=sflag, size = 0x4, offset = 0, fixed_abs, tag = 'sflag constant byte address 0x0 - dummy sync flag']
  #allocation34 [shape = 's32[]', space=sflag, size = 0x4, offset = 0, fixed_abs, tag = 'sflag constant byte address 0x0 - dummy sync flag']
  #allocation35 [shape = 's32[]', space=sflag, size = 0x4, offset = 0, fixed_abs, tag = 'sflag constant byte address 0x0 - dummy sync flag']
  #allocation36 [shape = 's32[]', space=sflag, size = 0x4, offset = 0, fixed_abs, tag = 'sflag constant byte address 0x0 - dummy sync flag']
  #allocation37 [shape = 's32[]', space=sflag, size = 0x4, offset = 0, fixed_abs, tag = 'sflag constant byte address 0x0 - dummy sync flag']
  %s0 = inlined_call_operand.hbm [shape: s32[8], index: 0, kind: input, shape index: {}]
  %s1 = inlined_call_operand.hbm [shape: f32[20,32], index: 1, kind: input, shape index: {}]
  %s2 = inlined_call_operand.hbm [shape: f32[32,32], index: 2, kind: input, shape index: {}]
  %s3 = inlined_call_operand.hbm [shape: f32[32,32], index: 3, kind: input, shape index: {}]
  %s4 = inlined_call_operand.hbm [shape: f32[32,32], index: 4, kind: input, shape index: {}]
  %s5 = inlined_call_operand.hbm [shape: f32[32,32], index: 5, kind: input, shape index: {}]
  %s6 = inlined_call_operand.hbm [shape: f32[32,32], index: 6, kind: input, shape index: {}]
  %s7 = inlined_call_operand.hbm [shape: f32[32,32], index: 7, kind: input, shape index: {}]
  %s8 = inlined_call_operand.vmem [shape: f32[1,32], index: 8, kind: input, shape index: {}]
  %s9 = inlined_call_operand.vmem [shape: f32[1,32], index: 9, kind: input, shape index: {}]
  %s10 = inlined_call_operand.vmem [shape: f32[1,32], index: 10, kind: input, shape index: {}]
  %s11 = inlined_call_operand.vmem [shape: f32[1,32], index: 11, kind: input, shape index: {}]
  %s12 = inlined_call_operand.vmem [shape: f32[1,32], index: 12, kind: input, shape index: {}]
  %s13 = inlined_call_operand.hbm [shape: f32[8,32], index: 13, kind: output, shape index: {0}]
  %s14 = inlined_call_operand.hbm [shape: f32[1,32], index: 14, kind: output, shape index: {1}]
  %15 = xla_tuple %s13, %s14
  %s16 = sld [smem:[#allocation0]]
  $region118: #{tpu_custom_call.1} parent=0
    _
  %s18 = ssub.s32 1, %s16
  %s19 = scalar_select 0, %s18, %s16
  %21 = dma.hbm_to_smem %s0, 16, [#allocation5], [#allocation4]
  %22 = dma.done [#allocation4], 16
  %23 = sfence
  $region1: #{tpu_custom_call.1} parent=0
    #allocation6 [shape = 'u8[16384]{0}', space=vmem, size = 0x4000, scoped, tag = 'input window, operand 2, single buffered']
    #allocation7 [shape = 's32[1]{0}', space=sflag, size = 0x4, scoped, tag = 'scoped memory for tpu_custom_call.1']
    #allocation8 [shape = 's32[1]{0}', space=sflag, size = 0x4, scoped, tag = 'scoped memory for tpu_custom_call.1']
    #allocation9 [shape = 'u8[16384]{0}', space=vmem, size = 0x4000, scoped, tag = 'input window, operand 3, single buffered']
    #allocation10 [shape = 's32[1]{0}', space=sflag, size = 0x4, scoped, tag = 'scoped memory for tpu_custom_call.1']
    #allocation11 [shape = 'u8[16384]{0}', space=vmem, size = 0x4000, scoped, tag = 'input window, operand 4, single buffered']
    #allocation12 [shape = 'u8[16384]{0}', space=vmem, size = 0x4000, scoped, tag = 'input window, operand 5, single buffered']
    #allocation13 [shape = 's32[1]{0}', space=sflag, size = 0x4, scoped, tag = 'scoped memory for tpu_custom_call.1']
    #allocation14 [shape = 'u8[16384]{0}', space=vmem, size = 0x4000, scoped, tag = 'input window, operand 6, single buffered']
    #allocation15 [shape = 'u8[16384]{0}', space=vmem, size = 0x4000, scoped, tag = 'input window, operand 7, single buffered']
    #allocation16 [shape = 's32[1]{0}', space=sflag, size = 0x4, scoped, tag = 'scoped memory for tpu_custom_call.1']
    #allocation17 [shape = 'u8[4096]{0}', space=vmem, size = 0x1000, scoped, tag = 'output window, operand 0, single buffered']
    #allocation18 [shape = 'u8[512]{0}', space=vmem, size = 0x400, scoped, tag = 'output window, operand 1, single buffered']
    #allocation19 [shape = 's32[1]{0}', space=sflag, size = 0x4, scoped, tag = 'scoped memory for tpu_custom_call.1']
    %24 = vsyncpa [#allocation7], 0
    %25 = vsyncpa [#allocation10], 0
    %26 = vsyncpa [#allocation13], 0
    %27 = vsyncpa [#allocation16], 0
    %28 = vsyncpa [#allocation8], 0
    %29 = vsyncpa [#allocation19], 0
    // Predicated region
    $region2: #{tpu_custom_call.1} parent=1 // pred_check
      _
    $region3: #{tpu_custom_call.1} parent=1 // pred_check_branch
      %31 = sbr.rel (0) target = $region5
    $region4: #{tpu_custom_call.1} parent=1 // pred_region
      %s33 = ssub.s32 512, 512
      %34 = vsyncadd [#allocation7], %s33
      %s35 = sshll.u32 [#allocation6], 4
      %s36 = int_to_ptr.vmem [resolvable:$true] %s35
      %41 = dma.hbm_to_vmem [thread:$0]  %s2, 512, %s36, [#allocation7], 128, 128, 8
    $region5: #{tpu_custom_call.1} parent=1 // pred_fallthru
      _
    // Predicated region
    $region6: #{tpu_custom_call.1} parent=1 // pred_check
      _
    $region7: #{tpu_custom_call.1} parent=1 // pred_check_branch
      %43 = sbr.rel (0) target = $region9
    $region8: #{tpu_custom_call.1} parent=1 // pred_region
      %s45 = ssub.s32 512, 512
      %46 = vsyncadd [#allocation10], %s45
      %s47 = sshll.u32 [#allocation9], 4
      %s48 = int_to_ptr.vmem [resolvable:$true] %s47
      %53 = dma.hbm_to_vmem [thread:$0]  %s3, 512, %s48, [#allocation10], 128, 128, 8
    $region9: #{tpu_custom_call.1} parent=1 // pred_fallthru
      _
    // Predicated region
    $region10: #{tpu_custom_call.1} parent=1 // pred_check
      _
    $region11: #{tpu_custom_call.1} parent=1 // pred_check_branch
      %55 = sbr.rel (0) target = $region13
    $region12: #{tpu_custom_call.1} parent=1 // pred_region
      %s57 = ssub.s32 512, 512
      %58 = vsyncadd [#allocation10], %s57
      %s59 = sshll.u32 [#allocation11], 4
      %s60 = int_to_ptr.vmem [resolvable:$true] %s59
      %65 = dma.hbm_to_vmem [thread:$0]  %s4, 512, %s60, [#allocation10], 128, 128, 8
    $region13: #{tpu_custom_call.1} parent=1 // pred_fallthru
      _
    // Predicated region
    $region14: #{tpu_custom_call.1} parent=1 // pred_check
      _
    $region15: #{tpu_custom_call.1} parent=1 // pred_check_branch
      %67 = sbr.rel (0) target = $region17
    $region16: #{tpu_custom_call.1} parent=1 // pred_region
      %s69 = ssub.s32 512, 512
      %70 = vsyncadd [#allocation13], %s69
      %s71 = sshll.u32 [#allocation12], 4
      %s72 = int_to_ptr.vmem [resolvable:$true] %s71
      %77 = dma.hbm_to_vmem [thread:$0]  %s5, 512, %s72, [#allocation13], 128, 128, 8
    $region17: #{tpu_custom_call.1} parent=1 // pred_fallthru
      _
    // Predicated region
    $region18: #{tpu_custom_call.1} parent=1 // pred_check
      _
    $region19: #{tpu_custom_call.1} parent=1 // pred_check_branch
      %79 = sbr.rel (0) target = $region21
    $region20: #{tpu_custom_call.1} parent=1 // pred_region
      %s81 = ssub.s32 512, 512
      %82 = vsyncadd [#allocation13], %s81
      %s83 = sshll.u32 [#allocation14], 4
      %s84 = int_to_ptr.vmem [resolvable:$true] %s83
      %89 = dma.hbm_to_vmem [thread:$0]  %s6, 512, %s84, [#allocation13], 128, 128, 8
    $region21: #{tpu_custom_call.1} parent=1 // pred_fallthru
      _
    // Predicated region
    $region22: #{tpu_custom_call.1} parent=1 // pred_check
      _
    $region23: #{tpu_custom_call.1} parent=1 // pred_check_branch
      %91 = sbr.rel (0) target = $region25
    $region24: #{tpu_custom_call.1} parent=1 // pred_region
      %s93 = ssub.s32 512, 512
      %94 = vsyncadd [#allocation16], %s93
      %s95 = sshll.u32 [#allocation15], 4
      %s96 = int_to_ptr.vmem [resolvable:$true] %s95
      %101 = dma.hbm_to_vmem [thread:$0]  %s7, 512, %s96, [#allocation16], 128, 128, 8
    $region25: #{tpu_custom_call.1} parent=1 // pred_fallthru
      _
    // Predicated region
    $region26: #{tpu_custom_call.1} parent=1 // pred_check
      _
    $region27: #{tpu_custom_call.1} parent=1 // pred_check_branch
      %103 = sbr.rel (0) target = $region29
    $region28: #{tpu_custom_call.1} parent=1 // pred_region
      _
    $region29: #{tpu_custom_call.1} parent=1 // pred_fallthru
      _
    // Predicated region
    $region30: #{tpu_custom_call.1} parent=1 // pred_check
      _
    $region31: #{tpu_custom_call.1} parent=1 // pred_check_branch
      %105 = sbr.rel (0) target = $region33
    $region32: #{tpu_custom_call.1} parent=1 // pred_region
      _
    $region33: #{tpu_custom_call.1} parent=1 // pred_fallthru
      _
    // Predicated region
    $region34: #{tpu_custom_call.1} parent=1 // pred_check
      _
    $region35: #{tpu_custom_call.1} parent=1 // pred_check_branch
      %107 = sbr.rel (0) target = $region37
    $region36: #{tpu_custom_call.1} parent=1 // pred_region
      _
    $region37: #{tpu_custom_call.1} parent=1 // pred_fallthru
      _
    // Predicated region
    $region38: #{tpu_custom_call.1} parent=1 // pred_check
      _
    $region39: #{tpu_custom_call.1} parent=1 // pred_check_branch
      %109 = sbr.rel (0) target = $region41
    $region40: #{tpu_custom_call.1} parent=1 // pred_region
      _
    $region41: #{tpu_custom_call.1} parent=1 // pred_fallthru
      _
    // Predicated region
    $region42: #{tpu_custom_call.1} parent=1 // pred_check
      _
    $region43: #{tpu_custom_call.1} parent=1 // pred_check_branch
      %111 = sbr.rel (0) target = $region45
    $region44: #{tpu_custom_call.1} parent=1 // pred_region
      _
    $region45: #{tpu_custom_call.1} parent=1 // pred_fallthru
      _
    // Predicated region
    $region46: #{tpu_custom_call.1} parent=1 // pred_check
      _
    $region47: #{tpu_custom_call.1} parent=1 // pred_check_branch
      %113 = sbr.rel (0) target = $region49
    $region48: #{tpu_custom_call.1} parent=1 // pred_region
      %114 = dma.done [#allocation7], 512
    $region49: #{tpu_custom_call.1} parent=1 // pred_fallthru
      _
    // Predicated region
    $region50: #{tpu_custom_call.1} parent=1 // pred_check
      _
    $region51: #{tpu_custom_call.1} parent=1 // pred_check_branch
      %116 = sbr.rel (0) target = $region53
    $region52: #{tpu_custom_call.1} parent=1 // pred_region
      %117 = dma.done [#allocation10], 512
    $region53: #{tpu_custom_call.1} parent=1 // pred_fallthru
      _
    // Predicated region
    $region54: #{tpu_custom_call.1} parent=1 // pred_check
      _
    $region55: #{tpu_custom_call.1} parent=1 // pred_check_branch
      %119 = sbr.rel (0) target = $region57
    $region56: #{tpu_custom_call.1} parent=1 // pred_region
      %120 = dma.done [#allocation10], 512
    $region57: #{tpu_custom_call.1} parent=1 // pred_fallthru
      _
    // Predicated region
    $region58: #{tpu_custom_call.1} parent=1 // pred_check
      _
    $region59: #{tpu_custom_call.1} parent=1 // pred_check_branch
      %122 = sbr.rel (0) target = $region61
    $region60: #{tpu_custom_call.1} parent=1 // pred_region
      %123 = dma.done [#allocation13], 512
    $region61: #{tpu_custom_call.1} parent=1 // pred_fallthru
      _
    // Predicated region
    $region62: #{tpu_custom_call.1} parent=1 // pred_check
      _
    $region63: #{tpu_custom_call.1} parent=1 // pred_check_branch
      %125 = sbr.rel (0) target = $region65
    $region64: #{tpu_custom_call.1} parent=1 // pred_region
      %126 = dma.done [#allocation13], 512
    $region65: #{tpu_custom_call.1} parent=1 // pred_fallthru
      _
    // Predicated region
    $region66: #{tpu_custom_call.1} parent=1 // pred_check
      _
    $region67: #{tpu_custom_call.1} parent=1 // pred_check_branch
      %128 = sbr.rel (0) target = $region69
    $region68: #{tpu_custom_call.1} parent=1 // pred_region
      %129 = dma.done [#allocation16], 512
    $region69: #{tpu_custom_call.1} parent=1 // pred_fallthru
      _
    %s130 = sld [smem:[#allocation5]]
    %s131 = smul.addr %s130, 16
    %s132 = scalar_lea.hbm %s1, %s131
    // Predicated region
    $region70: #{tpu_custom_call.1} parent=1 // pred_check
      _
    $region71: #{tpu_custom_call.1} parent=1 // pred_check_branch
      %134 = sbr.rel target = $region73
    $region72: #{tpu_custom_call.1} parent=1 // pred_region
      %135 = sst [smem:[#allocation22]] [#allocation21]
      %136 = sst [smem:[#allocation23]] [#allocation20]
    $region73: #{tpu_custom_call.1} parent=1 // pred_fallthru
      _
    %138 = shalt.err (0)
    %s140 = sshll.u32 [#allocation2], 4
    %s141 = int_to_ptr.vmem [resolvable:$true] %s140
    %143 = dma.hbm_to_vmem [thread:$0]  %s132, 16, %s141, [#allocation3]
    %s144 = sld [smem:[#allocation5 + $0x1]]
    %s145 = smul.addr %s144, 16
    %s146 = scalar_lea.hbm %s1, %s145
    %s147 = scalar_lea.vmem [#allocation2], 1
    %s148 = scalar_lea.sflag [#allocation3], 1
    // Predicated region
    $region74: #{tpu_custom_call.1} parent=1 // pred_check
      _
    $region75: #{tpu_custom_call.1} parent=1 // pred_check_branch
      %150 = sbr.rel target = $region77
    $region76: #{tpu_custom_call.1} parent=1 // pred_region
      %151 = sst [smem:[#allocation22]] [#allocation25]
      %152 = sst [smem:[#allocation23]] [#allocation24]
    $region77: #{tpu_custom_call.1} parent=1 // pred_fallthru
      _
    %154 = shalt.err (0)
    %s156 = sshll.u32 %s147, 4
    %s157 = int_to_ptr.vmem [resolvable:$true] %s156
    %159 = dma.hbm_to_vmem [thread:$0]  %s146, 16, %s157, %s148
    %s160 = sld [smem:[#allocation5 + $0x2]]
    %s161 = smul.addr %s160, 16
    %s162 = scalar_lea.hbm %s1, %s161
    %s163 = scalar_lea.vmem [#allocation2], 2
    %s164 = scalar_lea.sflag [#allocation3], 2
    // Predicated region
    $region78: #{tpu_custom_call.1} parent=1 // pred_check
      _
    $region79: #{tpu_custom_call.1} parent=1 // pred_check_branch
      %166 = sbr.rel target = $region81
    $region80: #{tpu_custom_call.1} parent=1 // pred_region
      %167 = sst [smem:[#allocation22]] [#allocation27]
      %168 = sst [smem:[#allocation23]] [#allocation26]
    $region81: #{tpu_custom_call.1} parent=1 // pred_fallthru
      _
    %170 = shalt.err (0)
    %s172 = sshll.u32 %s163, 4
    %s173 = int_to_ptr.vmem [resolvable:$true] %s172
    %175 = dma.hbm_to_vmem [thread:$0]  %s162, 16, %s173, %s164
    %s176 = sld [smem:[#allocation5 + $0x3]]
    %s177 = smul.addr %s176, 16
    %s178 = scalar_lea.hbm %s1, %s177
    %s179 = scalar_lea.vmem [#allocation2], 3
    %s180 = scalar_lea.sflag [#allocation3], 3
    // Predicated region
    $region82: #{tpu_custom_call.1} parent=1 // pred_check
      _
    $region83: #{tpu_custom_call.1} parent=1 // pred_check_branch
      %182 = sbr.rel target = $region85
    $region84: #{tpu_custom_call.1} parent=1 // pred_region
      %183 = sst [smem:[#allocation22]] [#allocation29]
      %184 = sst [smem:[#allocation23]] [#allocation28]
    $region85: #{tpu_custom_call.1} parent=1 // pred_fallthru
      _
    %186 = shalt.err (0)
    %s188 = sshll.u32 %s179, 4
    %s189 = int_to_ptr.vmem [resolvable:$true] %s188
    %191 = dma.hbm_to_vmem [thread:$0]  %s178, 16, %s189, %s180
    %s192 = sld [smem:[#allocation5 + $0x4]]
    %s193 = smul.addr %s192, 16
    %s194 = scalar_lea.hbm %s1, %s193
    %s195 = scalar_lea.vmem [#allocation2], 4
    %s196 = scalar_lea.sflag [#allocation3], 4
    // Predicated region
    $region86: #{tpu_custom_call.1} parent=1 // pred_check
      _
    $region87: #{tpu_custom_call.1} parent=1 // pred_check_branch
      %198 = sbr.rel target = $region89
    $region88: #{tpu_custom_call.1} parent=1 // pred_region
      %199 = sst [smem:[#allocation22]] [#allocation31]
      %200 = sst [smem:[#allocation23]] [#allocation30]
    $region89: #{tpu_custom_call.1} parent=1 // pred_fallthru
      _
    %202 = shalt.err (0)
    %s204 = sshll.u32 %s195, 4
    %s205 = int_to_ptr.vmem [resolvable:$true] %s204
    %207 = dma.hbm_to_vmem [thread:$0]  %s194, 16, %s205, %s196
    %s208 = sld [smem:[#allocation5 + $0x5]]
    %s209 = smul.addr %s208, 16
    %s210 = scalar_lea.hbm %s1, %s209
    %s211 = scalar_lea.vmem [#allocation2], 5
    %s212 = scalar_lea.sflag [#allocation3], 5
    // Predicated region
    $region90: #{tpu_custom_call.1} parent=1 // pred_check
      _
    $region91: #{tpu_custom_call.1} parent=1 // pred_check_branch
      %214 = sbr.rel target = $region93
    $region92: #{tpu_custom_call.1} parent=1 // pred_region
      %215 = sst [smem:[#allocation22]] [#allocation33]
      %216 = sst [smem:[#allocation23]] [#allocation32]
    $region93: #{tpu_custom_call.1} parent=1 // pred_fallthru
      _
    %218 = shalt.err (0)
    %s220 = sshll.u32 %s211, 4
    %s221 = int_to_ptr.vmem [resolvable:$true] %s220
    %223 = dma.hbm_to_vmem [thread:$0]  %s210, 16, %s221, %s212
    %s224 = sld [smem:[#allocation5 + $0x6]]
    %s225 = smul.addr %s224, 16
    %s226 = scalar_lea.hbm %s1, %s225
    %s227 = scalar_lea.vmem [#allocation2], 6
    %s228 = scalar_lea.sflag [#allocation3], 6
    // Predicated region
    $region94: #{tpu_custom_call.1} parent=1 // pred_check
      _
    $region95: #{tpu_custom_call.1} parent=1 // pred_check_branch
      %230 = sbr.rel target = $region97
    $region96: #{tpu_custom_call.1} parent=1 // pred_region
      %231 = sst [smem:[#allocation22]] [#allocation35]
      %232 = sst [smem:[#allocation23]] [#allocation34]
    $region97: #{tpu_custom_call.1} parent=1 // pred_fallthru
      _
    %234 = shalt.err (0)
    %s236 = sshll.u32 %s227, 4
    %s237 = int_to_ptr.vmem [resolvable:$true] %s236
    %239 = dma.hbm_to_vmem [thread:$0]  %s226, 16, %s237, %s228
    %s240 = sld [smem:[#allocation5 + $0x7]]
    %s241 = smul.addr %s240, 16
    %s242 = scalar_lea.hbm %s1, %s241
    %s243 = scalar_lea.vmem [#allocation2], 7
    %s244 = scalar_lea.sflag [#allocation3], 7
    // Predicated region
    $region98: #{tpu_custom_call.1} parent=1 // pred_check
      _
    $region99: #{tpu_custom_call.1} parent=1 // pred_check_branch
      %246 = sbr.rel target = $region101
    $region100: #{tpu_custom_call.1} parent=1 // pred_region
      %247 = sst [smem:[#allocation22]] [#allocation37]
      %248 = sst [smem:[#allocation23]] [#allocation36]
    $region101: #{tpu_custom_call.1} parent=1 // pred_fallthru
      _
    %250 = shalt.err (0)
    %s252 = sshll.u32 %s243, 4
    %s253 = int_to_ptr.vmem [resolvable:$true] %s252
    %255 = dma.hbm_to_vmem [thread:$0]  %s242, 16, %s253, %s244
    %s256 = smul.u32 1, 1
    %s257 = sshll.u32 %s256, 4
    %258 = dma.done [#allocation3], %s257
    %s259 = sshll.u32 %s256, 4
    %260 = dma.done %s148, %s259
    %s261 = sshll.u32 %s256, 4
    %262 = dma.done %s164, %s261
    %s263 = sshll.u32 %s256, 4
    %264 = dma.done %s180, %s263
    %s265 = sshll.u32 %s256, 4
    %266 = dma.done %s196, %s265
    %s267 = sshll.u32 %s256, 4
    %268 = dma.done %s212, %s267
    %s269 = sshll.u32 %s256, 4
    %270 = dma.done %s228, %s269
    %s271 = sshll.u32 %s256, 4
    %272 = dma.done %s244, %s271
    %v273 = vld [vmem:[#allocation2] sm:$0xff]
    %v274 = vld [vmem:[#allocation6] sm:$0xff]
    %v275 = vld [vmem:[#allocation6 + $0x8] sm:$0xff]
    %v276 = vld [vmem:[#allocation6 + $0x10] sm:$0xff]
    %v277 = vld [vmem:[#allocation6 + $0x18] sm:$0xff]
    %v278 = vld [vmem:[%s8] sm:$0x1]
    %v280 = vlaneseq
    %v281 = vshrl.u32 %v280, 7
    %v282 = vsub.s32 0, %v281
    %v283 = vrot.slane %v278, %v282
    %vm285 = vcmask 261120
    %v287 = vsel %vm285, %v273, 0
    %289 = vmatprep.subr.mxu0 0.0
    %290 = vmatpush1.msra.mxu0 %v274
    %291 = vmatprep.subr.mxu0 0.0
    %292 = vmatpush1.msra.mxu0 %v275
    %293 = vmatprep.subr.mxu0 0.0
    %294 = vmatpush1.msra.mxu0 %v276
    %295 = vmatprep.subr.mxu0 0.0
    %296 = vmatpush1.msra.mxu0 %v277
    %297 = vmatprep.subr.mxu0 0.0
    %298 = vmatpush1.msra.mxu0 0.0
    %299 = vmatprep.subr.mxu0 0.0
    %300 = vmatpush1.msra.mxu0 0.0
    %301 = vmatprep.subr.mxu0 0.0
    %302 = vmatpush1.msra.mxu0 0.0
    %303 = vmatprep.subr.mxu0 0.0
    %304 = vmatpush1.msra.mxu0 0.0
    %305 = vmatprep.subr.mxu0 0.0
    %306 = vmatpush1.msra.mxu0 0.0
    %307 = vmatprep.subr.mxu0 0.0
    %308 = vmatpush1.msra.mxu0 0.0
    %309 = vmatprep.subr.mxu0 0.0
    %310 = vmatpush1.msra.mxu0 0.0
    %311 = vmatprep.subr.mxu0 0.0
    %312 = vmatpush1.msra.mxu0 0.0
    %313 = vmatprep.subr.mxu0 0.0
    %314 = vmatpush1.msra.mxu0 0.0
    %315 = vmatprep.subr.mxu0 0.0
    %316 = vmatpush1.msra.mxu0 0.0
    %317 = vmatprep.subr.mxu0 0.0
    %318 = vmatpush1.msra.mxu0 0.0
    %319 = vmatprep.subr.mxu0 0.0
    %320 = vmatpush1.msra.mxu0 0.0
    %321 = vmatprep.subr.mxu0 0.0
    %322 = vmatpush1.msra.mxu0 0.0
    %323 = vmatprep.subr.mxu0 0.0
    %324 = vmatpush1.msra.mxu0 0.0
    %325 = vmatprep.subr.mxu0 0.0
    %326 = vmatpush1.msra.mxu0 0.0
    %327 = vmatprep.subr.mxu0 0.0
    %328 = vmatpush1.msra.mxu0 0.0
    %329 = vmatprep.subr.mxu0 0.0
    %330 = vmatpush1.msra.mxu0 0.0
    %331 = vmatprep.subr.mxu0 0.0
    %332 = vmatpush1.msra.mxu0 0.0
    %333 = vmatprep.subr.mxu0 0.0
    %334 = vmatpush1.msra.mxu0 0.0
    %335 = vmatprep.subr.mxu0 0.0
    %336 = vmatpush1.msra.mxu0 0.0
    %337 = vmatprep.subr.mxu0 0.0
    %338 = vmatpush1.msra.mxu0 0.0
    %339 = vmatprep.subr.mxu0 0.0
    %340 = vmatpush1.msra.mxu0 0.0
    %341 = vmatprep.subr.mxu0 0.0
    %342 = vmatpush1.msra.mxu0 0.0
    %343 = vmatprep.subr.mxu0 0.0
    %344 = vmatpush1.msra.mxu0 0.0
    %345 = vmatprep.subr.mxu0 0.0
    %346 = vmatpush1.msra.mxu0 0.0
    %347 = vmatprep.subr.mxu0 0.0
    %348 = vmatpush1.msra.mxu0 0.0
    %349 = vmatprep.subr.mxu0 0.0
    %350 = vmatpush1.msra.mxu0 0.0
    %351 = vmatprep.subr.mxu0 0.0
    %352 = vmatpush1.msra.mxu0 0.0
    %353 = vmatprep.mubr.f32.mxu0 0.0
    %354 = vmatmul.mubr.f32.gmra.mrb[0].mxu0 %v287
    %v355 = vpop.f32.mrb[0].mxu0
    %v356 = vadd.f32 %v283, %v355
    %v357 = vpop.f32.mrb[0].mxu0
    %358 = vdwg.mxu0
    %v359 = vld [vmem:[#allocation9] sm:$0xff]
    %v360 = vld [vmem:[#allocation9 + $0x8] sm:$0xff]
    %v361 = vld [vmem:[#allocation9 + $0x10] sm:$0xff]
    %v362 = vld [vmem:[#allocation9 + $0x18] sm:$0xff]
    %v363 = vld [vmem:[%s9] sm:$0x1]
    %v365 = vlaneseq
    %v366 = vshrl.u32 %v365, 7
    %v367 = vsub.s32 0, %v366
    %v368 = vrot.slane %v363, %v367
    %370 = vmatprep.subr.mxu0 0.0
    %371 = vmatpush1.msra.mxu0 %v359
    %372 = vmatprep.subr.mxu0 0.0
    %373 = vmatpush1.msra.mxu0 %v360
    %374 = vmatprep.subr.mxu0 0.0
    %375 = vmatpush1.msra.mxu0 %v361
    %376 = vmatprep.subr.mxu0 0.0
    %377 = vmatpush1.msra.mxu0 %v362
    %378 = vmatprep.subr.mxu0 0.0
    %379 = vmatpush1.msra.mxu0 0.0
    %380 = vmatprep.subr.mxu0 0.0
    %381 = vmatpush1.msra.mxu0 0.0
    %382 = vmatprep.subr.mxu0 0.0
    %383 = vmatpush1.msra.mxu0 0.0
    %384 = vmatprep.subr.mxu0 0.0
    %385 = vmatpush1.msra.mxu0 0.0
    %386 = vmatprep.subr.mxu0 0.0
    %387 = vmatpush1.msra.mxu0 0.0
    %388 = vmatprep.subr.mxu0 0.0
    %389 = vmatpush1.msra.mxu0 0.0
    %390 = vmatprep.subr.mxu0 0.0
    %391 = vmatpush1.msra.mxu0 0.0
    %392 = vmatprep.subr.mxu0 0.0
    %393 = vmatpush1.msra.mxu0 0.0
    %394 = vmatprep.subr.mxu0 0.0
    %395 = vmatpush1.msra.mxu0 0.0
    %396 = vmatprep.subr.mxu0 0.0
    %397 = vmatpush1.msra.mxu0 0.0
    %398 = vmatprep.subr.mxu0 0.0
    %399 = vmatpush1.msra.mxu0 0.0
    %400 = vmatprep.subr.mxu0 0.0
    %401 = vmatpush1.msra.mxu0 0.0
    %402 = vmatprep.subr.mxu0 0.0
    %403 = vmatpush1.msra.mxu0 0.0
    %404 = vmatprep.subr.mxu0 0.0
    %405 = vmatpush1.msra.mxu0 0.0
    %406 = vmatprep.subr.mxu0 0.0
    %407 = vmatpush1.msra.mxu0 0.0
    %408 = vmatprep.subr.mxu0 0.0
    %409 = vmatpush1.msra.mxu0 0.0
    %410 = vmatprep.subr.mxu0 0.0
    %411 = vmatpush1.msra.mxu0 0.0
    %412 = vmatprep.subr.mxu0 0.0
    %413 = vmatpush1.msra.mxu0 0.0
    %414 = vmatprep.subr.mxu0 0.0
    %415 = vmatpush1.msra.mxu0 0.0
    %416 = vmatprep.subr.mxu0 0.0
    %417 = vmatpush1.msra.mxu0 0.0
    %418 = vmatprep.subr.mxu0 0.0
    %419 = vmatpush1.msra.mxu0 0.0
    %420 = vmatprep.subr.mxu0 0.0
    %421 = vmatpush1.msra.mxu0 0.0
    %422 = vmatprep.subr.mxu0 0.0
    %423 = vmatpush1.msra.mxu0 0.0
    %424 = vmatprep.subr.mxu0 0.0
    %425 = vmatpush1.msra.mxu0 0.0
    %426 = vmatprep.subr.mxu0 0.0
    %427 = vmatpush1.msra.mxu0 0.0
    %428 = vmatprep.subr.mxu0 0.0
    %429 = vmatpush1.msra.mxu0 0.0
    %430 = vmatprep.subr.mxu0 0.0
    %431 = vmatpush1.msra.mxu0 0.0
    %432 = vmatprep.subr.mxu0 0.0
    %433 = vmatpush1.msra.mxu0 0.0
    %434 = vmatprep.mubr.f32.mxu0 0.0
    %435 = vmatmul.mubr.f32.gmra.mrb[0].mxu0 %v287
    %v436 = vpop.f32.mrb[0].mxu0
    %v437 = vadd.f32 %v368, %v436
    %v438 = vpop.f32.mrb[0].mxu0
    %439 = vdwg.mxu0
    %v440 = vld [vmem:[#allocation11] sm:$0xff]
    %v441 = vld [vmem:[#allocation11 + $0x8] sm:$0xff]
    %v442 = vld [vmem:[#allocation11 + $0x10] sm:$0xff]
    %v443 = vld [vmem:[#allocation11 + $0x18] sm:$0xff]
    %v444 = vld [vmem:[%s10] sm:$0x1]
    %v446 = vlaneseq
    %v447 = vshrl.u32 %v446, 7
    %v448 = vsub.s32 0, %v447
    %v449 = vrot.slane %v444, %v448
    %451 = vmatprep.subr.mxu0 0.0
    %452 = vmatpush1.msra.mxu0 %v440
    %453 = vmatprep.subr.mxu0 0.0
    %454 = vmatpush1.msra.mxu0 %v441
    %455 = vmatprep.subr.mxu0 0.0
    %456 = vmatpush1.msra.mxu0 %v442
    %457 = vmatprep.subr.mxu0 0.0
    %458 = vmatpush1.msra.mxu0 %v443
    %459 = vmatprep.subr.mxu0 0.0
    %460 = vmatpush1.msra.mxu0 0.0
    %461 = vmatprep.subr.mxu0 0.0
    %462 = vmatpush1.msra.mxu0 0.0
    %463 = vmatprep.subr.mxu0 0.0
    %464 = vmatpush1.msra.mxu0 0.0
    %465 = vmatprep.subr.mxu0 0.0
    %466 = vmatpush1.msra.mxu0 0.0
    %467 = vmatprep.subr.mxu0 0.0
    %468 = vmatpush1.msra.mxu0 0.0
    %469 = vmatprep.subr.mxu0 0.0
    %470 = vmatpush1.msra.mxu0 0.0
    %471 = vmatprep.subr.mxu0 0.0
    %472 = vmatpush1.msra.mxu0 0.0
    %473 = vmatprep.subr.mxu0 0.0
    %474 = vmatpush1.msra.mxu0 0.0
    %475 = vmatprep.subr.mxu0 0.0
    %476 = vmatpush1.msra.mxu0 0.0
    %477 = vmatprep.subr.mxu0 0.0
    %478 = vmatpush1.msra.mxu0 0.0
    %479 = vmatprep.subr.mxu0 0.0
    %480 = vmatpush1.msra.mxu0 0.0
    %481 = vmatprep.subr.mxu0 0.0
    %482 = vmatpush1.msra.mxu0 0.0
    %483 = vmatprep.subr.mxu0 0.0
    %484 = vmatpush1.msra.mxu0 0.0
    %485 = vmatprep.subr.mxu0 0.0
    %486 = vmatpush1.msra.mxu0 0.0
    %487 = vmatprep.subr.mxu0 0.0
    %488 = vmatpush1.msra.mxu0 0.0
    %489 = vmatprep.subr.mxu0 0.0
    %490 = vmatpush1.msra.mxu0 0.0
    %491 = vmatprep.subr.mxu0 0.0
    %492 = vmatpush1.msra.mxu0 0.0
    %493 = vmatprep.subr.mxu0 0.0
    %494 = vmatpush1.msra.mxu0 0.0
    %495 = vmatprep.subr.mxu0 0.0
    %496 = vmatpush1.msra.mxu0 0.0
    %497 = vmatprep.subr.mxu0 0.0
    %498 = vmatpush1.msra.mxu0 0.0
    %499 = vmatprep.subr.mxu0 0.0
    %500 = vmatpush1.msra.mxu0 0.0
    %501 = vmatprep.subr.mxu0 0.0
    %502 = vmatpush1.msra.mxu0 0.0
    %503 = vmatprep.subr.mxu0 0.0
    %504 = vmatpush1.msra.mxu0 0.0
    %505 = vmatprep.subr.mxu0 0.0
    %506 = vmatpush1.msra.mxu0 0.0
    %507 = vmatprep.subr.mxu0 0.0
    %508 = vmatpush1.msra.mxu0 0.0
    %509 = vmatprep.subr.mxu0 0.0
    %510 = vmatpush1.msra.mxu0 0.0
    %511 = vmatprep.subr.mxu0 0.0
    %512 = vmatpush1.msra.mxu0 0.0
    %513 = vmatprep.subr.mxu0 0.0
    %514 = vmatpush1.msra.mxu0 0.0
    %515 = vmatprep.mubr.f32.mxu0 0.0
    %516 = vmatmul.mubr.f32.gmra.mrb[0].mxu0 %v287
    %v517 = vpop.f32.mrb[0].mxu0
    %v518 = vadd.f32 %v449, %v517
    %v519 = vpop.f32.mrb[0].mxu0
    %520 = vdwg.mxu0
    %v521 = vld [vmem:[#allocation12] sm:$0xff]
    %v522 = vld [vmem:[#allocation12 + $0x8] sm:$0xff]
    %v523 = vld [vmem:[#allocation12 + $0x10] sm:$0xff]
    %v524 = vld [vmem:[#allocation12 + $0x18] sm:$0xff]
    %v525 = vld [vmem:[#allocation14] sm:$0xff]
    %v526 = vld [vmem:[#allocation14 + $0x8] sm:$0xff]
    %v527 = vld [vmem:[#allocation14 + $0x10] sm:$0xff]
    %v528 = vld [vmem:[#allocation14 + $0x18] sm:$0xff]
    %v529 = vld [vmem:[#allocation15] sm:$0xff]
    %v530 = vld [vmem:[#allocation15 + $0x8] sm:$0xff]
    %v531 = vld [vmem:[#allocation15 + $0x10] sm:$0xff]
    %v532 = vld [vmem:[#allocation15 + $0x18] sm:$0xff]
    %v533 = vld [vmem:[%s11] sm:$0x1]
    %v534 = vld [vmem:[%s12] sm:$0x1]
    %v536 = vsel %vm285, %v534, 0
    %538 = vmatprep.subr.mxu0 0.0
    %539 = vmatpush1.msra.mxu0 %v521
    %540 = vmatprep.subr.mxu0 0.0
    %541 = vmatpush1.msra.mxu0 %v522
    %542 = vmatprep.subr.mxu0 0.0
    %543 = vmatpush1.msra.mxu0 %v523
    %544 = vmatprep.subr.mxu0 0.0
    %545 = vmatpush1.msra.mxu0 %v524
    %546 = vmatprep.subr.mxu0 0.0
    %547 = vmatpush1.msra.mxu0 0.0
    %548 = vmatprep.subr.mxu0 0.0
    %549 = vmatpush1.msra.mxu0 0.0
    %550 = vmatprep.subr.mxu0 0.0
    %551 = vmatpush1.msra.mxu0 0.0
    %552 = vmatprep.subr.mxu0 0.0
    %553 = vmatpush1.msra.mxu0 0.0
    %554 = vmatprep.subr.mxu0 0.0
    %555 = vmatpush1.msra.mxu0 0.0
    %556 = vmatprep.subr.mxu0 0.0
    %557 = vmatpush1.msra.mxu0 0.0
    %558 = vmatprep.subr.mxu0 0.0
    %559 = vmatpush1.msra.mxu0 0.0
    %560 = vmatprep.subr.mxu0 0.0
    %561 = vmatpush1.msra.mxu0 0.0
    %562 = vmatprep.subr.mxu0 0.0
    %563 = vmatpush1.msra.mxu0 0.0
    %564 = vmatprep.subr.mxu0 0.0
    %565 = vmatpush1.msra.mxu0 0.0
    %566 = vmatprep.subr.mxu0 0.0
    %567 = vmatpush1.msra.mxu0 0.0
    %568 = vmatprep.subr.mxu0 0.0
    %569 = vmatpush1.msra.mxu0 0.0
    %570 = vmatprep.subr.mxu0 0.0
    %571 = vmatpush1.msra.mxu0 0.0
    %572 = vmatprep.subr.mxu0 0.0
    %573 = vmatpush1.msra.mxu0 0.0
    %574 = vmatprep.subr.mxu0 0.0
    %575 = vmatpush1.msra.mxu0 0.0
    %576 = vmatprep.subr.mxu0 0.0
    %577 = vmatpush1.msra.mxu0 0.0
    %578 = vmatprep.subr.mxu0 0.0
    %579 = vmatpush1.msra.mxu0 0.0
    %580 = vmatprep.subr.mxu0 0.0
    %581 = vmatpush1.msra.mxu0 0.0
    %582 = vmatprep.subr.mxu0 0.0
    %583 = vmatpush1.msra.mxu0 0.0
    %584 = vmatprep.subr.mxu0 0.0
    %585 = vmatpush1.msra.mxu0 0.0
    %586 = vmatprep.subr.mxu0 0.0
    %587 = vmatpush1.msra.mxu0 0.0
    %588 = vmatprep.subr.mxu0 0.0
    %589 = vmatpush1.msra.mxu0 0.0
    %590 = vmatprep.subr.mxu0 0.0
    %591 = vmatpush1.msra.mxu0 0.0
    %592 = vmatprep.subr.mxu0 0.0
    %593 = vmatpush1.msra.mxu0 0.0
    %594 = vmatprep.subr.mxu0 0.0
    %595 = vmatpush1.msra.mxu0 0.0
    %596 = vmatprep.subr.mxu0 0.0
    %597 = vmatpush1.msra.mxu0 0.0
    %598 = vmatprep.subr.mxu0 0.0
    %599 = vmatpush1.msra.mxu0 0.0
    %600 = vmatprep.subr.mxu0 0.0
    %601 = vmatpush1.msra.mxu0 0.0
    %602 = vmatprep.mubr.f32.mxu0 0.0
    %603 = vmatmul.mubr.f32.gmra.mrb[0].mxu0 %v536
    %v604 = vpop.f32.mrb[0].mxu0
    %v605 = vadd.f32 0.0, %v604
    %v606 = vpop.f32.mrb[0].mxu0
    %607 = vdwg.mxu0
    %608 = vmatprep.subr.mxu0 0.0
    %609 = vmatpush1.msra.mxu0 %v525
    %610 = vmatprep.subr.mxu0 0.0
    %611 = vmatpush1.msra.mxu0 %v526
    %612 = vmatprep.subr.mxu0 0.0
    %613 = vmatpush1.msra.mxu0 %v527
    %614 = vmatprep.subr.mxu0 0.0
    %615 = vmatpush1.msra.mxu0 %v528
    %616 = vmatprep.subr.mxu0 0.0
    %617 = vmatpush1.msra.mxu0 0.0
    %618 = vmatprep.subr.mxu0 0.0
    %619 = vmatpush1.msra.mxu0 0.0
    %620 = vmatprep.subr.mxu0 0.0
    %621 = vmatpush1.msra.mxu0 0.0
    %622 = vmatprep.subr.mxu0 0.0
    %623 = vmatpush1.msra.mxu0 0.0
    %624 = vmatprep.subr.mxu0 0.0
    %625 = vmatpush1.msra.mxu0 0.0
    %626 = vmatprep.subr.mxu0 0.0
    %627 = vmatpush1.msra.mxu0 0.0
    %628 = vmatprep.subr.mxu0 0.0
    %629 = vmatpush1.msra.mxu0 0.0
    %630 = vmatprep.subr.mxu0 0.0
    %631 = vmatpush1.msra.mxu0 0.0
    %632 = vmatprep.subr.mxu0 0.0
    %633 = vmatpush1.msra.mxu0 0.0
    %634 = vmatprep.subr.mxu0 0.0
    %635 = vmatpush1.msra.mxu0 0.0
    %636 = vmatprep.subr.mxu0 0.0
    %637 = vmatpush1.msra.mxu0 0.0
    %638 = vmatprep.subr.mxu0 0.0
    %639 = vmatpush1.msra.mxu0 0.0
    %640 = vmatprep.subr.mxu0 0.0
    %641 = vmatpush1.msra.mxu0 0.0
    %642 = vmatprep.subr.mxu0 0.0
    %643 = vmatpush1.msra.mxu0 0.0
    %644 = vmatprep.subr.mxu0 0.0
    %645 = vmatpush1.msra.mxu0 0.0
    %646 = vmatprep.subr.mxu0 0.0
    %647 = vmatpush1.msra.mxu0 0.0
    %648 = vmatprep.subr.mxu0 0.0
    %649 = vmatpush1.msra.mxu0 0.0
    %650 = vmatprep.subr.mxu0 0.0
    %651 = vmatpush1.msra.mxu0 0.0
    %652 = vmatprep.subr.mxu0 0.0
    %653 = vmatpush1.msra.mxu0 0.0
    %654 = vmatprep.subr.mxu0 0.0
    %655 = vmatpush1.msra.mxu0 0.0
    %656 = vmatprep.subr.mxu0 0.0
    %657 = vmatpush1.msra.mxu0 0.0
    %658 = vmatprep.subr.mxu0 0.0
    %659 = vmatpush1.msra.mxu0 0.0
    %660 = vmatprep.subr.mxu0 0.0
    %661 = vmatpush1.msra.mxu0 0.0
    %662 = vmatprep.subr.mxu0 0.0
    %663 = vmatpush1.msra.mxu0 0.0
    %664 = vmatprep.subr.mxu0 0.0
    %665 = vmatpush1.msra.mxu0 0.0
    %666 = vmatprep.subr.mxu0 0.0
    %667 = vmatpush1.msra.mxu0 0.0
    %668 = vmatprep.subr.mxu0 0.0
    %669 = vmatpush1.msra.mxu0 0.0
    %670 = vmatprep.subr.mxu0 0.0
    %671 = vmatpush1.msra.mxu0 0.0
    %672 = vmatprep.mubr.f32.mxu0 0.0
    %673 = vmatmul.mubr.f32.gmra.mrb[0].mxu0 %v536
    %v674 = vpop.f32.mrb[0].mxu0
    %v675 = vadd.f32 0.0, %v674
    %v676 = vpop.f32.mrb[0].mxu0
    %677 = vdwg.mxu0
    %678 = vmatprep.subr.mxu0 0.0
    %679 = vmatpush1.msra.mxu0 %v529
    %680 = vmatprep.subr.mxu0 0.0
    %681 = vmatpush1.msra.mxu0 %v530
    %682 = vmatprep.subr.mxu0 0.0
    %683 = vmatpush1.msra.mxu0 %v531
    %684 = vmatprep.subr.mxu0 0.0
    %685 = vmatpush1.msra.mxu0 %v532
    %686 = vmatprep.subr.mxu0 0.0
    %687 = vmatpush1.msra.mxu0 0.0
    %688 = vmatprep.subr.mxu0 0.0
    %689 = vmatpush1.msra.mxu0 0.0
    %690 = vmatprep.subr.mxu0 0.0
    %691 = vmatpush1.msra.mxu0 0.0
    %692 = vmatprep.subr.mxu0 0.0
    %693 = vmatpush1.msra.mxu0 0.0
    %694 = vmatprep.subr.mxu0 0.0
    %695 = vmatpush1.msra.mxu0 0.0
    %696 = vmatprep.subr.mxu0 0.0
    %697 = vmatpush1.msra.mxu0 0.0
    %698 = vmatprep.subr.mxu0 0.0
    %699 = vmatpush1.msra.mxu0 0.0
    %700 = vmatprep.subr.mxu0 0.0
    %701 = vmatpush1.msra.mxu0 0.0
    %702 = vmatprep.subr.mxu0 0.0
    %703 = vmatpush1.msra.mxu0 0.0
    %704 = vmatprep.subr.mxu0 0.0
    %705 = vmatpush1.msra.mxu0 0.0
    %706 = vmatprep.subr.mxu0 0.0
    %707 = vmatpush1.msra.mxu0 0.0
    %708 = vmatprep.subr.mxu0 0.0
    %709 = vmatpush1.msra.mxu0 0.0
    %710 = vmatprep.subr.mxu0 0.0
    %711 = vmatpush1.msra.mxu0 0.0
    %712 = vmatprep.subr.mxu0 0.0
    %713 = vmatpush1.msra.mxu0 0.0
    %714 = vmatprep.subr.mxu0 0.0
    %715 = vmatpush1.msra.mxu0 0.0
    %716 = vmatprep.subr.mxu0 0.0
    %717 = vmatpush1.msra.mxu0 0.0
    %718 = vmatprep.subr.mxu0 0.0
    %719 = vmatpush1.msra.mxu0 0.0
    %720 = vmatprep.subr.mxu0 0.0
    %721 = vmatpush1.msra.mxu0 0.0
    %722 = vmatprep.subr.mxu0 0.0
    %723 = vmatpush1.msra.mxu0 0.0
    %724 = vmatprep.subr.mxu0 0.0
    %725 = vmatpush1.msra.mxu0 0.0
    %726 = vmatprep.subr.mxu0 0.0
    %727 = vmatpush1.msra.mxu0 0.0
    %728 = vmatprep.subr.mxu0 0.0
    %729 = vmatpush1.msra.mxu0 0.0
    %730 = vmatprep.subr.mxu0 0.0
    %731 = vmatpush1.msra.mxu0 0.0
    %732 = vmatprep.subr.mxu0 0.0
    %733 = vmatpush1.msra.mxu0 0.0
    %734 = vmatprep.subr.mxu0 0.0
    %735 = vmatpush1.msra.mxu0 0.0
    %736 = vmatprep.subr.mxu0 0.0
    %737 = vmatpush1.msra.mxu0 0.0
    %738 = vmatprep.subr.mxu0 0.0
    %739 = vmatpush1.msra.mxu0 0.0
    %740 = vmatprep.subr.mxu0 0.0
    %741 = vmatpush1.msra.mxu0 0.0
    %742 = vmatprep.mubr.f32.mxu0 0.0
    %743 = vmatmul.mubr.f32.gmra.mrb[0].mxu0 %v536
    %v744 = vpop.f32.mrb[0].mxu0
    %v745 = vadd.f32 %v533, %v744
    %v746 = vpop.f32.mrb[0].mxu0
    %747 = vdwg.mxu0
    %v748 = vadd.f32 %v356, %v605
    %v749 = vxor.u32 %v748, 2147483648
    %v750 = vmul.f32 %v749, 1.442695
    %v751 = vpow.pop %v750
    %v752 = vadd.f32 %v751, 1.0
    %v753 = vrcp.pop %v752
    %v754 = vmul.f32 1.0, %v753
    %v755 = vadd.f32 %v437, %v675
    %v756 = vxor.u32 %v755, 2147483648
    %v757 = vmul.f32 %v756, 1.442695
    %v758 = vpow.pop %v757
    %v759 = vadd.f32 %v758, 1.0
    %v760 = vrcp.pop %v759
    %v761 = vmul.f32 1.0, %v760
    %v762 = vmul.f32 %v754, %v745
    %v763 = vadd.f32 %v518, %v762
    %v764 = vtanh.pop %v763
    %v765 = vsub.f32 1.0, %v761
    %v766 = vmul.f32 %v765, %v764
    %v767 = vmul.f32 %v761, %v534
    %v768 = vadd.f32 %v766, %v767
    %v770 = vsel %vm285, %v768, 0
    %772 = vmatprep.subr.mxu0 0.0
    %773 = vmatpush1.msra.mxu0 %v521
    %774 = vmatprep.subr.mxu0 0.0
    %775 = vmatpush1.msra.mxu0 %v522
    %776 = vmatprep.subr.mxu0 0.0
    %777 = vmatpush1.msra.mxu0 %v523
    %778 = vmatprep.subr.mxu0 0.0
    %779 = vmatpush1.msra.mxu0 %v524
    %780 = vmatprep.subr.mxu0 0.0
    %781 = vmatpush1.msra.mxu0 0.0
    %782 = vmatprep.subr.mxu0 0.0
    %783 = vmatpush1.msra.mxu0 0.0
    %784 = vmatprep.subr.mxu0 0.0
    %785 = vmatpush1.msra.mxu0 0.0
    %786 = vmatprep.subr.mxu0 0.0
    %787 = vmatpush1.msra.mxu0 0.0
    %788 = vmatprep.subr.mxu0 0.0
    %789 = vmatpush1.msra.mxu0 0.0
    %790 = vmatprep.subr.mxu0 0.0
    %791 = vmatpush1.msra.mxu0 0.0
    %792 = vmatprep.subr.mxu0 0.0
    %793 = vmatpush1.msra.mxu0 0.0
    %794 = vmatprep.subr.mxu0 0.0
    %795 = vmatpush1.msra.mxu0 0.0
    %796 = vmatprep.subr.mxu0 0.0
    %797 = vmatpush1.msra.mxu0 0.0
    %798 = vmatprep.subr.mxu0 0.0
    %799 = vmatpush1.msra.mxu0 0.0
    %800 = vmatprep.subr.mxu0 0.0
    %801 = vmatpush1.msra.mxu0 0.0
    %802 = vmatprep.subr.mxu0 0.0
    %803 = vmatpush1.msra.mxu0 0.0
    %804 = vmatprep.subr.mxu0 0.0
    %805 = vmatpush1.msra.mxu0 0.0
    %806 = vmatprep.subr.mxu0 0.0
    %807 = vmatpush1.msra.mxu0 0.0
    %808 = vmatprep.subr.mxu0 0.0
    %809 = vmatpush1.msra.mxu0 0.0
    %810 = vmatprep.subr.mxu0 0.0
    %811 = vmatpush1.msra.mxu0 0.0
    %812 = vmatprep.subr.mxu0 0.0
    %813 = vmatpush1.msra.mxu0 0.0
    %814 = vmatprep.subr.mxu0 0.0
    %815 = vmatpush1.msra.mxu0 0.0
    %816 = vmatprep.subr.mxu0 0.0
    %817 = vmatpush1.msra.mxu0 0.0
    %818 = vmatprep.subr.mxu0 0.0
    %819 = vmatpush1.msra.mxu0 0.0
    %820 = vmatprep.subr.mxu0 0.0
    %821 = vmatpush1.msra.mxu0 0.0
    %822 = vmatprep.subr.mxu0 0.0
    %823 = vmatpush1.msra.mxu0 0.0
    %824 = vmatprep.subr.mxu0 0.0
    %825 = vmatpush1.msra.mxu0 0.0
    %826 = vmatprep.subr.mxu0 0.0
    %827 = vmatpush1.msra.mxu0 0.0
    %828 = vmatprep.subr.mxu0 0.0
    %829 = vmatpush1.msra.mxu0 0.0
    %830 = vmatprep.subr.mxu0 0.0
    %831 = vmatpush1.msra.mxu0 0.0
    %832 = vmatprep.subr.mxu0 0.0
    %833 = vmatpush1.msra.mxu0 0.0
    %834 = vmatprep.subr.mxu0 0.0
    %835 = vmatpush1.msra.mxu0 0.0
    %836 = vmatprep.mubr.f32.mxu0 0.0
    %837 = vmatmul.mubr.f32.gmra.mrb[0].mxu0 %v770
    %v838 = vpop.f32.mrb[0].mxu0
    %v839 = vadd.f32 0.0, %v838
    %v840 = vpop.f32.mrb[0].mxu0
    %841 = vdwg.mxu0
    %842 = vmatprep.subr.mxu0 0.0
    %843 = vmatpush1.msra.mxu0 %v525
    %844 = vmatprep.subr.mxu0 0.0
    %845 = vmatpush1.msra.mxu0 %v526
    %846 = vmatprep.subr.mxu0 0.0
    %847 = vmatpush1.msra.mxu0 %v527
    %848 = vmatprep.subr.mxu0 0.0
    %849 = vmatpush1.msra.mxu0 %v528
    %850 = vmatprep.subr.mxu0 0.0
    %851 = vmatpush1.msra.mxu0 0.0
    %852 = vmatprep.subr.mxu0 0.0
    %853 = vmatpush1.msra.mxu0 0.0
    %854 = vmatprep.subr.mxu0 0.0
    %855 = vmatpush1.msra.mxu0 0.0
    %856 = vmatprep.subr.mxu0 0.0
    %857 = vmatpush1.msra.mxu0 0.0
    %858 = vmatprep.subr.mxu0 0.0
    %859 = vmatpush1.msra.mxu0 0.0
    %860 = vmatprep.subr.mxu0 0.0
    %861 = vmatpush1.msra.mxu0 0.0
    %862 = vmatprep.subr.mxu0 0.0
    %863 = vmatpush1.msra.mxu0 0.0
    %864 = vmatprep.subr.mxu0 0.0
    %865 = vmatpush1.msra.mxu0 0.0
    %866 = vmatprep.subr.mxu0 0.0
    %867 = vmatpush1.msra.mxu0 0.0
    %868 = vmatprep.subr.mxu0 0.0
    %869 = vmatpush1.msra.mxu0 0.0
    %870 = vmatprep.subr.mxu0 0.0
    %871 = vmatpush1.msra.mxu0 0.0
    %872 = vmatprep.subr.mxu0 0.0
    %873 = vmatpush1.msra.mxu0 0.0
    %874 = vmatprep.subr.mxu0 0.0
    %875 = vmatpush1.msra.mxu0 0.0
    %876 = vmatprep.subr.mxu0 0.0
    %877 = vmatpush1.msra.mxu0 0.0
    %878 = vmatprep.subr.mxu0 0.0
    %879 = vmatpush1.msra.mxu0 0.0
    %880 = vmatprep.subr.mxu0 0.0
    %881 = vmatpush1.msra.mxu0 0.0
    %882 = vmatprep.subr.mxu0 0.0
    %883 = vmatpush1.msra.mxu0 0.0
    %884 = vmatprep.subr.mxu0 0.0
    %885 = vmatpush1.msra.mxu0 0.0
    %886 = vmatprep.subr.mxu0 0.0
    %887 = vmatpush1.msra.mxu0 0.0
    %888 = vmatprep.subr.mxu0 0.0
    %889 = vmatpush1.msra.mxu0 0.0
    %890 = vmatprep.subr.mxu0 0.0
    %891 = vmatpush1.msra.mxu0 0.0
    %892 = vmatprep.subr.mxu0 0.0
    %893 = vmatpush1.msra.mxu0 0.0
    %894 = vmatprep.subr.mxu0 0.0
    %895 = vmatpush1.msra.mxu0 0.0
    %896 = vmatprep.subr.mxu0 0.0
    %897 = vmatpush1.msra.mxu0 0.0
    %898 = vmatprep.subr.mxu0 0.0
    %899 = vmatpush1.msra.mxu0 0.0
    %900 = vmatprep.subr.mxu0 0.0
    %901 = vmatpush1.msra.mxu0 0.0
    %902 = vmatprep.subr.mxu0 0.0
    %903 = vmatpush1.msra.mxu0 0.0
    %904 = vmatprep.subr.mxu0 0.0
    %905 = vmatpush1.msra.mxu0 0.0
    %906 = vmatprep.mubr.f32.mxu0 0.0
    %907 = vmatmul.mubr.f32.gmra.mrb[0].mxu0 %v770
    %v908 = vpop.f32.mrb[0].mxu0
    %v909 = vadd.f32 0.0, %v908
    %v910 = vpop.f32.mrb[0].mxu0
    %911 = vdwg.mxu0
    %912 = vmatprep.subr.mxu0 0.0
    %913 = vmatpush1.msra.mxu0 %v529
    %914 = vmatprep.subr.mxu0 0.0
    %915 = vmatpush1.msra.mxu0 %v530
    %916 = vmatprep.subr.mxu0 0.0
    %917 = vmatpush1.msra.mxu0 %v531
    %918 = vmatprep.subr.mxu0 0.0
    %919 = vmatpush1.msra.mxu0 %v532
    %920 = vmatprep.subr.mxu0 0.0
    %921 = vmatpush1.msra.mxu0 0.0
    %922 = vmatprep.subr.mxu0 0.0
    %923 = vmatpush1.msra.mxu0 0.0
    %924 = vmatprep.subr.mxu0 0.0
    %925 = vmatpush1.msra.mxu0 0.0
    %926 = vmatprep.subr.mxu0 0.0
    %927 = vmatpush1.msra.mxu0 0.0
    %928 = vmatprep.subr.mxu0 0.0
    %929 = vmatpush1.msra.mxu0 0.0
    %930 = vmatprep.subr.mxu0 0.0
    %931 = vmatpush1.msra.mxu0 0.0
    %932 = vmatprep.subr.mxu0 0.0
    %933 = vmatpush1.msra.mxu0 0.0
    %934 = vmatprep.subr.mxu0 0.0
    %935 = vmatpush1.msra.mxu0 0.0
    %936 = vmatprep.subr.mxu0 0.0
    %937 = vmatpush1.msra.mxu0 0.0
    %938 = vmatprep.subr.mxu0 0.0
    %939 = vmatpush1.msra.mxu0 0.0
    %940 = vmatprep.subr.mxu0 0.0
    %941 = vmatpush1.msra.mxu0 0.0
    %942 = vmatprep.subr.mxu0 0.0
    %943 = vmatpush1.msra.mxu0 0.0
    %944 = vmatprep.subr.mxu0 0.0
    %945 = vmatpush1.msra.mxu0 0.0
    %946 = vmatprep.subr.mxu0 0.0
    %947 = vmatpush1.msra.mxu0 0.0
    %948 = vmatprep.subr.mxu0 0.0
    %949 = vmatpush1.msra.mxu0 0.0
    %950 = vmatprep.subr.mxu0 0.0
    %951 = vmatpush1.msra.mxu0 0.0
    %952 = vmatprep.subr.mxu0 0.0
    %953 = vmatpush1.msra.mxu0 0.0
    %954 = vmatprep.subr.mxu0 0.0
    %955 = vmatpush1.msra.mxu0 0.0
    %956 = vmatprep.subr.mxu0 0.0
    %957 = vmatpush1.msra.mxu0 0.0
    %958 = vmatprep.subr.mxu0 0.0
    %959 = vmatpush1.msra.mxu0 0.0
    %960 = vmatprep.subr.mxu0 0.0
    %961 = vmatpush1.msra.mxu0 0.0
    %962 = vmatprep.subr.mxu0 0.0
    %963 = vmatpush1.msra.mxu0 0.0
    %964 = vmatprep.subr.mxu0 0.0
    %965 = vmatpush1.msra.mxu0 0.0
    %966 = vmatprep.subr.mxu0 0.0
    %967 = vmatpush1.msra.mxu0 0.0
    %968 = vmatprep.subr.mxu0 0.0
    %969 = vmatpush1.msra.mxu0 0.0
    %970 = vmatprep.subr.mxu0 0.0
    %971 = vmatpush1.msra.mxu0 0.0
    %972 = vmatprep.subr.mxu0 0.0
    %973 = vmatpush1.msra.mxu0 0.0
    %974 = vmatprep.subr.mxu0 0.0
    %975 = vmatpush1.msra.mxu0 0.0
    %976 = vmatprep.mubr.f32.mxu0 0.0
    %977 = vmatmul.mubr.f32.gmra.mrb[0].mxu0 %v770
    %v978 = vpop.f32.mrb[0].mxu0
    %v979 = vadd.f32 %v533, %v978
    %v980 = vpop.f32.mrb[0].mxu0
    %981 = vdwg.mxu0
    %v983 = vrot.slane %v839, 7
    %v985 = vadd.f32 %v356, %v983
    %v986 = vxor.u32 %v985, 2147483648
    %v987 = vmul.f32 %v986, 1.442695
    %v988 = vpow.pop %v987
    %v989 = vadd.f32 %v988, 1.0
    %v990 = vrcp.pop %v989
    %v991 = vmul.f32 1.0, %v990
    %v993 = vrot.slane %v909, 7
    %v995 = vadd.f32 %v437, %v993
    %v996 = vxor.u32 %v995, 2147483648
    %v997 = vmul.f32 %v996, 1.442695
    %v998 = vpow.pop %v997
    %v999 = vadd.f32 %v998, 1.0
    %v1000 = vrcp.pop %v999
    %v1001 = vmul.f32 1.0, %v1000
    %v1003 = vrot.slane %v979, 7
    %v1005 = vmul.f32 %v991, %v1003
    %v1006 = vadd.f32 %v518, %v1005
    %v1007 = vtanh.pop %v1006
    %v1008 = vsub.f32 1.0, %v1001
    %v1009 = vmul.f32 %v1008, %v1007
    %v1010 = vrot.slane %v768, 7
    %v1012 = vmul.f32 %v1001, %v1010
    %v1013 = vadd.f32 %v1009, %v1012
    %v1015 = vrot.slane %v1013, 1
    %v1016 = vsel %vm285, %v1015, 0
    %1018 = vmatprep.subr.mxu0 0.0
    %1019 = vmatpush1.msra.mxu0 %v521
    %1020 = vmatprep.subr.mxu0 0.0
    %1021 = vmatpush1.msra.mxu0 %v522
    %1022 = vmatprep.subr.mxu0 0.0
    %1023 = vmatpush1.msra.mxu0 %v523
    %1024 = vmatprep.subr.mxu0 0.0
    %1025 = vmatpush1.msra.mxu0 %v524
    %1026 = vmatprep.subr.mxu0 0.0
    %1027 = vmatpush1.msra.mxu0 0.0
    %1028 = vmatprep.subr.mxu0 0.0
    %1029 = vmatpush1.msra.mxu0 0.0
    %1030 = vmatprep.subr.mxu0 0.0
    %1031 = vmatpush1.msra.mxu0 0.0
    %1032 = vmatprep.subr.mxu0 0.0
    %1033 = vmatpush1.msra.mxu0 0.0
    %1034 = vmatprep.subr.mxu0 0.0
    %1035 = vmatpush1.msra.mxu0 0.0
    %1036 = vmatprep.subr.mxu0 0.0
    %1037 = vmatpush1.msra.mxu0 0.0
    %1038 = vmatprep.subr.mxu0 0.0
    %1039 = vmatpush1.msra.mxu0 0.0
    %1040 = vmatprep.subr.mxu0 0.0
    %1041 = vmatpush1.msra.mxu0 0.0
    %1042 = vmatprep.subr.mxu0 0.0
    %1043 = vmatpush1.msra.mxu0 0.0
    %1044 = vmatprep.subr.mxu0 0.0
    %1045 = vmatpush1.msra.mxu0 0.0
    %1046 = vmatprep.subr.mxu0 0.0
    %1047 = vmatpush1.msra.mxu0 0.0
    %1048 = vmatprep.subr.mxu0 0.0
    %1049 = vmatpush1.msra.mxu0 0.0
    %1050 = vmatprep.subr.mxu0 0.0
    %1051 = vmatpush1.msra.mxu0 0.0
    %1052 = vmatprep.subr.mxu0 0.0
    %1053 = vmatpush1.msra.mxu0 0.0
    %1054 = vmatprep.subr.mxu0 0.0
    %1055 = vmatpush1.msra.mxu0 0.0
    %1056 = vmatprep.subr.mxu0 0.0
    %1057 = vmatpush1.msra.mxu0 0.0
    %1058 = vmatprep.subr.mxu0 0.0
    %1059 = vmatpush1.msra.mxu0 0.0
    %1060 = vmatprep.subr.mxu0 0.0
    %1061 = vmatpush1.msra.mxu0 0.0
    %1062 = vmatprep.subr.mxu0 0.0
    %1063 = vmatpush1.msra.mxu0 0.0
    %1064 = vmatprep.subr.mxu0 0.0
    %1065 = vmatpush1.msra.mxu0 0.0
    %1066 = vmatprep.subr.mxu0 0.0
    %1067 = vmatpush1.msra.mxu0 0.0
    %1068 = vmatprep.subr.mxu0 0.0
    %1069 = vmatpush1.msra.mxu0 0.0
    %1070 = vmatprep.subr.mxu0 0.0
    %1071 = vmatpush1.msra.mxu0 0.0
    %1072 = vmatprep.subr.mxu0 0.0
    %1073 = vmatpush1.msra.mxu0 0.0
    %1074 = vmatprep.subr.mxu0 0.0
    %1075 = vmatpush1.msra.mxu0 0.0
    %1076 = vmatprep.subr.mxu0 0.0
    %1077 = vmatpush1.msra.mxu0 0.0
    %1078 = vmatprep.subr.mxu0 0.0
    %1079 = vmatpush1.msra.mxu0 0.0
    %1080 = vmatprep.subr.mxu0 0.0
    %1081 = vmatpush1.msra.mxu0 0.0
    %1082 = vmatprep.mubr.f32.mxu0 0.0
    %1083 = vmatmul.mubr.f32.gmra.mrb[0].mxu0 %v1016
    %v1084 = vpop.f32.mrb[0].mxu0
    %v1085 = vadd.f32 0.0, %v1084
    %v1086 = vpop.f32.mrb[0].mxu0
    %1087 = vdwg.mxu0
    %1088 = vmatprep.subr.mxu0 0.0
    %1089 = vmatpush1.msra.mxu0 %v525
    %1090 = vmatprep.subr.mxu0 0.0
    %1091 = vmatpush1.msra.mxu0 %v526
    %1092 = vmatprep.subr.mxu0 0.0
    %1093 = vmatpush1.msra.mxu0 %v527
    %1094 = vmatprep.subr.mxu0 0.0
    %1095 = vmatpush1.msra.mxu0 %v528
    %1096 = vmatprep.subr.mxu0 0.0
    %1097 = vmatpush1.msra.mxu0 0.0
    %1098 = vmatprep.subr.mxu0 0.0
    %1099 = vmatpush1.msra.mxu0 0.0
    %1100 = vmatprep.subr.mxu0 0.0
    %1101 = vmatpush1.msra.mxu0 0.0
    %1102 = vmatprep.subr.mxu0 0.0
    %1103 = vmatpush1.msra.mxu0 0.0
    %1104 = vmatprep.subr.mxu0 0.0
    %1105 = vmatpush1.msra.mxu0 0.0
    %1106 = vmatprep.subr.mxu0 0.0
    %1107 = vmatpush1.msra.mxu0 0.0
    %1108 = vmatprep.subr.mxu0 0.0
    %1109 = vmatpush1.msra.mxu0 0.0
    %1110 = vmatprep.subr.mxu0 0.0
    %1111 = vmatpush1.msra.mxu0 0.0
    %1112 = vmatprep.subr.mxu0 0.0
    %1113 = vmatpush1.msra.mxu0 0.0
    %1114 = vmatprep.subr.mxu0 0.0
    %1115 = vmatpush1.msra.mxu0 0.0
    %1116 = vmatprep.subr.mxu0 0.0
    %1117 = vmatpush1.msra.mxu0 0.0
    %1118 = vmatprep.subr.mxu0 0.0
    %1119 = vmatpush1.msra.mxu0 0.0
    %1120 = vmatprep.subr.mxu0 0.0
    %1121 = vmatpush1.msra.mxu0 0.0
    %1122 = vmatprep.subr.mxu0 0.0
    %1123 = vmatpush1.msra.mxu0 0.0
    %1124 = vmatprep.subr.mxu0 0.0
    %1125 = vmatpush1.msra.mxu0 0.0
    %1126 = vmatprep.subr.mxu0 0.0
    %1127 = vmatpush1.msra.mxu0 0.0
    %1128 = vmatprep.subr.mxu0 0.0
    %1129 = vmatpush1.msra.mxu0 0.0
    %1130 = vmatprep.subr.mxu0 0.0
    %1131 = vmatpush1.msra.mxu0 0.0
    %1132 = vmatprep.subr.mxu0 0.0
    %1133 = vmatpush1.msra.mxu0 0.0
    %1134 = vmatprep.subr.mxu0 0.0
    %1135 = vmatpush1.msra.mxu0 0.0
    %1136 = vmatprep.subr.mxu0 0.0
    %1137 = vmatpush1.msra.mxu0 0.0
    %1138 = vmatprep.subr.mxu0 0.0
    %1139 = vmatpush1.msra.mxu0 0.0
    %1140 = vmatprep.subr.mxu0 0.0
    %1141 = vmatpush1.msra.mxu0 0.0
    %1142 = vmatprep.subr.mxu0 0.0
    %1143 = vmatpush1.msra.mxu0 0.0
    %1144 = vmatprep.subr.mxu0 0.0
    %1145 = vmatpush1.msra.mxu0 0.0
    %1146 = vmatprep.subr.mxu0 0.0
    %1147 = vmatpush1.msra.mxu0 0.0
    %1148 = vmatprep.subr.mxu0 0.0
    %1149 = vmatpush1.msra.mxu0 0.0
    %1150 = vmatprep.subr.mxu0 0.0
    %1151 = vmatpush1.msra.mxu0 0.0
    %1152 = vmatprep.mubr.f32.mxu0 0.0
    %1153 = vmatmul.mubr.f32.gmra.mrb[0].mxu0 %v1016
    %v1154 = vpop.f32.mrb[0].mxu0
    %v1155 = vadd.f32 0.0, %v1154
    %v1156 = vpop.f32.mrb[0].mxu0
    %1157 = vdwg.mxu0
    %1158 = vmatprep.subr.mxu0 0.0
    %1159 = vmatpush1.msra.mxu0 %v529
    %1160 = vmatprep.subr.mxu0 0.0
    %1161 = vmatpush1.msra.mxu0 %v530
    %1162 = vmatprep.subr.mxu0 0.0
    %1163 = vmatpush1.msra.mxu0 %v531
    %1164 = vmatprep.subr.mxu0 0.0
    %1165 = vmatpush1.msra.mxu0 %v532
    %1166 = vmatprep.subr.mxu0 0.0
    %1167 = vmatpush1.msra.mxu0 0.0
    %1168 = vmatprep.subr.mxu0 0.0
    %1169 = vmatpush1.msra.mxu0 0.0
    %1170 = vmatprep.subr.mxu0 0.0
    %1171 = vmatpush1.msra.mxu0 0.0
    %1172 = vmatprep.subr.mxu0 0.0
    %1173 = vmatpush1.msra.mxu0 0.0
    %1174 = vmatprep.subr.mxu0 0.0
    %1175 = vmatpush1.msra.mxu0 0.0
    %1176 = vmatprep.subr.mxu0 0.0
    %1177 = vmatpush1.msra.mxu0 0.0
    %1178 = vmatprep.subr.mxu0 0.0
    %1179 = vmatpush1.msra.mxu0 0.0
    %1180 = vmatprep.subr.mxu0 0.0
    %1181 = vmatpush1.msra.mxu0 0.0
    %1182 = vmatprep.subr.mxu0 0.0
    %1183 = vmatpush1.msra.mxu0 0.0
    %1184 = vmatprep.subr.mxu0 0.0
    %1185 = vmatpush1.msra.mxu0 0.0
    %1186 = vmatprep.subr.mxu0 0.0
    %1187 = vmatpush1.msra.mxu0 0.0
    %1188 = vmatprep.subr.mxu0 0.0
    %1189 = vmatpush1.msra.mxu0 0.0
    %1190 = vmatprep.subr.mxu0 0.0
    %1191 = vmatpush1.msra.mxu0 0.0
    %1192 = vmatprep.subr.mxu0 0.0
    %1193 = vmatpush1.msra.mxu0 0.0
    %1194 = vmatprep.subr.mxu0 0.0
    %1195 = vmatpush1.msra.mxu0 0.0
    %1196 = vmatprep.subr.mxu0 0.0
    %1197 = vmatpush1.msra.mxu0 0.0
    %1198 = vmatprep.subr.mxu0 0.0
    %1199 = vmatpush1.msra.mxu0 0.0
    %1200 = vmatprep.subr.mxu0 0.0
    %1201 = vmatpush1.msra.mxu0 0.0
    %1202 = vmatprep.subr.mxu0 0.0
    %1203 = vmatpush1.msra.mxu0 0.0
    %1204 = vmatprep.subr.mxu0 0.0
    %1205 = vmatpush1.msra.mxu0 0.0
    %1206 = vmatprep.subr.mxu0 0.0
    %1207 = vmatpush1.msra.mxu0 0.0
    %1208 = vmatprep.subr.mxu0 0.0
    %1209 = vmatpush1.msra.mxu0 0.0
    %1210 = vmatprep.subr.mxu0 0.0
    %1211 = vmatpush1.msra.mxu0 0.0
    %1212 = vmatprep.subr.mxu0 0.0
    %1213 = vmatpush1.msra.mxu0 0.0
    %1214 = vmatprep.subr.mxu0 0.0
    %1215 = vmatpush1.msra.mxu0 0.0
    %1216 = vmatprep.subr.mxu0 0.0
    %1217 = vmatpush1.msra.mxu0 0.0
    %1218 = vmatprep.subr.mxu0 0.0
    %1219 = vmatpush1.msra.mxu0 0.0
    %1220 = vmatprep.subr.mxu0 0.0
    %1221 = vmatpush1.msra.mxu0 0.0
    %1222 = vmatprep.mubr.f32.mxu0 0.0
    %1223 = vmatmul.mubr.f32.gmra.mrb[0].mxu0 %v1016
    %v1224 = vpop.f32.mrb[0].mxu0
    %v1225 = vadd.f32 %v533, %v1224
    %v1226 = vpop.f32.mrb[0].mxu0
    %1227 = vdwg.mxu0
    %v1229 = vrot.slane %v1085, 6
    %v1231 = vadd.f32 %v356, %v1229
    %v1232 = vxor.u32 %v1231, 2147483648
    %v1233 = vmul.f32 %v1232, 1.442695
    %v1234 = vpow.pop %v1233
    %v1235 = vadd.f32 %v1234, 1.0
    %v1236 = vrcp.pop %v1235
    %v1237 = vmul.f32 1.0, %v1236
    %v1239 = vrot.slane %v1155, 6
    %v1241 = vadd.f32 %v437, %v1239
    %v1242 = vxor.u32 %v1241, 2147483648
    %v1243 = vmul.f32 %v1242, 1.442695
    %v1244 = vpow.pop %v1243
    %v1245 = vadd.f32 %v1244, 1.0
    %v1246 = vrcp.pop %v1245
    %v1247 = vmul.f32 1.0, %v1246
    %v1249 = vrot.slane %v1225, 6
    %v1251 = vmul.f32 %v1237, %v1249
    %v1252 = vadd.f32 %v518, %v1251
    %v1253 = vtanh.pop %v1252
    %v1254 = vsub.f32 1.0, %v1247
    %v1255 = vmul.f32 %v1254, %v1253
    %v1256 = vrot.slane %v1013, 7
    %v1258 = vmul.f32 %v1247, %v1256
    %v1259 = vadd.f32 %v1255, %v1258
    %v1261 = vrot.slane %v1259, 2
    %v1262 = vsel %vm285, %v1261, 0
    %1264 = vmatprep.subr.mxu0 0.0
    %1265 = vmatpush1.msra.mxu0 %v521
    %1266 = vmatprep.subr.mxu0 0.0
    %1267 = vmatpush1.msra.mxu0 %v522
    %1268 = vmatprep.subr.mxu0 0.0
    %1269 = vmatpush1.msra.mxu0 %v523
    %1270 = vmatprep.subr.mxu0 0.0
    %1271 = vmatpush1.msra.mxu0 %v524
    %1272 = vmatprep.subr.mxu0 0.0
    %1273 = vmatpush1.msra.mxu0 0.0
    %1274 = vmatprep.subr.mxu0 0.0
    %1275 = vmatpush1.msra.mxu0 0.0
    %1276 = vmatprep.subr.mxu0 0.0
    %1277 = vmatpush1.msra.mxu0 0.0
    %1278 = vmatprep.subr.mxu0 0.0
    %1279 = vmatpush1.msra.mxu0 0.0
    %1280 = vmatprep.subr.mxu0 0.0
    %1281 = vmatpush1.msra.mxu0 0.0
    %1282 = vmatprep.subr.mxu0 0.0
    %1283 = vmatpush1.msra.mxu0 0.0
    %1284 = vmatprep.subr.mxu0 0.0
    %1285 = vmatpush1.msra.mxu0 0.0
    %1286 = vmatprep.subr.mxu0 0.0
    %1287 = vmatpush1.msra.mxu0 0.0
    %1288 = vmatprep.subr.mxu0 0.0
    %1289 = vmatpush1.msra.mxu0 0.0
    %1290 = vmatprep.subr.mxu0 0.0
    %1291 = vmatpush1.msra.mxu0 0.0
    %1292 = vmatprep.subr.mxu0 0.0
    %1293 = vmatpush1.msra.mxu0 0.0
    %1294 = vmatprep.subr.mxu0 0.0
    %1295 = vmatpush1.msra.mxu0 0.0
    %1296 = vmatprep.subr.mxu0 0.0
    %1297 = vmatpush1.msra.mxu0 0.0
    %1298 = vmatprep.subr.mxu0 0.0
    %1299 = vmatpush1.msra.mxu0 0.0
    %1300 = vmatprep.subr.mxu0 0.0
    %1301 = vmatpush1.msra.mxu0 0.0
    %1302 = vmatprep.subr.mxu0 0.0
    %1303 = vmatpush1.msra.mxu0 0.0
    %1304 = vmatprep.subr.mxu0 0.0
    %1305 = vmatpush1.msra.mxu0 0.0
    %1306 = vmatprep.subr.mxu0 0.0
    %1307 = vmatpush1.msra.mxu0 0.0
    %1308 = vmatprep.subr.mxu0 0.0
    %1309 = vmatpush1.msra.mxu0 0.0
    %1310 = vmatprep.subr.mxu0 0.0
    %1311 = vmatpush1.msra.mxu0 0.0
    %1312 = vmatprep.subr.mxu0 0.0
    %1313 = vmatpush1.msra.mxu0 0.0
    %1314 = vmatprep.subr.mxu0 0.0
    %1315 = vmatpush1.msra.mxu0 0.0
    %1316 = vmatprep.subr.mxu0 0.0
    %1317 = vmatpush1.msra.mxu0 0.0
    %1318 = vmatprep.subr.mxu0 0.0
    %1319 = vmatpush1.msra.mxu0 0.0
    %1320 = vmatprep.subr.mxu0 0.0
    %1321 = vmatpush1.msra.mxu0 0.0
    %1322 = vmatprep.subr.mxu0 0.0
    %1323 = vmatpush1.msra.mxu0 0.0
    %1324 = vmatprep.subr.mxu0 0.0
    %1325 = vmatpush1.msra.mxu0 0.0
    %1326 = vmatprep.subr.mxu0 0.0
    %1327 = vmatpush1.msra.mxu0 0.0
    %1328 = vmatprep.mubr.f32.mxu0 0.0
    %1329 = vmatmul.mubr.f32.gmra.mrb[0].mxu0 %v1262
    %v1330 = vpop.f32.mrb[0].mxu0
    %v1331 = vadd.f32 0.0, %v1330
    %v1332 = vpop.f32.mrb[0].mxu0
    %1333 = vdwg.mxu0
    %1334 = vmatprep.subr.mxu0 0.0
    %1335 = vmatpush1.msra.mxu0 %v525
    %1336 = vmatprep.subr.mxu0 0.0
    %1337 = vmatpush1.msra.mxu0 %v526
    %1338 = vmatprep.subr.mxu0 0.0
    %1339 = vmatpush1.msra.mxu0 %v527
    %1340 = vmatprep.subr.mxu0 0.0
    %1341 = vmatpush1.msra.mxu0 %v528
    %1342 = vmatprep.subr.mxu0 0.0
    %1343 = vmatpush1.msra.mxu0 0.0
    %1344 = vmatprep.subr.mxu0 0.0
    %1345 = vmatpush1.msra.mxu0 0.0
    %1346 = vmatprep.subr.mxu0 0.0
    %1347 = vmatpush1.msra.mxu0 0.0
    %1348 = vmatprep.subr.mxu0 0.0
    %1349 = vmatpush1.msra.mxu0 0.0
    %1350 = vmatprep.subr.mxu0 0.0
    %1351 = vmatpush1.msra.mxu0 0.0
    %1352 = vmatprep.subr.mxu0 0.0
    %1353 = vmatpush1.msra.mxu0 0.0
    %1354 = vmatprep.subr.mxu0 0.0
    %1355 = vmatpush1.msra.mxu0 0.0
    %1356 = vmatprep.subr.mxu0 0.0
    %1357 = vmatpush1.msra.mxu0 0.0
    %1358 = vmatprep.subr.mxu0 0.0
    %1359 = vmatpush1.msra.mxu0 0.0
    %1360 = vmatprep.subr.mxu0 0.0
    %1361 = vmatpush1.msra.mxu0 0.0
    %1362 = vmatprep.subr.mxu0 0.0
    %1363 = vmatpush1.msra.mxu0 0.0
    %1364 = vmatprep.subr.mxu0 0.0
    %1365 = vmatpush1.msra.mxu0 0.0
    %1366 = vmatprep.subr.mxu0 0.0
    %1367 = vmatpush1.msra.mxu0 0.0
    %1368 = vmatprep.subr.mxu0 0.0
    %1369 = vmatpush1.msra.mxu0 0.0
    %1370 = vmatprep.subr.mxu0 0.0
    %1371 = vmatpush1.msra.mxu0 0.0
    %1372 = vmatprep.subr.mxu0 0.0
    %1373 = vmatpush1.msra.mxu0 0.0
    %1374 = vmatprep.subr.mxu0 0.0
    %1375 = vmatpush1.msra.mxu0 0.0
    %1376 = vmatprep.subr.mxu0 0.0
    %1377 = vmatpush1.msra.mxu0 0.0
    %1378 = vmatprep.subr.mxu0 0.0
    %1379 = vmatpush1.msra.mxu0 0.0
    %1380 = vmatprep.subr.mxu0 0.0
    %1381 = vmatpush1.msra.mxu0 0.0
    %1382 = vmatprep.subr.mxu0 0.0
    %1383 = vmatpush1.msra.mxu0 0.0
    %1384 = vmatprep.subr.mxu0 0.0
    %1385 = vmatpush1.msra.mxu0 0.0
    %1386 = vmatprep.subr.mxu0 0.0
    %1387 = vmatpush1.msra.mxu0 0.0
    %1388 = vmatprep.subr.mxu0 0.0
    %1389 = vmatpush1.msra.mxu0 0.0
    %1390 = vmatprep.subr.mxu0 0.0
    %1391 = vmatpush1.msra.mxu0 0.0
    %1392 = vmatprep.subr.mxu0 0.0
    %1393 = vmatpush1.msra.mxu0 0.0
    %1394 = vmatprep.subr.mxu0 0.0
    %1395 = vmatpush1.msra.mxu0 0.0
    %1396 = vmatprep.subr.mxu0 0.0
    %1397 = vmatpush1.msra.mxu0 0.0
    %1398 = vmatprep.mubr.f32.mxu0 0.0
    %1399 = vmatmul.mubr.f32.gmra.mrb[0].mxu0 %v1262
    %v1400 = vpop.f32.mrb[0].mxu0
    %v1401 = vadd.f32 0.0, %v1400
    %v1402 = vpop.f32.mrb[0].mxu0
    %1403 = vdwg.mxu0
    %1404 = vmatprep.subr.mxu0 0.0
    %1405 = vmatpush1.msra.mxu0 %v529
    %1406 = vmatprep.subr.mxu0 0.0
    %1407 = vmatpush1.msra.mxu0 %v530
    %1408 = vmatprep.subr.mxu0 0.0
    %1409 = vmatpush1.msra.mxu0 %v531
    %1410 = vmatprep.subr.mxu0 0.0
    %1411 = vmatpush1.msra.mxu0 %v532
    %1412 = vmatprep.subr.mxu0 0.0
    %1413 = vmatpush1.msra.mxu0 0.0
    %1414 = vmatprep.subr.mxu0 0.0
    %1415 = vmatpush1.msra.mxu0 0.0
    %1416 = vmatprep.subr.mxu0 0.0
    %1417 = vmatpush1.msra.mxu0 0.0
    %1418 = vmatprep.subr.mxu0 0.0
    %1419 = vmatpush1.msra.mxu0 0.0
    %1420 = vmatprep.subr.mxu0 0.0
    %1421 = vmatpush1.msra.mxu0 0.0
    %1422 = vmatprep.subr.mxu0 0.0
    %1423 = vmatpush1.msra.mxu0 0.0
    %1424 = vmatprep.subr.mxu0 0.0
    %1425 = vmatpush1.msra.mxu0 0.0
    %1426 = vmatprep.subr.mxu0 0.0
    %1427 = vmatpush1.msra.mxu0 0.0
    %1428 = vmatprep.subr.mxu0 0.0
    %1429 = vmatpush1.msra.mxu0 0.0
    %1430 = vmatprep.subr.mxu0 0.0
    %1431 = vmatpush1.msra.mxu0 0.0
    %1432 = vmatprep.subr.mxu0 0.0
    %1433 = vmatpush1.msra.mxu0 0.0
    %1434 = vmatprep.subr.mxu0 0.0
    %1435 = vmatpush1.msra.mxu0 0.0
    %1436 = vmatprep.subr.mxu0 0.0
    %1437 = vmatpush1.msra.mxu0 0.0
    %1438 = vmatprep.subr.mxu0 0.0
    %1439 = vmatpush1.msra.mxu0 0.0
    %1440 = vmatprep.subr.mxu0 0.0
    %1441 = vmatpush1.msra.mxu0 0.0
    %1442 = vmatprep.subr.mxu0 0.0
    %1443 = vmatpush1.msra.mxu0 0.0
    %1444 = vmatprep.subr.mxu0 0.0
    %1445 = vmatpush1.msra.mxu0 0.0
    %1446 = vmatprep.subr.mxu0 0.0
    %1447 = vmatpush1.msra.mxu0 0.0
    %1448 = vmatprep.subr.mxu0 0.0
    %1449 = vmatpush1.msra.mxu0 0.0
    %1450 = vmatprep.subr.mxu0 0.0
    %1451 = vmatpush1.msra.mxu0 0.0
    %1452 = vmatprep.subr.mxu0 0.0
    %1453 = vmatpush1.msra.mxu0 0.0
    %1454 = vmatprep.subr.mxu0 0.0
    %1455 = vmatpush1.msra.mxu0 0.0
    %1456 = vmatprep.subr.mxu0 0.0
    %1457 = vmatpush1.msra.mxu0 0.0
    %1458 = vmatprep.subr.mxu0 0.0
    %1459 = vmatpush1.msra.mxu0 0.0
    %1460 = vmatprep.subr.mxu0 0.0
    %1461 = vmatpush1.msra.mxu0 0.0
    %1462 = vmatprep.subr.mxu0 0.0
    %1463 = vmatpush1.msra.mxu0 0.0
    %1464 = vmatprep.subr.mxu0 0.0
    %1465 = vmatpush1.msra.mxu0 0.0
    %1466 = vmatprep.subr.mxu0 0.0
    %1467 = vmatpush1.msra.mxu0 0.0
    %1468 = vmatprep.mubr.f32.mxu0 0.0
    %1469 = vmatmul.mubr.f32.gmra.mrb[0].mxu0 %v1262
    %v1470 = vpop.f32.mrb[0].mxu0
    %v1471 = vadd.f32 %v533, %v1470
    %v1472 = vpop.f32.mrb[0].mxu0
    %1473 = vdwg.mxu0
    %v1475 = vrot.slane %v1331, 5
    %v1477 = vadd.f32 %v356, %v1475
    %v1478 = vxor.u32 %v1477, 2147483648
    %v1479 = vmul.f32 %v1478, 1.442695
    %v1480 = vpow.pop %v1479
    %v1481 = vadd.f32 %v1480, 1.0
    %v1482 = vrcp.pop %v1481
    %v1483 = vmul.f32 1.0, %v1482
    %v1485 = vrot.slane %v1401, 5
    %v1487 = vadd.f32 %v437, %v1485
    %v1488 = vxor.u32 %v1487, 2147483648
    %v1489 = vmul.f32 %v1488, 1.442695
    %v1490 = vpow.pop %v1489
    %v1491 = vadd.f32 %v1490, 1.0
    %v1492 = vrcp.pop %v1491
    %v1493 = vmul.f32 1.0, %v1492
    %v1495 = vrot.slane %v1471, 5
    %v1497 = vmul.f32 %v1483, %v1495
    %v1498 = vadd.f32 %v518, %v1497
    %v1499 = vtanh.pop %v1498
    %v1500 = vsub.f32 1.0, %v1493
    %v1501 = vmul.f32 %v1500, %v1499
    %v1502 = vrot.slane %v1259, 7
    %v1504 = vmul.f32 %v1493, %v1502
    %v1505 = vadd.f32 %v1501, %v1504
    %v1507 = vrot.slane %v1505, 3
    %v1508 = vsel %vm285, %v1507, 0
    %1510 = vmatprep.subr.mxu0 0.0
    %1511 = vmatpush1.msra.mxu0 %v521
    %1512 = vmatprep.subr.mxu0 0.0
    %1513 = vmatpush1.msra.mxu0 %v522
    %1514 = vmatprep.subr.mxu0 0.0
    %1515 = vmatpush1.msra.mxu0 %v523
    %1516 = vmatprep.subr.mxu0 0.0
    %1517 = vmatpush1.msra.mxu0 %v524
    %1518 = vmatprep.subr.mxu0 0.0
    %1519 = vmatpush1.msra.mxu0 0.0
    %1520 = vmatprep.subr.mxu0 0.0
    %1521 = vmatpush1.msra.mxu0 0.0
    %1522 = vmatprep.subr.mxu0 0.0
    %1523 = vmatpush1.msra.mxu0 0.0
    %1524 = vmatprep.subr.mxu0 0.0
    %1525 = vmatpush1.msra.mxu0 0.0
    %1526 = vmatprep.subr.mxu0 0.0
    %1527 = vmatpush1.msra.mxu0 0.0
    %1528 = vmatprep.subr.mxu0 0.0
    %1529 = vmatpush1.msra.mxu0 0.0
    %1530 = vmatprep.subr.mxu0 0.0
    %1531 = vmatpush1.msra.mxu0 0.0
    %1532 = vmatprep.subr.mxu0 0.0
    %1533 = vmatpush1.msra.mxu0 0.0
    %1534 = vmatprep.subr.mxu0 0.0
    %1535 = vmatpush1.msra.mxu0 0.0
    %1536 = vmatprep.subr.mxu0 0.0
    %1537 = vmatpush1.msra.mxu0 0.0
    %1538 = vmatprep.subr.mxu0 0.0
    %1539 = vmatpush1.msra.mxu0 0.0
    %1540 = vmatprep.subr.mxu0 0.0
    %1541 = vmatpush1.msra.mxu0 0.0
    %1542 = vmatprep.subr.mxu0 0.0
    %1543 = vmatpush1.msra.mxu0 0.0
    %1544 = vmatprep.subr.mxu0 0.0
    %1545 = vmatpush1.msra.mxu0 0.0
    %1546 = vmatprep.subr.mxu0 0.0
    %1547 = vmatpush1.msra.mxu0 0.0
    %1548 = vmatprep.subr.mxu0 0.0
    %1549 = vmatpush1.msra.mxu0 0.0
    %1550 = vmatprep.subr.mxu0 0.0
    %1551 = vmatpush1.msra.mxu0 0.0
    %1552 = vmatprep.subr.mxu0 0.0
    %1553 = vmatpush1.msra.mxu0 0.0
    %1554 = vmatprep.subr.mxu0 0.0
    %1555 = vmatpush1.msra.mxu0 0.0
    %1556 = vmatprep.subr.mxu0 0.0
    %1557 = vmatpush1.msra.mxu0 0.0
    %1558 = vmatprep.subr.mxu0 0.0
    %1559 = vmatpush1.msra.mxu0 0.0
    %1560 = vmatprep.subr.mxu0 0.0
    %1561 = vmatpush1.msra.mxu0 0.0
    %1562 = vmatprep.subr.mxu0 0.0
    %1563 = vmatpush1.msra.mxu0 0.0
    %1564 = vmatprep.subr.mxu0 0.0
    %1565 = vmatpush1.msra.mxu0 0.0
    %1566 = vmatprep.subr.mxu0 0.0
    %1567 = vmatpush1.msra.mxu0 0.0
    %1568 = vmatprep.subr.mxu0 0.0
    %1569 = vmatpush1.msra.mxu0 0.0
    %1570 = vmatprep.subr.mxu0 0.0
    %1571 = vmatpush1.msra.mxu0 0.0
    %1572 = vmatprep.subr.mxu0 0.0
    %1573 = vmatpush1.msra.mxu0 0.0
    %1574 = vmatprep.mubr.f32.mxu0 0.0
    %1575 = vmatmul.mubr.f32.gmra.mrb[0].mxu0 %v1508
    %v1576 = vpop.f32.mrb[0].mxu0
    %v1577 = vadd.f32 0.0, %v1576
    %v1578 = vpop.f32.mrb[0].mxu0
    %1579 = vdwg.mxu0
    %1580 = vmatprep.subr.mxu0 0.0
    %1581 = vmatpush1.msra.mxu0 %v525
    %1582 = vmatprep.subr.mxu0 0.0
    %1583 = vmatpush1.msra.mxu0 %v526
    %1584 = vmatprep.subr.mxu0 0.0
    %1585 = vmatpush1.msra.mxu0 %v527
    %1586 = vmatprep.subr.mxu0 0.0
    %1587 = vmatpush1.msra.mxu0 %v528
    %1588 = vmatprep.subr.mxu0 0.0
    %1589 = vmatpush1.msra.mxu0 0.0
    %1590 = vmatprep.subr.mxu0 0.0
    %1591 = vmatpush1.msra.mxu0 0.0
    %1592 = vmatprep.subr.mxu0 0.0
    %1593 = vmatpush1.msra.mxu0 0.0
    %1594 = vmatprep.subr.mxu0 0.0
    %1595 = vmatpush1.msra.mxu0 0.0
    %1596 = vmatprep.subr.mxu0 0.0
    %1597 = vmatpush1.msra.mxu0 0.0
    %1598 = vmatprep.subr.mxu0 0.0
    %1599 = vmatpush1.msra.mxu0 0.0
    %1600 = vmatprep.subr.mxu0 0.0
    %1601 = vmatpush1.msra.mxu0 0.0
    %1602 = vmatprep.subr.mxu0 0.0
    %1603 = vmatpush1.msra.mxu0 0.0
    %1604 = vmatprep.subr.mxu0 0.0
    %1605 = vmatpush1.msra.mxu0 0.0
    %1606 = vmatprep.subr.mxu0 0.0
    %1607 = vmatpush1.msra.mxu0 0.0
    %1608 = vmatprep.subr.mxu0 0.0
    %1609 = vmatpush1.msra.mxu0 0.0
    %1610 = vmatprep.subr.mxu0 0.0
    %1611 = vmatpush1.msra.mxu0 0.0
    %1612 = vmatprep.subr.mxu0 0.0
    %1613 = vmatpush1.msra.mxu0 0.0
    %1614 = vmatprep.subr.mxu0 0.0
    %1615 = vmatpush1.msra.mxu0 0.0
    %1616 = vmatprep.subr.mxu0 0.0
    %1617 = vmatpush1.msra.mxu0 0.0
    %1618 = vmatprep.subr.mxu0 0.0
    %1619 = vmatpush1.msra.mxu0 0.0
    %1620 = vmatprep.subr.mxu0 0.0
    %1621 = vmatpush1.msra.mxu0 0.0
    %1622 = vmatprep.subr.mxu0 0.0
    %1623 = vmatpush1.msra.mxu0 0.0
    %1624 = vmatprep.subr.mxu0 0.0
    %1625 = vmatpush1.msra.mxu0 0.0
    %1626 = vmatprep.subr.mxu0 0.0
    %1627 = vmatpush1.msra.mxu0 0.0
    %1628 = vmatprep.subr.mxu0 0.0
    %1629 = vmatpush1.msra.mxu0 0.0
    %1630 = vmatprep.subr.mxu0 0.0
    %1631 = vmatpush1.msra.mxu0 0.0
    %1632 = vmatprep.subr.mxu0 0.0
    %1633 = vmatpush1.msra.mxu0 0.0
    %1634 = vmatprep.subr.mxu0 0.0
    %1635 = vmatpush1.msra.mxu0 0.0
    %1636 = vmatprep.subr.mxu0 0.0
    %1637 = vmatpush1.msra.mxu0 0.0
    %1638 = vmatprep.subr.mxu0 0.0
    %1639 = vmatpush1.msra.mxu0 0.0
    %1640 = vmatprep.subr.mxu0 0.0
    %1641 = vmatpush1.msra.mxu0 0.0
    %1642 = vmatprep.subr.mxu0 0.0
    %1643 = vmatpush1.msra.mxu0 0.0
    %1644 = vmatprep.mubr.f32.mxu0 0.0
    %1645 = vmatmul.mubr.f32.gmra.mrb[0].mxu0 %v1508
    %v1646 = vpop.f32.mrb[0].mxu0
    %v1647 = vadd.f32 0.0, %v1646
    %v1648 = vpop.f32.mrb[0].mxu0
    %1649 = vdwg.mxu0
    %1650 = vmatprep.subr.mxu0 0.0
    %1651 = vmatpush1.msra.mxu0 %v529
    %1652 = vmatprep.subr.mxu0 0.0
    %1653 = vmatpush1.msra.mxu0 %v530
    %1654 = vmatprep.subr.mxu0 0.0
    %1655 = vmatpush1.msra.mxu0 %v531
    %1656 = vmatprep.subr.mxu0 0.0
    %1657 = vmatpush1.msra.mxu0 %v532
    %1658 = vmatprep.subr.mxu0 0.0
    %1659 = vmatpush1.msra.mxu0 0.0
    %1660 = vmatprep.subr.mxu0 0.0
    %1661 = vmatpush1.msra.mxu0 0.0
    %1662 = vmatprep.subr.mxu0 0.0
    %1663 = vmatpush1.msra.mxu0 0.0
    %1664 = vmatprep.subr.mxu0 0.0
    %1665 = vmatpush1.msra.mxu0 0.0
    %1666 = vmatprep.subr.mxu0 0.0
    %1667 = vmatpush1.msra.mxu0 0.0
    %1668 = vmatprep.subr.mxu0 0.0
    %1669 = vmatpush1.msra.mxu0 0.0
    %1670 = vmatprep.subr.mxu0 0.0
    %1671 = vmatpush1.msra.mxu0 0.0
    %1672 = vmatprep.subr.mxu0 0.0
    %1673 = vmatpush1.msra.mxu0 0.0
    %1674 = vmatprep.subr.mxu0 0.0
    %1675 = vmatpush1.msra.mxu0 0.0
    %1676 = vmatprep.subr.mxu0 0.0
    %1677 = vmatpush1.msra.mxu0 0.0
    %1678 = vmatprep.subr.mxu0 0.0
    %1679 = vmatpush1.msra.mxu0 0.0
    %1680 = vmatprep.subr.mxu0 0.0
    %1681 = vmatpush1.msra.mxu0 0.0
    %1682 = vmatprep.subr.mxu0 0.0
    %1683 = vmatpush1.msra.mxu0 0.0
    %1684 = vmatprep.subr.mxu0 0.0
    %1685 = vmatpush1.msra.mxu0 0.0
    %1686 = vmatprep.subr.mxu0 0.0
    %1687 = vmatpush1.msra.mxu0 0.0
    %1688 = vmatprep.subr.mxu0 0.0
    %1689 = vmatpush1.msra.mxu0 0.0
    %1690 = vmatprep.subr.mxu0 0.0
    %1691 = vmatpush1.msra.mxu0 0.0
    %1692 = vmatprep.subr.mxu0 0.0
    %1693 = vmatpush1.msra.mxu0 0.0
    %1694 = vmatprep.subr.mxu0 0.0
    %1695 = vmatpush1.msra.mxu0 0.0
    %1696 = vmatprep.subr.mxu0 0.0
    %1697 = vmatpush1.msra.mxu0 0.0
    %1698 = vmatprep.subr.mxu0 0.0
    %1699 = vmatpush1.msra.mxu0 0.0
    %1700 = vmatprep.subr.mxu0 0.0
    %1701 = vmatpush1.msra.mxu0 0.0
    %1702 = vmatprep.subr.mxu0 0.0
    %1703 = vmatpush1.msra.mxu0 0.0
    %1704 = vmatprep.subr.mxu0 0.0
    %1705 = vmatpush1.msra.mxu0 0.0
    %1706 = vmatprep.subr.mxu0 0.0
    %1707 = vmatpush1.msra.mxu0 0.0
    %1708 = vmatprep.subr.mxu0 0.0
    %1709 = vmatpush1.msra.mxu0 0.0
    %1710 = vmatprep.subr.mxu0 0.0
    %1711 = vmatpush1.msra.mxu0 0.0
    %1712 = vmatprep.subr.mxu0 0.0
    %1713 = vmatpush1.msra.mxu0 0.0
    %1714 = vmatprep.mubr.f32.mxu0 0.0
    %1715 = vmatmul.mubr.f32.gmra.mrb[0].mxu0 %v1508
    %v1716 = vpop.f32.mrb[0].mxu0
    %v1717 = vadd.f32 %v533, %v1716
    %v1718 = vpop.f32.mrb[0].mxu0
    %1719 = vdwg.mxu0
    %v1721 = vrot.slane %v1577, 4
    %v1723 = vadd.f32 %v356, %v1721
    %v1724 = vxor.u32 %v1723, 2147483648
    %v1725 = vmul.f32 %v1724, 1.442695
    %v1726 = vpow.pop %v1725
    %v1727 = vadd.f32 %v1726, 1.0
    %v1728 = vrcp.pop %v1727
    %v1729 = vmul.f32 1.0, %v1728
    %v1731 = vrot.slane %v1647, 4
    %v1733 = vadd.f32 %v437, %v1731
    %v1734 = vxor.u32 %v1733, 2147483648
    %v1735 = vmul.f32 %v1734, 1.442695
    %v1736 = vpow.pop %v1735
    %v1737 = vadd.f32 %v1736, 1.0
    %v1738 = vrcp.pop %v1737
    %v1739 = vmul.f32 1.0, %v1738
    %v1741 = vrot.slane %v1717, 4
    %v1743 = vmul.f32 %v1729, %v1741
    %v1744 = vadd.f32 %v518, %v1743
    %v1745 = vtanh.pop %v1744
    %v1746 = vsub.f32 1.0, %v1739
    %v1747 = vmul.f32 %v1746, %v1745
    %v1748 = vrot.slane %v1505, 7
    %v1750 = vmul.f32 %v1739, %v1748
    %v1751 = vadd.f32 %v1747, %v1750
    %v1753 = vrot.slane %v1751, 4
    %v1754 = vsel %vm285, %v1753, 0
    %1756 = vmatprep.subr.mxu0 0.0
    %1757 = vmatpush1.msra.mxu0 %v521
    %1758 = vmatprep.subr.mxu0 0.0
    %1759 = vmatpush1.msra.mxu0 %v522
    %1760 = vmatprep.subr.mxu0 0.0
    %1761 = vmatpush1.msra.mxu0 %v523
    %1762 = vmatprep.subr.mxu0 0.0
    %1763 = vmatpush1.msra.mxu0 %v524
    %1764 = vmatprep.subr.mxu0 0.0
    %1765 = vmatpush1.msra.mxu0 0.0
    %1766 = vmatprep.subr.mxu0 0.0
    %1767 = vmatpush1.msra.mxu0 0.0
    %1768 = vmatprep.subr.mxu0 0.0
    %1769 = vmatpush1.msra.mxu0 0.0
    %1770 = vmatprep.subr.mxu0 0.0
    %1771 = vmatpush1.msra.mxu0 0.0
    %1772 = vmatprep.subr.mxu0 0.0
    %1773 = vmatpush1.msra.mxu0 0.0
    %1774 = vmatprep.subr.mxu0 0.0
    %1775 = vmatpush1.msra.mxu0 0.0
    %1776 = vmatprep.subr.mxu0 0.0
    %1777 = vmatpush1.msra.mxu0 0.0
    %1778 = vmatprep.subr.mxu0 0.0
    %1779 = vmatpush1.msra.mxu0 0.0
    %1780 = vmatprep.subr.mxu0 0.0
    %1781 = vmatpush1.msra.mxu0 0.0
    %1782 = vmatprep.subr.mxu0 0.0
    %1783 = vmatpush1.msra.mxu0 0.0
    %1784 = vmatprep.subr.mxu0 0.0
    %1785 = vmatpush1.msra.mxu0 0.0
    %1786 = vmatprep.subr.mxu0 0.0
    %1787 = vmatpush1.msra.mxu0 0.0
    %1788 = vmatprep.subr.mxu0 0.0
    %1789 = vmatpush1.msra.mxu0 0.0
    %1790 = vmatprep.subr.mxu0 0.0
    %1791 = vmatpush1.msra.mxu0 0.0
    %1792 = vmatprep.subr.mxu0 0.0
    %1793 = vmatpush1.msra.mxu0 0.0
    %1794 = vmatprep.subr.mxu0 0.0
    %1795 = vmatpush1.msra.mxu0 0.0
    %1796 = vmatprep.subr.mxu0 0.0
    %1797 = vmatpush1.msra.mxu0 0.0
    %1798 = vmatprep.subr.mxu0 0.0
    %1799 = vmatpush1.msra.mxu0 0.0
    %1800 = vmatprep.subr.mxu0 0.0
    %1801 = vmatpush1.msra.mxu0 0.0
    %1802 = vmatprep.subr.mxu0 0.0
    %1803 = vmatpush1.msra.mxu0 0.0
    %1804 = vmatprep.subr.mxu0 0.0
    %1805 = vmatpush1.msra.mxu0 0.0
    %1806 = vmatprep.subr.mxu0 0.0
    %1807 = vmatpush1.msra.mxu0 0.0
    %1808 = vmatprep.subr.mxu0 0.0
    %1809 = vmatpush1.msra.mxu0 0.0
    %1810 = vmatprep.subr.mxu0 0.0
    %1811 = vmatpush1.msra.mxu0 0.0
    %1812 = vmatprep.subr.mxu0 0.0
    %1813 = vmatpush1.msra.mxu0 0.0
    %1814 = vmatprep.subr.mxu0 0.0
    %1815 = vmatpush1.msra.mxu0 0.0
    %1816 = vmatprep.subr.mxu0 0.0
    %1817 = vmatpush1.msra.mxu0 0.0
    %1818 = vmatprep.subr.mxu0 0.0
    %1819 = vmatpush1.msra.mxu0 0.0
    %1820 = vmatprep.mubr.f32.mxu0 0.0
    %1821 = vmatmul.mubr.f32.gmra.mrb[0].mxu0 %v1754
    %v1822 = vpop.f32.mrb[0].mxu0
    %v1823 = vadd.f32 0.0, %v1822
    %v1824 = vpop.f32.mrb[0].mxu0
    %1825 = vdwg.mxu0
    %1826 = vmatprep.subr.mxu0 0.0
    %1827 = vmatpush1.msra.mxu0 %v525
    %1828 = vmatprep.subr.mxu0 0.0
    %1829 = vmatpush1.msra.mxu0 %v526
    %1830 = vmatprep.subr.mxu0 0.0
    %1831 = vmatpush1.msra.mxu0 %v527
    %1832 = vmatprep.subr.mxu0 0.0
    %1833 = vmatpush1.msra.mxu0 %v528
    %1834 = vmatprep.subr.mxu0 0.0
    %1835 = vmatpush1.msra.mxu0 0.0
    %1836 = vmatprep.subr.mxu0 0.0
    %1837 = vmatpush1.msra.mxu0 0.0
    %1838 = vmatprep.subr.mxu0 0.0
    %1839 = vmatpush1.msra.mxu0 0.0
    %1840 = vmatprep.subr.mxu0 0.0
    %1841 = vmatpush1.msra.mxu0 0.0
    %1842 = vmatprep.subr.mxu0 0.0
    %1843 = vmatpush1.msra.mxu0 0.0
    %1844 = vmatprep.subr.mxu0 0.0
    %1845 = vmatpush1.msra.mxu0 0.0
    %1846 = vmatprep.subr.mxu0 0.0
    %1847 = vmatpush1.msra.mxu0 0.0
    %1848 = vmatprep.subr.mxu0 0.0
    %1849 = vmatpush1.msra.mxu0 0.0
    %1850 = vmatprep.subr.mxu0 0.0
    %1851 = vmatpush1.msra.mxu0 0.0
    %1852 = vmatprep.subr.mxu0 0.0
    %1853 = vmatpush1.msra.mxu0 0.0
    %1854 = vmatprep.subr.mxu0 0.0
    %1855 = vmatpush1.msra.mxu0 0.0
    %1856 = vmatprep.subr.mxu0 0.0
    %1857 = vmatpush1.msra.mxu0 0.0
    %1858 = vmatprep.subr.mxu0 0.0
    %1859 = vmatpush1.msra.mxu0 0.0
    %1860 = vmatprep.subr.mxu0 0.0
    %1861 = vmatpush1.msra.mxu0 0.0
    %1862 = vmatprep.subr.mxu0 0.0
    %1863 = vmatpush1.msra.mxu0 0.0
    %1864 = vmatprep.subr.mxu0 0.0
    %1865 = vmatpush1.msra.mxu0 0.0
    %1866 = vmatprep.subr.mxu0 0.0
    %1867 = vmatpush1.msra.mxu0 0.0
    %1868 = vmatprep.subr.mxu0 0.0
    %1869 = vmatpush1.msra.mxu0 0.0
    %1870 = vmatprep.subr.mxu0 0.0
    %1871 = vmatpush1.msra.mxu0 0.0
    %1872 = vmatprep.subr.mxu0 0.0
    %1873 = vmatpush1.msra.mxu0 0.0
    %1874 = vmatprep.subr.mxu0 0.0
    %1875 = vmatpush1.msra.mxu0 0.0
    %1876 = vmatprep.subr.mxu0 0.0
    %1877 = vmatpush1.msra.mxu0 0.0
    %1878 = vmatprep.subr.mxu0 0.0
    %1879 = vmatpush1.msra.mxu0 0.0
    %1880 = vmatprep.subr.mxu0 0.0
    %1881 = vmatpush1.msra.mxu0 0.0
    %1882 = vmatprep.subr.mxu0 0.0
    %1883 = vmatpush1.msra.mxu0 0.0
    %1884 = vmatprep.subr.mxu0 0.0
    %1885 = vmatpush1.msra.mxu0 0.0
    %1886 = vmatprep.subr.mxu0 0.0
    %1887 = vmatpush1.msra.mxu0 0.0
    %1888 = vmatprep.subr.mxu0 0.0
    %1889 = vmatpush1.msra.mxu0 0.0
    %1890 = vmatprep.mubr.f32.mxu0 0.0
    %1891 = vmatmul.mubr.f32.gmra.mrb[0].mxu0 %v1754
    %v1892 = vpop.f32.mrb[0].mxu0
    %v1893 = vadd.f32 0.0, %v1892
    %v1894 = vpop.f32.mrb[0].mxu0
    %1895 = vdwg.mxu0
    %1896 = vmatprep.subr.mxu0 0.0
    %1897 = vmatpush1.msra.mxu0 %v529
    %1898 = vmatprep.subr.mxu0 0.0
    %1899 = vmatpush1.msra.mxu0 %v530
    %1900 = vmatprep.subr.mxu0 0.0
    %1901 = vmatpush1.msra.mxu0 %v531
    %1902 = vmatprep.subr.mxu0 0.0
    %1903 = vmatpush1.msra.mxu0 %v532
    %1904 = vmatprep.subr.mxu0 0.0
    %1905 = vmatpush1.msra.mxu0 0.0
    %1906 = vmatprep.subr.mxu0 0.0
    %1907 = vmatpush1.msra.mxu0 0.0
    %1908 = vmatprep.subr.mxu0 0.0
    %1909 = vmatpush1.msra.mxu0 0.0
    %1910 = vmatprep.subr.mxu0 0.0
    %1911 = vmatpush1.msra.mxu0 0.0
    %1912 = vmatprep.subr.mxu0 0.0
    %1913 = vmatpush1.msra.mxu0 0.0
    %1914 = vmatprep.subr.mxu0 0.0
    %1915 = vmatpush1.msra.mxu0 0.0
    %1916 = vmatprep.subr.mxu0 0.0
    %1917 = vmatpush1.msra.mxu0 0.0
    %1918 = vmatprep.subr.mxu0 0.0
    %1919 = vmatpush1.msra.mxu0 0.0
    %1920 = vmatprep.subr.mxu0 0.0
    %1921 = vmatpush1.msra.mxu0 0.0
    %1922 = vmatprep.subr.mxu0 0.0
    %1923 = vmatpush1.msra.mxu0 0.0
    %1924 = vmatprep.subr.mxu0 0.0
    %1925 = vmatpush1.msra.mxu0 0.0
    %1926 = vmatprep.subr.mxu0 0.0
    %1927 = vmatpush1.msra.mxu0 0.0
    %1928 = vmatprep.subr.mxu0 0.0
    %1929 = vmatpush1.msra.mxu0 0.0
    %1930 = vmatprep.subr.mxu0 0.0
    %1931 = vmatpush1.msra.mxu0 0.0
    %1932 = vmatprep.subr.mxu0 0.0
    %1933 = vmatpush1.msra.mxu0 0.0
    %1934 = vmatprep.subr.mxu0 0.0
    %1935 = vmatpush1.msra.mxu0 0.0
    %1936 = vmatprep.subr.mxu0 0.0
    %1937 = vmatpush1.msra.mxu0 0.0
    %1938 = vmatprep.subr.mxu0 0.0
    %1939 = vmatpush1.msra.mxu0 0.0
    %1940 = vmatprep.subr.mxu0 0.0
    %1941 = vmatpush1.msra.mxu0 0.0
    %1942 = vmatprep.subr.mxu0 0.0
    %1943 = vmatpush1.msra.mxu0 0.0
    %1944 = vmatprep.subr.mxu0 0.0
    %1945 = vmatpush1.msra.mxu0 0.0
    %1946 = vmatprep.subr.mxu0 0.0
    %1947 = vmatpush1.msra.mxu0 0.0
    %1948 = vmatprep.subr.mxu0 0.0
    %1949 = vmatpush1.msra.mxu0 0.0
    %1950 = vmatprep.subr.mxu0 0.0
    %1951 = vmatpush1.msra.mxu0 0.0
    %1952 = vmatprep.subr.mxu0 0.0
    %1953 = vmatpush1.msra.mxu0 0.0
    %1954 = vmatprep.subr.mxu0 0.0
    %1955 = vmatpush1.msra.mxu0 0.0
    %1956 = vmatprep.subr.mxu0 0.0
    %1957 = vmatpush1.msra.mxu0 0.0
    %1958 = vmatprep.subr.mxu0 0.0
    %1959 = vmatpush1.msra.mxu0 0.0
    %1960 = vmatprep.mubr.f32.mxu0 0.0
    %1961 = vmatmul.mubr.f32.gmra.mrb[0].mxu0 %v1754
    %v1962 = vpop.f32.mrb[0].mxu0
    %v1963 = vadd.f32 %v533, %v1962
    %v1964 = vpop.f32.mrb[0].mxu0
    %1965 = vdwg.mxu0
    %v1967 = vrot.slane %v1823, 3
    %v1969 = vadd.f32 %v356, %v1967
    %v1970 = vxor.u32 %v1969, 2147483648
    %v1971 = vmul.f32 %v1970, 1.442695
    %v1972 = vpow.pop %v1971
    %v1973 = vadd.f32 %v1972, 1.0
    %v1974 = vrcp.pop %v1973
    %v1975 = vmul.f32 1.0, %v1974
    %v1977 = vrot.slane %v1893, 3
    %v1979 = vadd.f32 %v437, %v1977
    %v1980 = vxor.u32 %v1979, 2147483648
    %v1981 = vmul.f32 %v1980, 1.442695
    %v1982 = vpow.pop %v1981
    %v1983 = vadd.f32 %v1982, 1.0
    %v1984 = vrcp.pop %v1983
    %v1985 = vmul.f32 1.0, %v1984
    %v1987 = vrot.slane %v1963, 3
    %v1989 = vmul.f32 %v1975, %v1987
    %v1990 = vadd.f32 %v518, %v1989
    %v1991 = vtanh.pop %v1990
    %v1992 = vsub.f32 1.0, %v1985
    %v1993 = vmul.f32 %v1992, %v1991
    %v1994 = vrot.slane %v1751, 7
    %v1996 = vmul.f32 %v1985, %v1994
    %v1997 = vadd.f32 %v1993, %v1996
    %v1999 = vrot.slane %v1997, 5
    %v2000 = vsel %vm285, %v1999, 0
    %2002 = vmatprep.subr.mxu0 0.0
    %2003 = vmatpush1.msra.mxu0 %v521
    %2004 = vmatprep.subr.mxu0 0.0
    %2005 = vmatpush1.msra.mxu0 %v522
    %2006 = vmatprep.subr.mxu0 0.0
    %2007 = vmatpush1.msra.mxu0 %v523
    %2008 = vmatprep.subr.mxu0 0.0
    %2009 = vmatpush1.msra.mxu0 %v524
    %2010 = vmatprep.subr.mxu0 0.0
    %2011 = vmatpush1.msra.mxu0 0.0
    %2012 = vmatprep.subr.mxu0 0.0
    %2013 = vmatpush1.msra.mxu0 0.0
    %2014 = vmatprep.subr.mxu0 0.0
    %2015 = vmatpush1.msra.mxu0 0.0
    %2016 = vmatprep.subr.mxu0 0.0
    %2017 = vmatpush1.msra.mxu0 0.0
    %2018 = vmatprep.subr.mxu0 0.0
    %2019 = vmatpush1.msra.mxu0 0.0
    %2020 = vmatprep.subr.mxu0 0.0
    %2021 = vmatpush1.msra.mxu0 0.0
    %2022 = vmatprep.subr.mxu0 0.0
    %2023 = vmatpush1.msra.mxu0 0.0
    %2024 = vmatprep.subr.mxu0 0.0
    %2025 = vmatpush1.msra.mxu0 0.0
    %2026 = vmatprep.subr.mxu0 0.0
    %2027 = vmatpush1.msra.mxu0 0.0
    %2028 = vmatprep.subr.mxu0 0.0
    %2029 = vmatpush1.msra.mxu0 0.0
    %2030 = vmatprep.subr.mxu0 0.0
    %2031 = vmatpush1.msra.mxu0 0.0
    %2032 = vmatprep.subr.mxu0 0.0
    %2033 = vmatpush1.msra.mxu0 0.0
    %2034 = vmatprep.subr.mxu0 0.0
    %2035 = vmatpush1.msra.mxu0 0.0
    %2036 = vmatprep.subr.mxu0 0.0
    %2037 = vmatpush1.msra.mxu0 0.0
    %2038 = vmatprep.subr.mxu0 0.0
    %2039 = vmatpush1.msra.mxu0 0.0
    %2040 = vmatprep.subr.mxu0 0.0
    %2041 = vmatpush1.msra.mxu0 0.0
    %2042 = vmatprep.subr.mxu0 0.0
    %2043 = vmatpush1.msra.mxu0 0.0
    %2044 = vmatprep.subr.mxu0 0.0
    %2045 = vmatpush1.msra.mxu0 0.0
    %2046 = vmatprep.subr.mxu0 0.0
    %2047 = vmatpush1.msra.mxu0 0.0
    %2048 = vmatprep.subr.mxu0 0.0
    %2049 = vmatpush1.msra.mxu0 0.0
    %2050 = vmatprep.subr.mxu0 0.0
    %2051 = vmatpush1.msra.mxu0 0.0
    %2052 = vmatprep.subr.mxu0 0.0
    %2053 = vmatpush1.msra.mxu0 0.0
    %2054 = vmatprep.subr.mxu0 0.0
    %2055 = vmatpush1.msra.mxu0 0.0
    %2056 = vmatprep.subr.mxu0 0.0
    %2057 = vmatpush1.msra.mxu0 0.0
    %2058 = vmatprep.subr.mxu0 0.0
    %2059 = vmatpush1.msra.mxu0 0.0
    %2060 = vmatprep.subr.mxu0 0.0
    %2061 = vmatpush1.msra.mxu0 0.0
    %2062 = vmatprep.subr.mxu0 0.0
    %2063 = vmatpush1.msra.mxu0 0.0
    %2064 = vmatprep.subr.mxu0 0.0
    %2065 = vmatpush1.msra.mxu0 0.0
    %2066 = vmatprep.mubr.f32.mxu0 0.0
    %2067 = vmatmul.mubr.f32.gmra.mrb[0].mxu0 %v2000
    %v2068 = vpop.f32.mrb[0].mxu0
    %v2069 = vadd.f32 0.0, %v2068
    %v2070 = vpop.f32.mrb[0].mxu0
    %2071 = vdwg.mxu0
    %2072 = vmatprep.subr.mxu0 0.0
    %2073 = vmatpush1.msra.mxu0 %v525
    %2074 = vmatprep.subr.mxu0 0.0
    %2075 = vmatpush1.msra.mxu0 %v526
    %2076 = vmatprep.subr.mxu0 0.0
    %2077 = vmatpush1.msra.mxu0 %v527
    %2078 = vmatprep.subr.mxu0 0.0
    %2079 = vmatpush1.msra.mxu0 %v528
    %2080 = vmatprep.subr.mxu0 0.0
    %2081 = vmatpush1.msra.mxu0 0.0
    %2082 = vmatprep.subr.mxu0 0.0
    %2083 = vmatpush1.msra.mxu0 0.0
    %2084 = vmatprep.subr.mxu0 0.0
    %2085 = vmatpush1.msra.mxu0 0.0
    %2086 = vmatprep.subr.mxu0 0.0
    %2087 = vmatpush1.msra.mxu0 0.0
    %2088 = vmatprep.subr.mxu0 0.0
    %2089 = vmatpush1.msra.mxu0 0.0
    %2090 = vmatprep.subr.mxu0 0.0
    %2091 = vmatpush1.msra.mxu0 0.0
    %2092 = vmatprep.subr.mxu0 0.0
    %2093 = vmatpush1.msra.mxu0 0.0
    %2094 = vmatprep.subr.mxu0 0.0
    %2095 = vmatpush1.msra.mxu0 0.0
    %2096 = vmatprep.subr.mxu0 0.0
    %2097 = vmatpush1.msra.mxu0 0.0
    %2098 = vmatprep.subr.mxu0 0.0
    %2099 = vmatpush1.msra.mxu0 0.0
    %2100 = vmatprep.subr.mxu0 0.0
    %2101 = vmatpush1.msra.mxu0 0.0
    %2102 = vmatprep.subr.mxu0 0.0
    %2103 = vmatpush1.msra.mxu0 0.0
    %2104 = vmatprep.subr.mxu0 0.0
    %2105 = vmatpush1.msra.mxu0 0.0
    %2106 = vmatprep.subr.mxu0 0.0
    %2107 = vmatpush1.msra.mxu0 0.0
    %2108 = vmatprep.subr.mxu0 0.0
    %2109 = vmatpush1.msra.mxu0 0.0
    %2110 = vmatprep.subr.mxu0 0.0
    %2111 = vmatpush1.msra.mxu0 0.0
    %2112 = vmatprep.subr.mxu0 0.0
    %2113 = vmatpush1.msra.mxu0 0.0
    %2114 = vmatprep.subr.mxu0 0.0
    %2115 = vmatpush1.msra.mxu0 0.0
    %2116 = vmatprep.subr.mxu0 0.0
    %2117 = vmatpush1.msra.mxu0 0.0
    %2118 = vmatprep.subr.mxu0 0.0
    %2119 = vmatpush1.msra.mxu0 0.0
    %2120 = vmatprep.subr.mxu0 0.0
    %2121 = vmatpush1.msra.mxu0 0.0
    %2122 = vmatprep.subr.mxu0 0.0
    %2123 = vmatpush1.msra.mxu0 0.0
    %2124 = vmatprep.subr.mxu0 0.0
    %2125 = vmatpush1.msra.mxu0 0.0
    %2126 = vmatprep.subr.mxu0 0.0
    %2127 = vmatpush1.msra.mxu0 0.0
    %2128 = vmatprep.subr.mxu0 0.0
    %2129 = vmatpush1.msra.mxu0 0.0
    %2130 = vmatprep.subr.mxu0 0.0
    %2131 = vmatpush1.msra.mxu0 0.0
    %2132 = vmatprep.subr.mxu0 0.0
    %2133 = vmatpush1.msra.mxu0 0.0
    %2134 = vmatprep.subr.mxu0 0.0
    %2135 = vmatpush1.msra.mxu0 0.0
    %2136 = vmatprep.mubr.f32.mxu0 0.0
    %2137 = vmatmul.mubr.f32.gmra.mrb[0].mxu0 %v2000
    %v2138 = vpop.f32.mrb[0].mxu0
    %v2139 = vadd.f32 0.0, %v2138
    %v2140 = vpop.f32.mrb[0].mxu0
    %2141 = vdwg.mxu0
    %2142 = vmatprep.subr.mxu0 0.0
    %2143 = vmatpush1.msra.mxu0 %v529
    %2144 = vmatprep.subr.mxu0 0.0
    %2145 = vmatpush1.msra.mxu0 %v530
    %2146 = vmatprep.subr.mxu0 0.0
    %2147 = vmatpush1.msra.mxu0 %v531
    %2148 = vmatprep.subr.mxu0 0.0
    %2149 = vmatpush1.msra.mxu0 %v532
    %2150 = vmatprep.subr.mxu0 0.0
    %2151 = vmatpush1.msra.mxu0 0.0
    %2152 = vmatprep.subr.mxu0 0.0
    %2153 = vmatpush1.msra.mxu0 0.0
    %2154 = vmatprep.subr.mxu0 0.0
    %2155 = vmatpush1.msra.mxu0 0.0
    %2156 = vmatprep.subr.mxu0 0.0
    %2157 = vmatpush1.msra.mxu0 0.0
    %2158 = vmatprep.subr.mxu0 0.0
    %2159 = vmatpush1.msra.mxu0 0.0
    %2160 = vmatprep.subr.mxu0 0.0
    %2161 = vmatpush1.msra.mxu0 0.0
    %2162 = vmatprep.subr.mxu0 0.0
    %2163 = vmatpush1.msra.mxu0 0.0
    %2164 = vmatprep.subr.mxu0 0.0
    %2165 = vmatpush1.msra.mxu0 0.0
    %2166 = vmatprep.subr.mxu0 0.0
    %2167 = vmatpush1.msra.mxu0 0.0
    %2168 = vmatprep.subr.mxu0 0.0
    %2169 = vmatpush1.msra.mxu0 0.0
    %2170 = vmatprep.subr.mxu0 0.0
    %2171 = vmatpush1.msra.mxu0 0.0
    %2172 = vmatprep.subr.mxu0 0.0
    %2173 = vmatpush1.msra.mxu0 0.0
    %2174 = vmatprep.subr.mxu0 0.0
    %2175 = vmatpush1.msra.mxu0 0.0
    %2176 = vmatprep.subr.mxu0 0.0
    %2177 = vmatpush1.msra.mxu0 0.0
    %2178 = vmatprep.subr.mxu0 0.0
    %2179 = vmatpush1.msra.mxu0 0.0
    %2180 = vmatprep.subr.mxu0 0.0
    %2181 = vmatpush1.msra.mxu0 0.0
    %2182 = vmatprep.subr.mxu0 0.0
    %2183 = vmatpush1.msra.mxu0 0.0
    %2184 = vmatprep.subr.mxu0 0.0
    %2185 = vmatpush1.msra.mxu0 0.0
    %2186 = vmatprep.subr.mxu0 0.0
    %2187 = vmatpush1.msra.mxu0 0.0
    %2188 = vmatprep.subr.mxu0 0.0
    %2189 = vmatpush1.msra.mxu0 0.0
    %2190 = vmatprep.subr.mxu0 0.0
    %2191 = vmatpush1.msra.mxu0 0.0
    %2192 = vmatprep.subr.mxu0 0.0
    %2193 = vmatpush1.msra.mxu0 0.0
    %2194 = vmatprep.subr.mxu0 0.0
    %2195 = vmatpush1.msra.mxu0 0.0
    %2196 = vmatprep.subr.mxu0 0.0
    %2197 = vmatpush1.msra.mxu0 0.0
    %2198 = vmatprep.subr.mxu0 0.0
    %2199 = vmatpush1.msra.mxu0 0.0
    %2200 = vmatprep.subr.mxu0 0.0
    %2201 = vmatpush1.msra.mxu0 0.0
    %2202 = vmatprep.subr.mxu0 0.0
    %2203 = vmatpush1.msra.mxu0 0.0
    %2204 = vmatprep.subr.mxu0 0.0
    %2205 = vmatpush1.msra.mxu0 0.0
    %2206 = vmatprep.mubr.f32.mxu0 0.0
    %2207 = vmatmul.mubr.f32.gmra.mrb[0].mxu0 %v2000
    %v2208 = vpop.f32.mrb[0].mxu0
    %v2209 = vadd.f32 %v533, %v2208
    %v2210 = vpop.f32.mrb[0].mxu0
    %2211 = vdwg.mxu0
    %v2213 = vrot.slane %v2069, 2
    %v2215 = vadd.f32 %v356, %v2213
    %v2216 = vxor.u32 %v2215, 2147483648
    %v2217 = vmul.f32 %v2216, 1.442695
    %v2218 = vpow.pop %v2217
    %v2219 = vadd.f32 %v2218, 1.0
    %v2220 = vrcp.pop %v2219
    %v2221 = vmul.f32 1.0, %v2220
    %v2223 = vrot.slane %v2139, 2
    %v2225 = vadd.f32 %v437, %v2223
    %v2226 = vxor.u32 %v2225, 2147483648
    %v2227 = vmul.f32 %v2226, 1.442695
    %v2228 = vpow.pop %v2227
    %v2229 = vadd.f32 %v2228, 1.0
    %v2230 = vrcp.pop %v2229
    %v2231 = vmul.f32 1.0, %v2230
    %v2233 = vrot.slane %v2209, 2
    %v2235 = vmul.f32 %v2221, %v2233
    %v2236 = vadd.f32 %v518, %v2235
    %v2237 = vtanh.pop %v2236
    %v2238 = vsub.f32 1.0, %v2231
    %v2239 = vmul.f32 %v2238, %v2237
    %v2240 = vrot.slane %v1997, 7
    %v2242 = vmul.f32 %v2231, %v2240
    %v2243 = vadd.f32 %v2239, %v2242
    %v2245 = vrot.slane %v2243, 6
    %v2246 = vsel %vm285, %v2245, 0
    %2248 = vmatprep.subr.mxu0 0.0
    %2249 = vmatpush1.msra.mxu0 %v521
    %2250 = vmatprep.subr.mxu0 0.0
    %2251 = vmatpush1.msra.mxu0 %v522
    %2252 = vmatprep.subr.mxu0 0.0
    %2253 = vmatpush1.msra.mxu0 %v523
    %2254 = vmatprep.subr.mxu0 0.0
    %2255 = vmatpush1.msra.mxu0 %v524
    %2256 = vmatprep.subr.mxu0 0.0
    %2257 = vmatpush1.msra.mxu0 0.0
    %2258 = vmatprep.subr.mxu0 0.0
    %2259 = vmatpush1.msra.mxu0 0.0
    %2260 = vmatprep.subr.mxu0 0.0
    %2261 = vmatpush1.msra.mxu0 0.0
    %2262 = vmatprep.subr.mxu0 0.0
    %2263 = vmatpush1.msra.mxu0 0.0
    %2264 = vmatprep.subr.mxu0 0.0
    %2265 = vmatpush1.msra.mxu0 0.0
    %2266 = vmatprep.subr.mxu0 0.0
    %2267 = vmatpush1.msra.mxu0 0.0
    %2268 = vmatprep.subr.mxu0 0.0
    %2269 = vmatpush1.msra.mxu0 0.0
    %2270 = vmatprep.subr.mxu0 0.0
    %2271 = vmatpush1.msra.mxu0 0.0
    %2272 = vmatprep.subr.mxu0 0.0
    %2273 = vmatpush1.msra.mxu0 0.0
    %2274 = vmatprep.subr.mxu0 0.0
    %2275 = vmatpush1.msra.mxu0 0.0
    %2276 = vmatprep.subr.mxu0 0.0
    %2277 = vmatpush1.msra.mxu0 0.0
    %2278 = vmatprep.subr.mxu0 0.0
    %2279 = vmatpush1.msra.mxu0 0.0
    %2280 = vmatprep.subr.mxu0 0.0
    %2281 = vmatpush1.msra.mxu0 0.0
    %2282 = vmatprep.subr.mxu0 0.0
    %2283 = vmatpush1.msra.mxu0 0.0
    %2284 = vmatprep.subr.mxu0 0.0
    %2285 = vmatpush1.msra.mxu0 0.0
    %2286 = vmatprep.subr.mxu0 0.0
    %2287 = vmatpush1.msra.mxu0 0.0
    %2288 = vmatprep.subr.mxu0 0.0
    %2289 = vmatpush1.msra.mxu0 0.0
    %2290 = vmatprep.subr.mxu0 0.0
    %2291 = vmatpush1.msra.mxu0 0.0
    %2292 = vmatprep.subr.mxu0 0.0
    %2293 = vmatpush1.msra.mxu0 0.0
    %2294 = vmatprep.subr.mxu0 0.0
    %2295 = vmatpush1.msra.mxu0 0.0
    %2296 = vmatprep.subr.mxu0 0.0
    %2297 = vmatpush1.msra.mxu0 0.0
    %2298 = vmatprep.subr.mxu0 0.0
    %2299 = vmatpush1.msra.mxu0 0.0
    %2300 = vmatprep.subr.mxu0 0.0
    %2301 = vmatpush1.msra.mxu0 0.0
    %2302 = vmatprep.subr.mxu0 0.0
    %2303 = vmatpush1.msra.mxu0 0.0
    %2304 = vmatprep.subr.mxu0 0.0
    %2305 = vmatpush1.msra.mxu0 0.0
    %2306 = vmatprep.subr.mxu0 0.0
    %2307 = vmatpush1.msra.mxu0 0.0
    %2308 = vmatprep.subr.mxu0 0.0
    %2309 = vmatpush1.msra.mxu0 0.0
    %2310 = vmatprep.subr.mxu0 0.0
    %2311 = vmatpush1.msra.mxu0 0.0
    %2312 = vmatprep.mubr.f32.mxu0 0.0
    %2313 = vmatmul.mubr.f32.gmra.mrb[0].mxu0 %v2246
    %v2314 = vpop.f32.mrb[0].mxu0
    %v2315 = vadd.f32 0.0, %v2314
    %v2316 = vpop.f32.mrb[0].mxu0
    %2317 = vdwg.mxu0
    %2318 = vmatprep.subr.mxu0 0.0
    %2319 = vmatpush1.msra.mxu0 %v525
    %2320 = vmatprep.subr.mxu0 0.0
    %2321 = vmatpush1.msra.mxu0 %v526
    %2322 = vmatprep.subr.mxu0 0.0
    %2323 = vmatpush1.msra.mxu0 %v527
    %2324 = vmatprep.subr.mxu0 0.0
    %2325 = vmatpush1.msra.mxu0 %v528
    %2326 = vmatprep.subr.mxu0 0.0
    %2327 = vmatpush1.msra.mxu0 0.0
    %2328 = vmatprep.subr.mxu0 0.0
    %2329 = vmatpush1.msra.mxu0 0.0
    %2330 = vmatprep.subr.mxu0 0.0
    %2331 = vmatpush1.msra.mxu0 0.0
    %2332 = vmatprep.subr.mxu0 0.0
    %2333 = vmatpush1.msra.mxu0 0.0
    %2334 = vmatprep.subr.mxu0 0.0
    %2335 = vmatpush1.msra.mxu0 0.0
    %2336 = vmatprep.subr.mxu0 0.0
    %2337 = vmatpush1.msra.mxu0 0.0
    %2338 = vmatprep.subr.mxu0 0.0
    %2339 = vmatpush1.msra.mxu0 0.0
    %2340 = vmatprep.subr.mxu0 0.0
    %2341 = vmatpush1.msra.mxu0 0.0
    %2342 = vmatprep.subr.mxu0 0.0
    %2343 = vmatpush1.msra.mxu0 0.0
    %2344 = vmatprep.subr.mxu0 0.0
    %2345 = vmatpush1.msra.mxu0 0.0
    %2346 = vmatprep.subr.mxu0 0.0
    %2347 = vmatpush1.msra.mxu0 0.0
    %2348 = vmatprep.subr.mxu0 0.0
    %2349 = vmatpush1.msra.mxu0 0.0
    %2350 = vmatprep.subr.mxu0 0.0
    %2351 = vmatpush1.msra.mxu0 0.0
    %2352 = vmatprep.subr.mxu0 0.0
    %2353 = vmatpush1.msra.mxu0 0.0
    %2354 = vmatprep.subr.mxu0 0.0
    %2355 = vmatpush1.msra.mxu0 0.0
    %2356 = vmatprep.subr.mxu0 0.0
    %2357 = vmatpush1.msra.mxu0 0.0
    %2358 = vmatprep.subr.mxu0 0.0
    %2359 = vmatpush1.msra.mxu0 0.0
    %2360 = vmatprep.subr.mxu0 0.0
    %2361 = vmatpush1.msra.mxu0 0.0
    %2362 = vmatprep.subr.mxu0 0.0
    %2363 = vmatpush1.msra.mxu0 0.0
    %2364 = vmatprep.subr.mxu0 0.0
    %2365 = vmatpush1.msra.mxu0 0.0
    %2366 = vmatprep.subr.mxu0 0.0
    %2367 = vmatpush1.msra.mxu0 0.0
    %2368 = vmatprep.subr.mxu0 0.0
    %2369 = vmatpush1.msra.mxu0 0.0
    %2370 = vmatprep.subr.mxu0 0.0
    %2371 = vmatpush1.msra.mxu0 0.0
    %2372 = vmatprep.subr.mxu0 0.0
    %2373 = vmatpush1.msra.mxu0 0.0
    %2374 = vmatprep.subr.mxu0 0.0
    %2375 = vmatpush1.msra.mxu0 0.0
    %2376 = vmatprep.subr.mxu0 0.0
    %2377 = vmatpush1.msra.mxu0 0.0
    %2378 = vmatprep.subr.mxu0 0.0
    %2379 = vmatpush1.msra.mxu0 0.0
    %2380 = vmatprep.subr.mxu0 0.0
    %2381 = vmatpush1.msra.mxu0 0.0
    %2382 = vmatprep.mubr.f32.mxu0 0.0
    %2383 = vmatmul.mubr.f32.gmra.mrb[0].mxu0 %v2246
    %v2384 = vpop.f32.mrb[0].mxu0
    %v2385 = vadd.f32 0.0, %v2384
    %v2386 = vpop.f32.mrb[0].mxu0
    %2387 = vdwg.mxu0
    %2388 = vmatprep.subr.mxu0 0.0
    %2389 = vmatpush1.msra.mxu0 %v529
    %2390 = vmatprep.subr.mxu0 0.0
    %2391 = vmatpush1.msra.mxu0 %v530
    %2392 = vmatprep.subr.mxu0 0.0
    %2393 = vmatpush1.msra.mxu0 %v531
    %2394 = vmatprep.subr.mxu0 0.0
    %2395 = vmatpush1.msra.mxu0 %v532
    %2396 = vmatprep.subr.mxu0 0.0
    %2397 = vmatpush1.msra.mxu0 0.0
    %2398 = vmatprep.subr.mxu0 0.0
    %2399 = vmatpush1.msra.mxu0 0.0
    %2400 = vmatprep.subr.mxu0 0.0
    %2401 = vmatpush1.msra.mxu0 0.0
    %2402 = vmatprep.subr.mxu0 0.0
    %2403 = vmatpush1.msra.mxu0 0.0
    %2404 = vmatprep.subr.mxu0 0.0
    %2405 = vmatpush1.msra.mxu0 0.0
    %2406 = vmatprep.subr.mxu0 0.0
    %2407 = vmatpush1.msra.mxu0 0.0
    %2408 = vmatprep.subr.mxu0 0.0
    %2409 = vmatpush1.msra.mxu0 0.0
    %2410 = vmatprep.subr.mxu0 0.0
    %2411 = vmatpush1.msra.mxu0 0.0
    %2412 = vmatprep.subr.mxu0 0.0
    %2413 = vmatpush1.msra.mxu0 0.0
    %2414 = vmatprep.subr.mxu0 0.0
    %2415 = vmatpush1.msra.mxu0 0.0
    %2416 = vmatprep.subr.mxu0 0.0
    %2417 = vmatpush1.msra.mxu0 0.0
    %2418 = vmatprep.subr.mxu0 0.0
    %2419 = vmatpush1.msra.mxu0 0.0
    %2420 = vmatprep.subr.mxu0 0.0
    %2421 = vmatpush1.msra.mxu0 0.0
    %2422 = vmatprep.subr.mxu0 0.0
    %2423 = vmatpush1.msra.mxu0 0.0
    %2424 = vmatprep.subr.mxu0 0.0
    %2425 = vmatpush1.msra.mxu0 0.0
    %2426 = vmatprep.subr.mxu0 0.0
    %2427 = vmatpush1.msra.mxu0 0.0
    %2428 = vmatprep.subr.mxu0 0.0
    %2429 = vmatpush1.msra.mxu0 0.0
    %2430 = vmatprep.subr.mxu0 0.0
    %2431 = vmatpush1.msra.mxu0 0.0
    %2432 = vmatprep.subr.mxu0 0.0
    %2433 = vmatpush1.msra.mxu0 0.0
    %2434 = vmatprep.subr.mxu0 0.0
    %2435 = vmatpush1.msra.mxu0 0.0
    %2436 = vmatprep.subr.mxu0 0.0
    %2437 = vmatpush1.msra.mxu0 0.0
    %2438 = vmatprep.subr.mxu0 0.0
    %2439 = vmatpush1.msra.mxu0 0.0
    %2440 = vmatprep.subr.mxu0 0.0
    %2441 = vmatpush1.msra.mxu0 0.0
    %2442 = vmatprep.subr.mxu0 0.0
    %2443 = vmatpush1.msra.mxu0 0.0
    %2444 = vmatprep.subr.mxu0 0.0
    %2445 = vmatpush1.msra.mxu0 0.0
    %2446 = vmatprep.subr.mxu0 0.0
    %2447 = vmatpush1.msra.mxu0 0.0
    %2448 = vmatprep.subr.mxu0 0.0
    %2449 = vmatpush1.msra.mxu0 0.0
    %2450 = vmatprep.subr.mxu0 0.0
    %2451 = vmatpush1.msra.mxu0 0.0
    %2452 = vmatprep.mubr.f32.mxu0 0.0
    %2453 = vmatmul.mubr.f32.gmra.mrb[0].mxu0 %v2246
    %v2454 = vpop.f32.mrb[0].mxu0
    %v2455 = vadd.f32 %v533, %v2454
    %v2456 = vpop.f32.mrb[0].mxu0
    %2457 = vdwg.mxu0
    %v2459 = vrot.slane %v2315, 1
    %v2461 = vadd.f32 %v356, %v2459
    %v2462 = vxor.u32 %v2461, 2147483648
    %v2463 = vmul.f32 %v2462, 1.442695
    %v2464 = vpow.pop %v2463
    %v2465 = vadd.f32 %v2464, 1.0
    %v2466 = vrcp.pop %v2465
    %v2467 = vmul.f32 1.0, %v2466
    %v2469 = vrot.slane %v2385, 1
    %v2471 = vadd.f32 %v437, %v2469
    %v2472 = vxor.u32 %v2471, 2147483648
    %v2473 = vmul.f32 %v2472, 1.442695
    %v2474 = vpow.pop %v2473
    %v2475 = vadd.f32 %v2474, 1.0
    %v2476 = vrcp.pop %v2475
    %v2477 = vmul.f32 1.0, %v2476
    %v2479 = vrot.slane %v2455, 1
    %v2481 = vmul.f32 %v2467, %v2479
    %v2482 = vadd.f32 %v518, %v2481
    %v2483 = vtanh.pop %v2482
    %v2484 = vsub.f32 1.0, %v2477
    %v2485 = vmul.f32 %v2484, %v2483
    %v2486 = vrot.slane %v2243, 7
    %v2488 = vmul.f32 %v2477, %v2486
    %v2489 = vadd.f32 %v2485, %v2488
    %vm2490 = vcmask 1040384
    %v2491 = vsel %vm2490, %v768, %v1013
    %vm2492 = vcmask 1041408
    %v2493 = vsel %vm2492, %v2491, %v1259
    %vm2494 = vcmask 1042432
    %v2495 = vsel %vm2494, %v2493, %v1505
    %vm2496 = vcmask 1043456
    %v2497 = vsel %vm2496, %v2495, %v1751
    %vm2498 = vcmask 1044480
    %v2499 = vsel %vm2498, %v2497, %v1997
    %vm2500 = vcmask 1045504
    %v2501 = vsel %vm2500, %v2499, %v2243
    %vm2502 = vcmask 1046528
    %v2503 = vsel %vm2502, %v2501, %v2489
    %2504 = vst.msk [vmem:[#allocation17] sm:$0xff] %vm285, %v2503
    %vm2505 = vcmask 261127
    %2506 = vst.msk [vmem:[#allocation18 - $0x7] sm:$0x80] %vm2505, %v2489
    // Predicated region
    $region102: #{tpu_custom_call.1} parent=1 // pred_check
      _
    $region103: #{tpu_custom_call.1} parent=1 // pred_check_branch
      %2508 = sbr.rel (0) target = $region105
    $region104: #{tpu_custom_call.1} parent=1 // pred_region
      %s2510 = ssub.s32 128, 128
      %2511 = vsyncadd [#allocation8], %s2510
      %s2513 = sshll.u32 [#allocation17], 4
      %s2514 = int_to_ptr.vmem [resolvable:$true] %s2513
      %2516 = dma.vmem_to_hbm [thread:$0]  %s2514, 128, %s13, [#allocation8]
    $region105: #{tpu_custom_call.1} parent=1 // pred_fallthru
      _
    // Predicated region
    $region106: #{tpu_custom_call.1} parent=1 // pred_check
      _
    $region107: #{tpu_custom_call.1} parent=1 // pred_check_branch
      %2518 = sbr.rel (0) target = $region109
    $region108: #{tpu_custom_call.1} parent=1 // pred_region
      %s2520 = ssub.s32 16, 16
      %2521 = vsyncadd [#allocation19], %s2520
      %s2523 = sshll.u32 [#allocation18], 4
      %s2524 = int_to_ptr.vmem [resolvable:$true] %s2523
      %2526 = dma.vmem_to_hbm [thread:$0]  %s2524, 16, %s14, [#allocation19]
    $region109: #{tpu_custom_call.1} parent=1 // pred_fallthru
      _
    // Predicated region
    $region110: #{tpu_custom_call.1} parent=1 // pred_check
      _
    $region111: #{tpu_custom_call.1} parent=1 // pred_check_branch
      %2528 = sbr.rel (0) target = $region113
    $region112: #{tpu_custom_call.1} parent=1 // pred_region
      %2529 = dma.done [#allocation8], 128
    $region113: #{tpu_custom_call.1} parent=1 // pred_fallthru
      _
    // Predicated region
    $region114: #{tpu_custom_call.1} parent=1 // pred_check
      _
    $region115: #{tpu_custom_call.1} parent=1 // pred_check_branch
      %2531 = sbr.rel (0) target = $region117
    $region116: #{tpu_custom_call.1} parent=1 // pred_region
      %2532 = dma.done [#allocation19], 16
    $region117: #{tpu_custom_call.1} parent=1 // pred_fallthru
      _
    %2533 = vsyncpa [#allocation7], 1
    %2534 = vsyncpa [#allocation10], 1
    %2535 = vsyncpa [#allocation13], 1
    %2536 = vsyncpa [#allocation16], 1
    %2537 = vsyncpa [#allocation8], 1
    %2538 = vsyncpa [#allocation19], 1
  %2539 = vsyncmov [#allocation3]
  %s2540 = vpop.sfrf %2539
  %p2541 = scmp.eq.s32.totalorder %s2540, 0
  %p2542 = pneg %p2541
  %2544 = shalt.err (%p2542)
  %s2545 = scalar_lea.sflag [#allocation3], 1
  %2546 = vsyncmov %s2545
  %s2547 = vpop.sfrf %2546
  %p2548 = scmp.eq.s32.totalorder %s2547, 0
  %p2549 = pneg %p2548
  %2551 = shalt.err (%p2549)
  %s2552 = scalar_lea.sflag [#allocation3], 2
  %2553 = vsyncmov %s2552
  %s2554 = vpop.sfrf %2553
  %p2555 = scmp.eq.s32.totalorder %s2554, 0
  %p2556 = pneg %p2555
  %2558 = shalt.err (%p2556)
  %s2559 = scalar_lea.sflag [#allocation3], 3
  %2560 = vsyncmov %s2559
  %s2561 = vpop.sfrf %2560
  %p2562 = scmp.eq.s32.totalorder %s2561, 0
  %p2563 = pneg %p2562
  %2565 = shalt.err (%p2563)
  %s2566 = scalar_lea.sflag [#allocation3], 4
  %2567 = vsyncmov %s2566
  %s2568 = vpop.sfrf %2567
  %p2569 = scmp.eq.s32.totalorder %s2568, 0
  %p2570 = pneg %p2569
  %2572 = shalt.err (%p2570)
  %s2573 = scalar_lea.sflag [#allocation3], 5
  %2574 = vsyncmov %s2573
  %s2575 = vpop.sfrf %2574
  %p2576 = scmp.eq.s32.totalorder %s2575, 0
  %p2577 = pneg %p2576
  %2579 = shalt.err (%p2577)
  %s2580 = scalar_lea.sflag [#allocation3], 6
  %2581 = vsyncmov %s2580
  %s2582 = vpop.sfrf %2581
  %p2583 = scmp.eq.s32.totalorder %s2582, 0
  %p2584 = pneg %p2583
  %2586 = shalt.err (%p2584)
  %s2587 = scalar_lea.sflag [#allocation3], 7
  %2588 = vsyncmov %s2587
  %s2589 = vpop.sfrf %2588
  %p2590 = scmp.eq.s32.totalorder %s2589, 0
  %p2591 = pneg %p2590
  %2593 = shalt.err (%p2591)

</llo_original>
